<compile_context>
chip_gen: v5e
topology: v5e:2x2
jax: 0.10.0
libtpu: 0.0.40
codegen_flags: <defaults>
</compile_context>

<pallas_src>
import functools

import jax
import jax.numpy as jnp
from jax.experimental import pallas as pl
from jax.experimental.pallas import tpu as pltpu

MASK_VALUE = -1e9
LN_EPS = 1e-5


def _layernorm_padded(h, g, b, d_real):
    """LayerNorm over the last axis where only the first d_real lanes are live (rest are
    zero-padded). Statistics are corrected so the result equals the unpadded math; the
    zero-padded gamma/beta keep padded lanes at exactly 0."""
    d_pad = h.shape[-1] - d_real
    inv_d = 1.0 / float(d_real)
    mu = jnp.sum(h, axis=-1, keepdims=True) * inv_d
    c = h - mu
    var = (jnp.sum(c * c, axis=-1, keepdims=True) - float(d_pad) * mu * mu) * inv_d
    return c * jax.lax.rsqrt(var + LN_EPS) * g + b


def _masked_log_softmax(logits, mask_rows):
    # logits, mask_rows: (Bt, N); log-softmax over last axis; masked entries -> -1e9
    x = jnp.where(mask_rows > 0.5, logits, MASK_VALUE)
    m = jnp.max(x, axis=-1, keepdims=True)
    lse = jnp.log(jnp.sum(jnp.exp(x - m), axis=-1, keepdims=True)) + m
    return x - lse


def dpgfn_kernel(
    x_ref, rel_ref, vec_ref,
    wq_ref, wk_ref, wv_ref, wo_ref, rel_scale_ref,
    ln1_g_ref, ln1_b_ref, ln2_g_ref, ln2_b_ref,
    wff1_ref, bff1_ref, wff2_ref, bff2_ref,
    w1c_ref, b1c_ref, w2c_ref, b2c_ref,
    ut_ref, wl_ref, wr_ref, bbi_ref,
    out_ref, *, d_real, batch_major_out,
):
    bf16 = jnp.bfloat16
    x = x_ref[...]                               # (Bt, N, Dp) f32; lanes >= d_real are zero
    Bt, N, Dp = x.shape
    vecs = vec_ref[...]                          # (Bt, 5, N) f32 packed per-batch vectors
    am_bias = vecs[:, 0:1, :]                    # (Bt, 1, N) additive attention-key bias
    dep_mask = vecs[:, 1, :]                     # (Bt, N)
    bw_mask = vecs[:, 2, :]                      # (Bt, N)
    onehot = vecs[:, 3, :]                       # (Bt, N) one-hot of dep_id
    head_mask = vecs[:, 4, :]                    # (Bt, N) = mask[b, :, dep_id]

    # -------- backbone: relation-biased 1-layer transformer encoder --------
    # TODO(synk): TransformerEncoder(**config.backbone) source is external; a standard
    # 1-layer / 1-head post-LN encoder with graph_relations as an additive attention
    # bias and attn_mask as a key mask is used here.
    flat_x = x.reshape(Bt * N, Dp)
    xb = flat_x.astype(bf16)
    q = jnp.dot(xb, wq_ref[...], preferred_element_type=jnp.float32).reshape(Bt, N, Dp)
    k = jnp.dot(xb, wk_ref[...], preferred_element_type=jnp.float32).reshape(Bt, N, Dp)
    v = jnp.dot(xb, wv_ref[...], preferred_element_type=jnp.float32).reshape(Bt, N, Dp)

    # 1/sqrt(D) is pre-folded into Wq in the wrapper (O(B*N*D) instead of O(B*N^2))
    scores = jnp.einsum('bnd,bmd->bnm', q.astype(bf16), k.astype(bf16),
                        preferred_element_type=jnp.float32)
    scores = scores + rel_scale_ref[0, 0] * rel_ref[...].astype(jnp.float32) + am_bias
    smax = jnp.max(scores, axis=-1, keepdims=True)
    p = jnp.exp(scores - smax)
    # normalization fused into the context (approx reciprocal runs in the EUP slot)
    inv_l = pl.reciprocal(jnp.sum(p, axis=-1, keepdims=True), approx=True)
    ctx = jnp.einsum('bnm,bmd->bnd', p.astype(bf16), v.astype(bf16),
                     preferred_element_type=jnp.float32) * inv_l

    ctx_o = jnp.dot(ctx.reshape(Bt * N, Dp).astype(bf16), wo_ref[...],
                    preferred_element_type=jnp.float32)
    h = _layernorm_padded(flat_x + ctx_o, ln1_g_ref[...], ln1_b_ref[...], d_real)
    ff = jnp.maximum(
        jnp.dot(h.astype(bf16), wff1_ref[...],
                preferred_element_type=jnp.float32) + bff1_ref[...], 0.0)
    ff = jnp.dot(ff.astype(bf16), wff2_ref[...],
                 preferred_element_type=jnp.float32) + bff2_ref[...]
    hidden_flat = _layernorm_padded(h + ff, ln2_g_ref[...], ln2_b_ref[...], d_real)
    hidden = hidden_flat.reshape(Bt, N, Dp)

    # -------- fused dep / backward MLPs (shared 1st-layer matmul + shared 2nd-layer mul) ----
    hcat = jnp.maximum(
        jnp.dot(hidden_flat.astype(bf16), w1c_ref[...],
                preferred_element_type=jnp.float32) + b1c_ref[...], 0.0)
    hcat = hcat.reshape(Bt, N, -1)               # (Bt, N, 2*Hm): [dep block | backward block]
    prod = hcat * w2c_ref[...]                   # one VPU multiply for both heads
    hm = prod.shape[-1] // 2
    dep_logits = jnp.sum(prod[..., :hm], axis=-1) + b2c_ref[0, 0]      # (Bt, N)
    bwd_logits = jnp.sum(prod[..., hm:], axis=-1) + b2c_ref[0, 1]      # (Bt, N)

    # -------- one-hot gather of x_dep (head_mask was already gathered in the wrapper) -----
    x_dep = jnp.sum(hidden * onehot[:, :, None], axis=1)               # (Bt, Dp) = hidden[b, dep_id]

    # -------- BiAffine head scores: s_i = x_i^T U x_dep + wl.x_i + wr.x_dep + b ----------
    ud = jnp.dot(x_dep.astype(bf16), ut_ref[...],
                 preferred_element_type=jnp.float32)                   # (Bt, Dp) = U @ x_dep
    s = jnp.sum(hidden * (ud + wl_ref[...])[:, None, :], axis=-1)      # wl folded into ud
    s = s + jnp.sum(x_dep * wr_ref[...], axis=-1, keepdims=True) + bbi_ref[...]

    # -------- single stacked output store --------
    dep_ls = _masked_log_softmax(dep_logits, dep_mask)
    head_ls = _masked_log_softmax(s, head_mask)
    bwd_out = jnp.where(bw_mask > 0.5, bwd_logits, MASK_VALUE)
    out_ref[...] = jnp.stack([dep_ls, head_ls, bwd_out],
                             axis=1 if batch_major_out else 0)


def _round_up(v, m):
    return ((v + m - 1) // m) * m


def _pad2(a, rows, cols):
    return jnp.pad(a, ((0, rows - a.shape[0]), (0, cols - a.shape[1])))


def dpgfn_forward(params, node_embeddings, graph_relations, mask, attn_mask, actions):
    """Forward pass of DPGFlowNet with `actions` provided (teacher forcing)."""
    B, N, D = node_embeddings.shape
    f32, bf16 = jnp.float32, jnp.bfloat16

    # ---- lane-aligned padded sizes so every matmul operand is an unpadded (8,128) tile ----
    Dp = _round_up(D, 128)
    F = params["wff1"].shape[1]
    Fp = _round_up(F, 128)
    Hd, Hb = params["wd1"].shape[1], params["wb1"].shape[1]
    Hmp = _round_up(max(Hd, Hb), 64)             # 2*Hmp is a multiple of 128 lanes

    # ---- glue: masks, dep one-hot / head-mask gathers, additive attention-key bias ----
    head_ids = actions[:, 0:1]
    dep_ids = actions[:, 1:2]
    dep_mask = jnp.any(mask, axis=1)                                           # (B, N)
    bw_mask = jnp.logical_not(dep_mask).at[:, 0].set(False).at[:, -1].set(False)
    head_mask = jnp.take_along_axis(                                           # mask[b,:,dep_id]
        mask, jnp.broadcast_to(dep_ids[:, :, None], (B, N, 1)), axis=2)[..., 0]
    dep_oh = jax.nn.one_hot(actions[:, 1], N, dtype=f32)                       # (B, N)
    am_bias = (attn_mask.astype(f32) - 1.0) * 1e9                              # (B, N)
    vecs = jnp.stack([am_bias, dep_mask.astype(f32), bw_mask.astype(f32),
                      dep_oh, head_mask.astype(f32)], axis=1)                  # (B, 5, N)
    x_pad = jnp.pad(node_embeddings.astype(f32), ((0, 0), (0, 0), (0, Dp - D)))
    rel_bf = graph_relations.astype(bf16)                                      # 0/1 exact in bf16

    # ---- weight packing: pad to lane multiples, fuse heads, fold scale, pre-cast to bf16 ----
    inv_sqrt_d = 1.0 / (float(D) ** 0.5)
    w1c = jnp.concatenate([_pad2(params["wd1"], Dp, Hmp),
                           _pad2(params["wb1"], Dp, Hmp)], axis=1).astype(bf16)
    b1c = jnp.concatenate([_pad2(params["bd1"], 1, Hmp),
                           _pad2(params["bb1"], 1, Hmp)], axis=1)
    w2c = jnp.concatenate([_pad2(params["wd2"].T, 1, Hmp),
                           _pad2(params["wb2"].T, 1, Hmp)], axis=1)            # (1, 2*Hmp)
    b2c = jnp.concatenate([params["bd2"], params["bb2"]], axis=1)              # (1, 2)

    weights = [
        _pad2(params["wq"] * inv_sqrt_d, Dp, Dp).astype(bf16),
        _pad2(params["wk"], Dp, Dp).astype(bf16),
        _pad2(params["wv"], Dp, Dp).astype(bf16),
        _pad2(params["wo"], Dp, Dp).astype(bf16),
        params["rel_scale"].astype(f32),
        _pad2(params["ln1_g"], 1, Dp), _pad2(params["ln1_b"], 1, Dp),
        _pad2(params["ln2_g"], 1, Dp), _pad2(params["ln2_b"], 1, Dp),
        _pad2(params["wff1"], Dp, Fp).astype(bf16), _pad2(params["bff1"], 1, Fp),
        _pad2(params["wff2"], Fp, Dp).astype(bf16), _pad2(params["bff2"], 1, Dp),
        w1c, b1c, w2c, b2c,
        _pad2(params["u"].T, Dp, Dp).astype(bf16),
        _pad2(params["wl"], 1, Dp), _pad2(params["wr"], 1, Dp), params["bbi"],
    ]
    weight_bytes = sum(int(w.size) * w.dtype.itemsize for w in weights)

    # ---- VMEM-budgeted batch tile (v7x: 64 MiB VMEM per TC vs 128 MiB on v5e/v6e) ----
    try:
        vmem_cap = int(pltpu.get_tpu_info().vmem_capacity_bytes)
    except Exception:
        vmem_cap = 64 * 1024 * 1024
    budget = min(int(vmem_cap * 0.7), 96 * 1024 * 1024)
    per_b_io = N * Dp * 4 + N * N * 2 + 5 * N * 4 + 3 * N * 4
    per_b_work = 4 * (6 * N * Dp + N * Fp + 2 * N * Hmp + 2 * N * N)
    per_b = 2 * per_b_io + per_b_work
    bt_fit = int(max(1, min(B, (budget - weight_bytes) // max(per_b, 1))))
    if bt_fit >= B:
        Bt = B                                   # single grid step: block == full batch
    else:
        bt = min(bt_fit, max(1, -(-B // 2)))     # keep >= 2 grid steps for v7x megacore
        Bt = (bt // 8) * 8 if bt >= 8 else bt
    Bp = -(-B // Bt) * Bt
    nb = Bp // Bt
    # lane/sublane-dense (3, Bp, N) output when the block is layout-legal, else (Bp, 3, N)
    batch_major_out = not (nb == 1 or Bt % 8 == 0)

    batched_inputs = [x_pad, rel_bf, vecs]
    if Bp != B:
        batched_inputs = [jnp.pad(a, ((0, Bp - B),) + ((0, 0),) * (a.ndim - 1))
                          for a in batched_inputs]

    in_specs_data = [pl.BlockSpec((Bt,) + t, lambda g: (g, 0, 0))
                     for t in [(N, Dp), (N, N), (5, N)]]
    if batch_major_out:
        out_shape = jax.ShapeDtypeStruct((Bp, 3, N), f32)
        out_specs = pl.BlockSpec((Bt, 3, N), lambda g: (g, 0, 0))
    else:
        out_shape = jax.ShapeDtypeStruct((3, Bp, N), f32)
        out_specs = pl.BlockSpec((3, Bt, N), lambda g: (0, g, 0))

    Hc = 2 * Hmp
    flops = Bp * (2 * N * Dp * Dp * 4 + 2 * N * N * Dp * 2 + 2 * N * Dp * Fp * 2
                  + 2 * N * Dp * Hc + 2 * Dp * Dp)
    transcendentals = Bp * (N * N + 5 * N)
    bytes_accessed = (sum(int(a.size) * a.dtype.itemsize for a in batched_inputs)
                      + weight_bytes + Bp * 3 * N * 4)

    kern = functools.partial(dpgfn_kernel, d_real=D, batch_major_out=batch_major_out)
    compiler_params = pltpu.CompilerParams(
        dimension_semantics=("parallel",),       # independent batch tiles -> v7x megacore
        vmem_limit_bytes=int(vmem_cap * 0.85))
    cost = pl.CostEstimate(flops=int(flops), transcendentals=int(transcendentals),
                           bytes_accessed=int(bytes_accessed))

    def build_call(single_buffer_weights):
        def weight_spec(w):
            if single_buffer_weights:
                # constant block index across the grid -> second pipeline buffer is waste
                return pl.BlockSpec(w.shape, lambda g: (0, 0),
                                    pipeline_mode=pl.Buffered(1))
            return pl.BlockSpec(w.shape, lambda g: (0, 0))
        grid_spec = pltpu.PrefetchScalarGridSpec(
            num_scalar_prefetch=0, grid=(nb,),
            in_specs=in_specs_data + [weight_spec(w) for w in weights],
            out_specs=out_specs)
        return pl.pallas_call(kern, grid_spec=grid_spec, out_shape=out_shape,
                              compiler_params=compiler_params, cost_estimate=cost)

    try:
        out = build_call(True)(*batched_inputs, *weights)
    except Exception:
        # installed Pallas may reject single-buffered pipeline_mode; use default buffering
        out = build_call(False)(*batched_inputs, *weights)

    if batch_major_out:
        dep_logsm, head_logsm, backward_logits = out[:B, 0, :], out[:B, 1, :], out[:B, 2, :]
    else:
        dep_logsm, head_logsm, backward_logits = out[0, :B], out[1, :B], out[2, :B]

    log_pF_dep = jnp.take_along_axis(dep_logsm, dep_ids, axis=1)[:, 0]
    log_pF_head = jnp.take_along_axis(head_logsm, head_ids, axis=1)[:, 0]
    actions_out = jnp.concatenate([head_ids, dep_ids], axis=1)
    # TODO(synk): the sampling path (actions=None -> sample_action with exp_temp /
    # rand_coef categorical sampling) is not implemented here.
    return actions_out, (log_pF_head, log_pF_dep), backward_logits


def init_params(key, D, F, Hd, Hb):
    ks = jax.random.split(key, 16)
    f32 = jnp.float32

    def w(k, shape, scale):
        return jax.random.normal(k, shape, f32) * scale

    s = 1.0 / (D ** 0.5)
    p = {}
    p["wq"] = w(ks[0], (D, D), s)
    p["wk"] = w(ks[1], (D, D), s)
    p["wv"] = w(ks[2], (D, D), s)
    p["wo"] = w(ks[3], (D, D), s)
    p["rel_scale"] = jnp.ones((1, 1), f32)
    p["ln1_g"] = jnp.ones((1, D), f32)
    p["ln1_b"] = jnp.zeros((1, D), f32)
    p["ln2_g"] = jnp.ones((1, D), f32)
    p["ln2_b"] = jnp.zeros((1, D), f32)
    p["wff1"] = w(ks[4], (D, F), s)
    p["bff1"] = jnp.zeros((1, F), f32)
    p["wff2"] = w(ks[5], (F, D), 1.0 / (F ** 0.5))
    p["bff2"] = jnp.zeros((1, D), f32)
    p["wd1"] = w(ks[6], (D, Hd), s)
    p["bd1"] = jnp.zeros((1, Hd), f32)
    p["wd2"] = w(ks[7], (Hd, 1), 1.0 / (Hd ** 0.5))
    p["bd2"] = jnp.zeros((1, 1), f32)
    p["u"] = w(ks[8], (D, D), s)
    p["wl"] = w(ks[9], (1, D), s)
    p["wr"] = w(ks[10], (1, D), s)
    p["bbi"] = jnp.zeros((1, 1), f32)
    p["wb1"] = w(ks[11], (D, Hb), s)
    p["bb1"] = jnp.zeros((1, Hb), f32)
    p["wb2"] = w(ks[12], (Hb, 1), 1.0 / (Hb ** 0.5))
    p["bb2"] = jnp.zeros((1, 1), f32)
    return p


if __name__ == "__main__":
    key = jax.random.PRNGKey(0)
    B, N, D, F, Hd, Hb = 2, 8, 32, 64, 32, 32

    k1, k2, k3, kp = jax.random.split(key, 4)
    node_embeddings = jax.random.normal(k1, (B, N, D), jnp.float32)
    graph_relations = jax.random.bernoulli(k2, 0.3, (B, N, N)).astype(jnp.float32)
    mask = jax.random.bernoulli(k3, 0.6, (B, N, N))
    # satisfy DPGFlowNet.forward_policy mask assertions
    mask = mask.at[:, :, 0].set(False).at[:, :, -1].set(False)
    mask = mask.at[:, -1, :].set(False)
    attn_mask = jnp.ones((B, N), dtype=bool)
    actions = jnp.array([[2, 3], [1, 4]], dtype=jnp.int32)   # (head_id, dep_id) per batch

    params = init_params(kp, D, F, Hd, Hb)

    actions_out, (log_pF_head, log_pF_dep), backward_logits = dpgfn_forward(
        params, node_embeddings, graph_relations, mask, attn_mask, actions)
    jax.block_until_ready((actions_out, log_pF_head, log_pF_dep, backward_logits))
    assert actions_out.shape == (B, 2)
    assert log_pF_head.shape == (B,) and log_pF_dep.shape == (B,)
    assert backward_logits.shape == (B, N)
    print("KERNEL_OK")
</pallas_src>

<mosaic_0001>
module attributes {stable_mosaic.version = 11 : i64} {
  func.func @dpgfn_kernel(%arg0: i32, %arg1: memref<2x8x128xf32, #tpu.memory_space<vmem>>, %arg2: memref<2x8x8xbf16, #tpu.memory_space<vmem>>, %arg3: memref<2x5x8xf32, #tpu.memory_space<vmem>>, %arg4: memref<128x128xbf16, #tpu.memory_space<vmem>>, %arg5: memref<128x128xbf16, #tpu.memory_space<vmem>>, %arg6: memref<128x128xbf16, #tpu.memory_space<vmem>>, %arg7: memref<128x128xbf16, #tpu.memory_space<vmem>>, %arg8: memref<1x1xf32, #tpu.memory_space<vmem>>, %arg9: memref<1x128xf32, #tpu.memory_space<vmem>>, %arg10: memref<1x128xf32, #tpu.memory_space<vmem>>, %arg11: memref<1x128xf32, #tpu.memory_space<vmem>>, %arg12: memref<1x128xf32, #tpu.memory_space<vmem>>, %arg13: memref<128x128xbf16, #tpu.memory_space<vmem>>, %arg14: memref<1x128xf32, #tpu.memory_space<vmem>>, %arg15: memref<128x128xbf16, #tpu.memory_space<vmem>>, %arg16: memref<1x128xf32, #tpu.memory_space<vmem>>, %arg17: memref<128x128xbf16, #tpu.memory_space<vmem>>, %arg18: memref<1x128xf32, #tpu.memory_space<vmem>>, %arg19: memref<1x128xf32, #tpu.memory_space<vmem>>, %arg20: memref<1x2xf32, #tpu.memory_space<vmem>>, %arg21: memref<128x128xbf16, #tpu.memory_space<vmem>>, %arg22: memref<1x128xf32, #tpu.memory_space<vmem>>, %arg23: memref<1x128xf32, #tpu.memory_space<vmem>>, %arg24: memref<1x1xf32, #tpu.memory_space<vmem>>, %arg25: memref<3x2x8xf32, #tpu.memory_space<vmem>>) attributes {dimension_semantics = [#tpu.dimension_semantics<parallel>], iteration_bounds = array<i64: 1>, scalar_prefetch = 0 : i64, scratch_operands = 0 : i64, tpu.core_type = #tpu.core_type<tc>, window_params = [{transform_indices = @transform_0, window_bounds = array<i64: 2, 8, 128>}, {transform_indices = @transform_1, window_bounds = array<i64: 2, 8, 8>}, {transform_indices = @transform_2, window_bounds = array<i64: 2, 5, 8>}, {pipeline_mode = #tpu.pipeline_mode<synchronous>, transform_indices = @transform_3, window_bounds = array<i64: 128, 128>}, {pipeline_mode = #tpu.pipeline_mode<synchronous>, transform_indices = @transform_4, window_bounds = array<i64: 128, 128>}, {pipeline_mode = #tpu.pipeline_mode<synchronous>, transform_indices = @transform_5, window_bounds = array<i64: 128, 128>}, {pipeline_mode = #tpu.pipeline_mode<synchronous>, transform_indices = @transform_6, window_bounds = array<i64: 128, 128>}, {pipeline_mode = #tpu.pipeline_mode<synchronous>, transform_indices = @transform_7, window_bounds = array<i64: 1, 1>}, {pipeline_mode = #tpu.pipeline_mode<synchronous>, transform_indices = @transform_8, window_bounds = array<i64: 1, 128>}, {pipeline_mode = #tpu.pipeline_mode<synchronous>, transform_indices = @transform_9, window_bounds = array<i64: 1, 128>}, {pipeline_mode = #tpu.pipeline_mode<synchronous>, transform_indices = @transform_10, window_bounds = array<i64: 1, 128>}, {pipeline_mode = #tpu.pipeline_mode<synchronous>, transform_indices = @transform_11, window_bounds = array<i64: 1, 128>}, {pipeline_mode = #tpu.pipeline_mode<synchronous>, transform_indices = @transform_12, window_bounds = array<i64: 128, 128>}, {pipeline_mode = #tpu.pipeline_mode<synchronous>, transform_indices = @transform_13, window_bounds = array<i64: 1, 128>}, {pipeline_mode = #tpu.pipeline_mode<synchronous>, transform_indices = @transform_14, window_bounds = array<i64: 128, 128>}, {pipeline_mode = #tpu.pipeline_mode<synchronous>, transform_indices = @transform_15, window_bounds = array<i64: 1, 128>}, {pipeline_mode = #tpu.pipeline_mode<synchronous>, transform_indices = @transform_16, window_bounds = array<i64: 128, 128>}, {pipeline_mode = #tpu.pipeline_mode<synchronous>, transform_indices = @transform_17, window_bounds = array<i64: 1, 128>}, {pipeline_mode = #tpu.pipeline_mode<synchronous>, transform_indices = @transform_18, window_bounds = array<i64: 1, 128>}, {pipeline_mode = #tpu.pipeline_mode<synchronous>, transform_indices = @transform_19, window_bounds = array<i64: 1, 2>}, {pipeline_mode = #tpu.pipeline_mode<synchronous>, transform_indices = @transform_20, window_bounds = array<i64: 128, 128>}, {pipeline_mode = #tpu.pipeline_mode<synchronous>, transform_indices = @transform_21, window_bounds = array<i64: 1, 128>}, {pipeline_mode = #tpu.pipeline_mode<synchronous>, transform_indices = @transform_22, window_bounds = array<i64: 1, 128>}, {pipeline_mode = #tpu.pipeline_mode<synchronous>, transform_indices = @transform_23, window_bounds = array<i64: 1, 1>}, {transform_indices = @transform_24, window_bounds = array<i64: 3, 2, 8>}]} {
    %c0 = arith.constant 0 : index
    %c0_0 = arith.constant 0 : index
    %c0_1 = arith.constant 0 : index
    %0 = vector.load %arg1[%c0, %c0_0, %c0_1] : memref<2x8x128xf32, #tpu.memory_space<vmem>>, vector<2x8x128xf32>
    %c0_2 = arith.constant 0 : index
    %c0_3 = arith.constant 0 : index
    %c0_4 = arith.constant 0 : index
    %1 = vector.load %arg3[%c0_2, %c0_3, %c0_4] : memref<2x5x8xf32, #tpu.memory_space<vmem>>, vector<2x5x8xf32>
    %2 = vector.extract_strided_slice %1 {offsets = [0, 0, 0], sizes = [2, 1, 8], strides = [1, 1, 1]} : vector<2x5x8xf32> to vector<2x1x8xf32>
    %3 = vector.extract_strided_slice %1 {offsets = [0, 1, 0], sizes = [2, 1, 8], strides = [1, 1, 1]} : vector<2x5x8xf32> to vector<2x1x8xf32>
    %4 = vector.shape_cast %3 : vector<2x1x8xf32> to vector<2x8xf32>
    %5 = vector.extract_strided_slice %1 {offsets = [0, 2, 0], sizes = [2, 1, 8], strides = [1, 1, 1]} : vector<2x5x8xf32> to vector<2x1x8xf32>
    %6 = vector.shape_cast %5 : vector<2x1x8xf32> to vector<2x8xf32>
    %7 = vector.extract_strided_slice %1 {offsets = [0, 3, 0], sizes = [2, 1, 8], strides = [1, 1, 1]} : vector<2x5x8xf32> to vector<2x1x8xf32>
    %8 = vector.shape_cast %7 : vector<2x1x8xf32> to vector<2x8xf32>
    %9 = vector.extract_strided_slice %1 {offsets = [0, 4, 0], sizes = [2, 1, 8], strides = [1, 1, 1]} : vector<2x5x8xf32> to vector<2x1x8xf32>
    %10 = vector.shape_cast %9 : vector<2x1x8xf32> to vector<2x8xf32>
    %11 = vector.shape_cast %0 : vector<2x8x128xf32> to vector<16x128xf32>
    %12 = arith.truncf %11 : vector<16x128xf32> to vector<16x128xbf16>
    %c0_5 = arith.constant 0 : index
    %c0_6 = arith.constant 0 : index
    %13 = vector.load %arg4[%c0_5, %c0_6] : memref<128x128xbf16, #tpu.memory_space<vmem>>, vector<128x128xbf16>
    %cst = arith.constant dense<0.000000e+00> : vector<16x128xf32>
    %14 = tpu.matmul %12, %13, %cst {dimension_numbers = #tpu.dot_dimension_numbers<[1], [0], [0], [1], [0, 0, 1, 1], [], []>} : vector<16x128xbf16>, vector<128x128xbf16>, vector<16x128xf32> -> vector<16x128xf32>
    %15 = vector.shape_cast %14 : vector<16x128xf32> to vector<2x8x128xf32>
    %c0_7 = arith.constant 0 : index
    %c0_8 = arith.constant 0 : index
    %16 = vector.load %arg5[%c0_7, %c0_8] : memref<128x128xbf16, #tpu.memory_space<vmem>>, vector<128x128xbf16>
    %cst_9 = arith.constant dense<0.000000e+00> : vector<16x128xf32>
    %17 = tpu.matmul %12, %16, %cst_9 {dimension_numbers = #tpu.dot_dimension_numbers<[1], [0], [0], [1], [0, 0, 1, 1], [], []>} : vector<16x128xbf16>, vector<128x128xbf16>, vector<16x128xf32> -> vector<16x128xf32>
    %18 = vector.shape_cast %17 : vector<16x128xf32> to vector<2x8x128xf32>
    %c0_10 = arith.constant 0 : index
    %c0_11 = arith.constant 0 : index
    %19 = vector.load %arg6[%c0_10, %c0_11] : memref<128x128xbf16, #tpu.memory_space<vmem>>, vector<128x128xbf16>
    %cst_12 = arith.constant dense<0.000000e+00> : vector<16x128xf32>
    %20 = tpu.matmul %12, %19, %cst_12 {dimension_numbers = #tpu.dot_dimension_numbers<[1], [0], [0], [1], [0, 0, 1, 1], [], []>} : vector<16x128xbf16>, vector<128x128xbf16>, vector<16x128xf32> -> vector<16x128xf32>
    %21 = vector.shape_cast %20 : vector<16x128xf32> to vector<2x8x128xf32>
    %22 = arith.truncf %15 : vector<2x8x128xf32> to vector<2x8x128xbf16>
    %23 = arith.truncf %18 : vector<2x8x128xf32> to vector<2x8x128xbf16>
    "tpu.trace_start"() <{level = 10 : i32, message = "bnd,bmd->bnm"}> : () -> ()
    %cst_13 = arith.constant dense<0.000000e+00> : vector<2x8x8xf32>
    %24 = tpu.matmul %22, %23, %cst_13 {dimension_numbers = #tpu.dot_dimension_numbers<[2], [2], [1], [1], [0, 0, 0, 1, 1, 1], [0], [0]>} : vector<2x8x128xbf16>, vector<2x8x128xbf16>, vector<2x8x8xf32> -> vector<2x8x8xf32>
    "tpu.trace_stop"() : () -> ()
    %c0_14 = arith.constant 0 : index
    %c0_15 = arith.constant 0 : index
    %25 = vector.load %arg8[%c0_14, %c0_15] : memref<1x1xf32, #tpu.memory_space<vmem>>, vector<1x1xf32>
    %26 = vector.extract %25[0, 0] : f32 from vector<1x1xf32>
    %c0_16 = arith.constant 0 : index
    %c0_17 = arith.constant 0 : index
    %c0_18 = arith.constant 0 : index
    %27 = vector.load %arg2[%c0_16, %c0_17, %c0_18] : memref<2x8x8xbf16, #tpu.memory_space<vmem>>, vector<2x8x8xbf16>
    %28 = arith.extf %27 : vector<2x8x8xbf16> to vector<2x8x8xf32>
    %29 = vector.broadcast %26 : f32 to vector<2x8x8xf32>
    %30 = arith.mulf %29, %28 : vector<2x8x8xf32>
    %31 = arith.addf %24, %30 : vector<2x8x8xf32>
    %32 = vector.broadcast %2 : vector<2x1x8xf32> to vector<2x8x8xf32>
    %33 = arith.addf %31, %32 : vector<2x8x8xf32>
    %cst_19 = arith.constant dense<0xFF800000> : vector<2x8xf32>
    %34 = vector.multi_reduction <maximumf>, %33, %cst_19 [2] : vector<2x8x8xf32> to vector<2x8xf32>
    %35 = vector.shape_cast %34 : vector<2x8xf32> to vector<2x8x1xf32>
    %36 = vector.broadcast %35 : vector<2x8x1xf32> to vector<2x8x8xf32>
    %37 = arith.subf %33, %36 : vector<2x8x8xf32>
    %38 = math.exp %37 : vector<2x8x8xf32>
    %cst_20 = arith.constant dense<0.000000e+00> : vector<2x8xf32>
    %39 = vector.multi_reduction <add>, %38, %cst_20 [2] : vector<2x8x8xf32> to vector<2x8xf32>
    %40 = vector.shape_cast %39 : vector<2x8xf32> to vector<2x8x1xf32>
    %41 = tpu.reciprocal %40 {approx = true} : vector<2x8x1xf32> -> vector<2x8x1xf32>
    %42 = arith.truncf %38 : vector<2x8x8xf32> to vector<2x8x8xbf16>
    %43 = arith.truncf %21 : vector<2x8x128xf32> to vector<2x8x128xbf16>
    "tpu.trace_start"() <{level = 10 : i32, message = "bnm,bmd->bnd"}> : () -> ()
    %cst_21 = arith.constant dense<0.000000e+00> : vector<2x8x128xf32>
    %44 = tpu.matmul %42, %43, %cst_21 {dimension_numbers = #tpu.dot_dimension_numbers<[2], [1], [1], [2], [0, 0, 0, 1, 1, 2], [0], [0]>} : vector<2x8x8xbf16>, vector<2x8x128xbf16>, vector<2x8x128xf32> -> vector<2x8x128xf32>
    "tpu.trace_stop"() : () -> ()
    %45 = vector.broadcast %41 : vector<2x8x1xf32> to vector<2x8x128xf32>
    %46 = arith.mulf %44, %45 : vector<2x8x128xf32>
    %47 = vector.shape_cast %46 : vector<2x8x128xf32> to vector<16x128xf32>
    %48 = arith.truncf %47 : vector<16x128xf32> to vector<16x128xbf16>
    %c0_22 = arith.constant 0 : index
    %c0_23 = arith.constant 0 : index
    %49 = vector.load %arg7[%c0_22, %c0_23] : memref<128x128xbf16, #tpu.memory_space<vmem>>, vector<128x128xbf16>
    %cst_24 = arith.constant dense<0.000000e+00> : vector<16x128xf32>
    %50 = tpu.matmul %48, %49, %cst_24 {dimension_numbers = #tpu.dot_dimension_numbers<[1], [0], [0], [1], [0, 0, 1, 1], [], []>} : vector<16x128xbf16>, vector<128x128xbf16>, vector<16x128xf32> -> vector<16x128xf32>
    %51 = arith.addf %11, %50 : vector<16x128xf32>
    %c0_25 = arith.constant 0 : index
    %c0_26 = arith.constant 0 : index
    %52 = vector.load %arg9[%c0_25, %c0_26] : memref<1x128xf32, #tpu.memory_space<vmem>>, vector<1x128xf32>
    %c0_27 = arith.constant 0 : index
    %c0_28 = arith.constant 0 : index
    %53 = vector.load %arg10[%c0_27, %c0_28] : memref<1x128xf32, #tpu.memory_space<vmem>>, vector<1x128xf32>
    %cst_29 = arith.constant dense<0.000000e+00> : vector<16xf32>
    %54 = vector.multi_reduction <add>, %51, %cst_29 [1] : vector<16x128xf32> to vector<16xf32>
    %55 = vector.shape_cast %54 : vector<16xf32> to vector<16x1xf32>
    %cst_30 = arith.constant 3.125000e-02 : f32
    %56 = vector.broadcast %cst_30 : f32 to vector<16x1xf32>
    %57 = arith.mulf %55, %56 : vector<16x1xf32>
    %58 = vector.broadcast %57 : vector<16x1xf32> to vector<16x128xf32>
    %59 = arith.subf %51, %58 : vector<16x128xf32>
    %60 = arith.mulf %59, %59 : vector<16x128xf32>
    %cst_31 = arith.constant dense<0.000000e+00> : vector<16xf32>
    %61 = vector.multi_reduction <add>, %60, %cst_31 [1] : vector<16x128xf32> to vector<16xf32>
    %62 = vector.shape_cast %61 : vector<16xf32> to vector<16x1xf32>
    %cst_32 = arith.constant 9.600000e+01 : f32
    %63 = vector.broadcast %cst_32 : f32 to vector<16x1xf32>
    %64 = arith.mulf %63, %57 : vector<16x1xf32>
    %65 = arith.mulf %64, %57 : vector<16x1xf32>
    %66 = arith.subf %62, %65 : vector<16x1xf32>
    %cst_33 = arith.constant 3.125000e-02 : f32
    %67 = vector.broadcast %cst_33 : f32 to vector<16x1xf32>
    %68 = arith.mulf %66, %67 : vector<16x1xf32>
    %cst_34 = arith.constant 9.99999974E-6 : f32
    %69 = vector.broadcast %cst_34 : f32 to vector<16x1xf32>
    %70 = arith.addf %68, %69 : vector<16x1xf32>
    %71 = math.rsqrt %70 : vector<16x1xf32>
    %72 = vector.broadcast %71 : vector<16x1xf32> to vector<16x128xf32>
    %73 = arith.mulf %59, %72 : vector<16x128xf32>
    %74 = vector.broadcast %52 : vector<1x128xf32> to vector<16x128xf32>
    %75 = arith.mulf %73, %74 : vector<16x128xf32>
    %76 = vector.broadcast %53 : vector<1x128xf32> to vector<16x128xf32>
    %77 = arith.addf %75, %76 : vector<16x128xf32>
    %78 = arith.truncf %77 : vector<16x128xf32> to vector<16x128xbf16>
    %c0_35 = arith.constant 0 : index
    %c0_36 = arith.constant 0 : index
    %79 = vector.load %arg13[%c0_35, %c0_36] : memref<128x128xbf16, #tpu.memory_space<vmem>>, vector<128x128xbf16>
    %cst_37 = arith.constant dense<0.000000e+00> : vector<16x128xf32>
    %80 = tpu.matmul %78, %79, %cst_37 {dimension_numbers = #tpu.dot_dimension_numbers<[1], [0], [0], [1], [0, 0, 1, 1], [], []>} : vector<16x128xbf16>, vector<128x128xbf16>, vector<16x128xf32> -> vector<16x128xf32>
    %c0_38 = arith.constant 0 : index
    %c0_39 = arith.constant 0 : index
    %81 = vector.load %arg14[%c0_38, %c0_39] : memref<1x128xf32, #tpu.memory_space<vmem>>, vector<1x128xf32>
    %82 = vector.broadcast %81 : vector<1x128xf32> to vector<16x128xf32>
    %83 = arith.addf %80, %82 : vector<16x128xf32>
    %cst_40 = arith.constant 0.000000e+00 : f32
    %84 = vector.broadcast %cst_40 : f32 to vector<16x128xf32>
    %85 = arith.maximumf %83, %84 : vector<16x128xf32>
    %86 = arith.truncf %85 : vector<16x128xf32> to vector<16x128xbf16>
    %c0_41 = arith.constant 0 : index
    %c0_42 = arith.constant 0 : index
    %87 = vector.load %arg15[%c0_41, %c0_42] : memref<128x128xbf16, #tpu.memory_space<vmem>>, vector<128x128xbf16>
    %cst_43 = arith.constant dense<0.000000e+00> : vector<16x128xf32>
    %88 = tpu.matmul %86, %87, %cst_43 {dimension_numbers = #tpu.dot_dimension_numbers<[1], [0], [0], [1], [0, 0, 1, 1], [], []>} : vector<16x128xbf16>, vector<128x128xbf16>, vector<16x128xf32> -> vector<16x128xf32>
    %c0_44 = arith.constant 0 : index
    %c0_45 = arith.constant 0 : index
    %89 = vector.load %arg16[%c0_44, %c0_45] : memref<1x128xf32, #tpu.memory_space<vmem>>, vector<1x128xf32>
    %90 = vector.broadcast %89 : vector<1x128xf32> to vector<16x128xf32>
    %91 = arith.addf %88, %90 : vector<16x128xf32>
    %92 = arith.addf %77, %91 : vector<16x128xf32>
    %c0_46 = arith.constant 0 : index
    %c0_47 = arith.constant 0 : index
    %93 = vector.load %arg11[%c0_46, %c0_47] : memref<1x128xf32, #tpu.memory_space<vmem>>, vector<1x128xf32>
    %c0_48 = arith.constant 0 : index
    %c0_49 = arith.constant 0 : index
    %94 = vector.load %arg12[%c0_48, %c0_49] : memref<1x128xf32, #tpu.memory_space<vmem>>, vector<1x128xf32>
    %cst_50 = arith.constant dense<0.000000e+00> : vector<16xf32>
    %95 = vector.multi_reduction <add>, %92, %cst_50 [1] : vector<16x128xf32> to vector<16xf32>
    %96 = vector.shape_cast %95 : vector<16xf32> to vector<16x1xf32>
    %cst_51 = arith.constant 3.125000e-02 : f32
    %97 = vector.broadcast %cst_51 : f32 to vector<16x1xf32>
    %98 = arith.mulf %96, %97 : vector<16x1xf32>
    %99 = vector.broadcast %98 : vector<16x1xf32> to vector<16x128xf32>
    %100 = arith.subf %92, %99 : vector<16x128xf32>
    %101 = arith.mulf %100, %100 : vector<16x128xf32>
    %cst_52 = arith.constant dense<0.000000e+00> : vector<16xf32>
    %102 = vector.multi_reduction <add>, %101, %cst_52 [1] : vector<16x128xf32> to vector<16xf32>
    %103 = vector.shape_cast %102 : vector<16xf32> to vector<16x1xf32>
    %cst_53 = arith.constant 9.600000e+01 : f32
    %104 = vector.broadcast %cst_53 : f32 to vector<16x1xf32>
    %105 = arith.mulf %104, %98 : vector<16x1xf32>
    %106 = arith.mulf %105, %98 : vector<16x1xf32>
    %107 = arith.subf %103, %106 : vector<16x1xf32>
    %cst_54 = arith.constant 3.125000e-02 : f32
    %108 = vector.broadcast %cst_54 : f32 to vector<16x1xf32>
    %109 = arith.mulf %107, %108 : vector<16x1xf32>
    %cst_55 = arith.constant 9.99999974E-6 : f32
    %110 = vector.broadcast %cst_55 : f32 to vector<16x1xf32>
    %111 = arith.addf %109, %110 : vector<16x1xf32>
    %112 = math.rsqrt %111 : vector<16x1xf32>
    %113 = vector.broadcast %112 : vector<16x1xf32> to vector<16x128xf32>
    %114 = arith.mulf %100, %113 : vector<16x128xf32>
    %115 = vector.broadcast %93 : vector<1x128xf32> to vector<16x128xf32>
    %116 = arith.mulf %114, %115 : vector<16x128xf32>
    %117 = vector.broadcast %94 : vector<1x128xf32> to vector<16x128xf32>
    %118 = arith.addf %116, %117 : vector<16x128xf32>
    %119 = vector.shape_cast %118 : vector<16x128xf32> to vector<2x8x128xf32>
    %120 = arith.truncf %118 : vector<16x128xf32> to vector<16x128xbf16>
    %c0_56 = arith.constant 0 : index
    %c0_57 = arith.constant 0 : index
    %121 = vector.load %arg17[%c0_56, %c0_57] : memref<128x128xbf16, #tpu.memory_space<vmem>>, vector<128x128xbf16>
    %cst_58 = arith.constant dense<0.000000e+00> : vector<16x128xf32>
    %122 = tpu.matmul %120, %121, %cst_58 {dimension_numbers = #tpu.dot_dimension_numbers<[1], [0], [0], [1], [0, 0, 1, 1], [], []>} : vector<16x128xbf16>, vector<128x128xbf16>, vector<16x128xf32> -> vector<16x128xf32>
    %c0_59 = arith.constant 0 : index
    %c0_60 = arith.constant 0 : index
    %123 = vector.load %arg18[%c0_59, %c0_60] : memref<1x128xf32, #tpu.memory_space<vmem>>, vector<1x128xf32>
    %124 = vector.broadcast %123 : vector<1x128xf32> to vector<16x128xf32>
    %125 = arith.addf %122, %124 : vector<16x128xf32>
    %cst_61 = arith.constant 0.000000e+00 : f32
    %126 = vector.broadcast %cst_61 : f32 to vector<16x128xf32>
    %127 = arith.maximumf %125, %126 : vector<16x128xf32>
    %128 = vector.shape_cast %127 : vector<16x128xf32> to vector<2x8x128xf32>
    %c0_62 = arith.constant 0 : index
    %c0_63 = arith.constant 0 : index
    %129 = vector.load %arg19[%c0_62, %c0_63] : memref<1x128xf32, #tpu.memory_space<vmem>>, vector<1x128xf32>
    %130 = vector.shape_cast %129 : vector<1x128xf32> to vector<1x1x128xf32>
    %131 = vector.broadcast %130 : vector<1x1x128xf32> to vector<2x8x128xf32>
    %132 = arith.mulf %128, %131 : vector<2x8x128xf32>
    %133 = vector.extract_strided_slice %132 {offsets = [0, 0, 0], sizes = [2, 8, 64], strides = [1, 1, 1]} : vector<2x8x128xf32> to vector<2x8x64xf32>
    %cst_64 = arith.constant dense<0.000000e+00> : vector<2x8xf32>
    %134 = vector.multi_reduction <add>, %133, %cst_64 [2] : vector<2x8x64xf32> to vector<2x8xf32>
    %c0_65 = arith.constant 0 : index
    %c0_66 = arith.constant 0 : index
    %135 = vector.load %arg20[%c0_65, %c0_66] : memref<1x2xf32, #tpu.memory_space<vmem>>, vector<1x1xf32>
    %136 = vector.extract %135[0, 0] : f32 from vector<1x1xf32>
    %137 = vector.broadcast %136 : f32 to vector<2x8xf32>
    %138 = arith.addf %134, %137 : vector<2x8xf32>
    %139 = vector.extract_strided_slice %132 {offsets = [0, 0, 64], sizes = [2, 8, 64], strides = [1, 1, 1]} : vector<2x8x128xf32> to vector<2x8x64xf32>
    %cst_67 = arith.constant dense<0.000000e+00> : vector<2x8xf32>
    %140 = vector.multi_reduction <add>, %139, %cst_67 [2] : vector<2x8x64xf32> to vector<2x8xf32>
    %c0_68 = arith.constant 0 : index
    %c1 = arith.constant 1 : index
    %141 = vector.load %arg20[%c0_68, %c1] : memref<1x2xf32, #tpu.memory_space<vmem>>, vector<1x1xf32>
    %142 = vector.extract %141[0, 0] : f32 from vector<1x1xf32>
    %143 = vector.broadcast %142 : f32 to vector<2x8xf32>
    %144 = arith.addf %140, %143 : vector<2x8xf32>
    %145 = vector.shape_cast %8 : vector<2x8xf32> to vector<2x8x1xf32>
    %146 = vector.broadcast %145 : vector<2x8x1xf32> to vector<2x8x128xf32>
    %147 = arith.mulf %119, %146 : vector<2x8x128xf32>
    %cst_69 = arith.constant dense<0.000000e+00> : vector<2x128xf32>
    %148 = vector.multi_reduction <add>, %147, %cst_69 [1] : vector<2x8x128xf32> to vector<2x128xf32>
    %149 = arith.truncf %148 : vector<2x128xf32> to vector<2x128xbf16>
    %c0_70 = arith.constant 0 : index
    %c0_71 = arith.constant 0 : index
    %150 = vector.load %arg21[%c0_70, %c0_71] : memref<128x128xbf16, #tpu.memory_space<vmem>>, vector<128x128xbf16>
    %cst_72 = arith.constant dense<0.000000e+00> : vector<2x128xf32>
    %151 = tpu.matmul %149, %150, %cst_72 {dimension_numbers = #tpu.dot_dimension_numbers<[1], [0], [0], [1], [0, 0, 1, 1], [], []>} : vector<2x128xbf16>, vector<128x128xbf16>, vector<2x128xf32> -> vector<2x128xf32>
    %c0_73 = arith.constant 0 : index
    %c0_74 = arith.constant 0 : index
    %152 = vector.load %arg22[%c0_73, %c0_74] : memref<1x128xf32, #tpu.memory_space<vmem>>, vector<1x128xf32>
    %153 = vector.broadcast %152 : vector<1x128xf32> to vector<2x128xf32>
    %154 = arith.addf %151, %153 : vector<2x128xf32>
    %155 = vector.shape_cast %154 : vector<2x128xf32> to vector<2x1x128xf32>
    %156 = vector.broadcast %155 : vector<2x1x128xf32> to vector<2x8x128xf32>
    %157 = arith.mulf %119, %156 : vector<2x8x128xf32>
    %cst_75 = arith.constant dense<0.000000e+00> : vector<2x8xf32>
    %158 = vector.multi_reduction <add>, %157, %cst_75 [2] : vector<2x8x128xf32> to vector<2x8xf32>
    %c0_76 = arith.constant 0 : index
    %c0_77 = arith.constant 0 : index
    %159 = vector.load %arg23[%c0_76, %c0_77] : memref<1x128xf32, #tpu.memory_space<vmem>>, vector<1x128xf32>
    %160 = vector.broadcast %159 : vector<1x128xf32> to vector<2x128xf32>
    %161 = arith.mulf %148, %160 : vector<2x128xf32>
    %cst_78 = arith.constant dense<0.000000e+00> : vector<2xf32>
    %162 = vector.multi_reduction <add>, %161, %cst_78 [1] : vector<2x128xf32> to vector<2xf32>
    %163 = vector.shape_cast %162 : vector<2xf32> to vector<2x1xf32>
    %164 = vector.broadcast %163 : vector<2x1xf32> to vector<2x8xf32>
    %165 = arith.addf %158, %164 : vector<2x8xf32>
    %c0_79 = arith.constant 0 : index
    %c0_80 = arith.constant 0 : index
    %166 = vector.load %arg24[%c0_79, %c0_80] : memref<1x1xf32, #tpu.memory_space<vmem>>, vector<1x1xf32>
    %167 = vector.broadcast %166 : vector<1x1xf32> to vector<2x8xf32>
    %168 = arith.addf %165, %167 : vector<2x8xf32>
    %cst_81 = arith.constant 5.000000e-01 : f32
    %169 = vector.broadcast %cst_81 : f32 to vector<2x8xf32>
    %170 = arith.cmpf ogt, %4, %169 : vector<2x8xf32>
    %cst_82 = arith.constant -1.000000e+09 : f32
    %171 = vector.broadcast %cst_82 : f32 to vector<2x8xf32>
    %172 = arith.select %170, %138, %171 : vector<2x8xi1>, vector<2x8xf32>
    %cst_83 = arith.constant dense<0xFF800000> : vector<2xf32>
    %173 = vector.multi_reduction <maximumf>, %172, %cst_83 [1] : vector<2x8xf32> to vector<2xf32>
    %174 = vector.shape_cast %173 : vector<2xf32> to vector<2x1xf32>
    %175 = vector.broadcast %174 : vector<2x1xf32> to vector<2x8xf32>
    %176 = arith.subf %172, %175 : vector<2x8xf32>
    %177 = math.exp %176 : vector<2x8xf32>
    %cst_84 = arith.constant dense<0.000000e+00> : vector<2xf32>
    %178 = vector.multi_reduction <add>, %177, %cst_84 [1] : vector<2x8xf32> to vector<2xf32>
    %179 = vector.shape_cast %178 : vector<2xf32> to vector<2x1xf32>
    %180 = math.log %179 : vector<2x1xf32>
    %181 = arith.addf %180, %174 : vector<2x1xf32>
    %182 = vector.broadcast %181 : vector<2x1xf32> to vector<2x8xf32>
    %183 = arith.subf %172, %182 : vector<2x8xf32>
    %cst_85 = arith.constant 5.000000e-01 : f32
    %184 = vector.broadcast %cst_85 : f32 to vector<2x8xf32>
    %185 = arith.cmpf ogt, %10, %184 : vector<2x8xf32>
    %cst_86 = arith.constant -1.000000e+09 : f32
    %186 = vector.broadcast %cst_86 : f32 to vector<2x8xf32>
    %187 = arith.select %185, %168, %186 : vector<2x8xi1>, vector<2x8xf32>
    %cst_87 = arith.constant dense<0xFF800000> : vector<2xf32>
    %188 = vector.multi_reduction <maximumf>, %187, %cst_87 [1] : vector<2x8xf32> to vector<2xf32>
    %189 = vector.shape_cast %188 : vector<2xf32> to vector<2x1xf32>
    %190 = vector.broadcast %189 : vector<2x1xf32> to vector<2x8xf32>
    %191 = arith.subf %187, %190 : vector<2x8xf32>
    %192 = math.exp %191 : vector<2x8xf32>
    %cst_88 = arith.constant dense<0.000000e+00> : vector<2xf32>
    %193 = vector.multi_reduction <add>, %192, %cst_88 [1] : vector<2x8xf32> to vector<2xf32>
    %194 = vector.shape_cast %193 : vector<2xf32> to vector<2x1xf32>
    %195 = math.log %194 : vector<2x1xf32>
    %196 = arith.addf %195, %189 : vector<2x1xf32>
    %197 = vector.broadcast %196 : vector<2x1xf32> to vector<2x8xf32>
    %198 = arith.subf %187, %197 : vector<2x8xf32>
    %cst_89 = arith.constant 5.000000e-01 : f32
    %199 = vector.broadcast %cst_89 : f32 to vector<2x8xf32>
    %200 = arith.cmpf ogt, %6, %199 : vector<2x8xf32>
    %cst_90 = arith.constant -1.000000e+09 : f32
    %201 = vector.broadcast %cst_90 : f32 to vector<2x8xf32>
    %202 = arith.select %200, %144, %201 : vector<2x8xi1>, vector<2x8xf32>
    %203 = vector.shape_cast %183 : vector<2x8xf32> to vector<1x2x8xf32>
    %204 = vector.shape_cast %198 : vector<2x8xf32> to vector<1x2x8xf32>
    %205 = vector.shape_cast %202 : vector<2x8xf32> to vector<1x2x8xf32>
    %206 = tpu.concatenate %203, %204, %205 in 0 : vector<1x2x8xf32>, vector<1x2x8xf32>, vector<1x2x8xf32> -> vector<3x2x8xf32>
    %c0_91 = arith.constant 0 : index
    %c0_92 = arith.constant 0 : index
    %c0_93 = arith.constant 0 : index
    %207 = vector.load %arg25[%c0_91, %c0_92, %c0_93] : memref<3x2x8xf32, #tpu.memory_space<vmem>>, vector<3x2x8xf32>
    tpu.vector_store %arg25[%c0_91, %c0_92, %c0_93], %206 {strides = array<i32>} : memref<3x2x8xf32, #tpu.memory_space<vmem>>, vector<3x2x8xf32>,
    return
  }
  func.func @transform_0(%arg0: i32) -> (i32, i32, i32) {
    %c0_i32 = arith.constant 0 : i32
    %c0_i32_0 = arith.constant 0 : i32
    %c0_i32_1 = arith.constant 0 : i32
    return %arg0, %c0_i32, %c0_i32_0 : i32, i32, i32
  }
  func.func @transform_1(%arg0: i32) -> (i32, i32, i32) {
    %c0_i32 = arith.constant 0 : i32
    %c0_i32_0 = arith.constant 0 : i32
    %c0_i32_1 = arith.constant 0 : i32
    return %arg0, %c0_i32, %c0_i32_0 : i32, i32, i32
  }
  func.func @transform_2(%arg0: i32) -> (i32, i32, i32) {
    %c0_i32 = arith.constant 0 : i32
    %c0_i32_0 = arith.constant 0 : i32
    %c0_i32_1 = arith.constant 0 : i32
    return %arg0, %c0_i32, %c0_i32_0 : i32, i32, i32
  }
  func.func @transform_3(%arg0: i32) -> (i32, i32) {
    %c0_i32 = arith.constant 0 : i32
    %c0_i32_0 = arith.constant 0 : i32
    %c0_i32_1 = arith.constant 0 : i32
    return %c0_i32, %c0_i32_0 : i32, i32
  }
  func.func @transform_4(%arg0: i32) -> (i32, i32) {
    %c0_i32 = arith.constant 0 : i32
    %c0_i32_0 = arith.constant 0 : i32
    %c0_i32_1 = arith.constant 0 : i32
    return %c0_i32, %c0_i32_0 : i32, i32
  }
  func.func @transform_5(%arg0: i32) -> (i32, i32) {
    %c0_i32 = arith.constant 0 : i32
    %c0_i32_0 = arith.constant 0 : i32
    %c0_i32_1 = arith.constant 0 : i32
    return %c0_i32, %c0_i32_0 : i32, i32
  }
  func.func @transform_6(%arg0: i32) -> (i32, i32) {
    %c0_i32 = arith.constant 0 : i32
    %c0_i32_0 = arith.constant 0 : i32
    %c0_i32_1 = arith.constant 0 : i32
    return %c0_i32, %c0_i32_0 : i32, i32
  }
  func.func @transform_7(%arg0: i32) -> (i32, i32) {
    %c0_i32 = arith.constant 0 : i32
    %c0_i32_0 = arith.constant 0 : i32
    %c0_i32_1 = arith.constant 0 : i32
    return %c0_i32, %c0_i32_0 : i32, i32
  }
  func.func @transform_8(%arg0: i32) -> (i32, i32) {
    %c0_i32 = arith.constant 0 : i32
    %c0_i32_0 = arith.constant 0 : i32
    %c0_i32_1 = arith.constant 0 : i32
    return %c0_i32, %c0_i32_0 : i32, i32
  }
  func.func @transform_9(%arg0: i32) -> (i32, i32) {
    %c0_i32 = arith.constant 0 : i32
    %c0_i32_0 = arith.constant 0 : i32
    %c0_i32_1 = arith.constant 0 : i32
    return %c0_i32, %c0_i32_0 : i32, i32
  }
  func.func @transform_10(%arg0: i32) -> (i32, i32) {
    %c0_i32 = arith.constant 0 : i32
    %c0_i32_0 = arith.constant 0 : i32
    %c0_i32_1 = arith.constant 0 : i32
    return %c0_i32, %c0_i32_0 : i32, i32
  }
  func.func @transform_11(%arg0: i32) -> (i32, i32) {
    %c0_i32 = arith.constant 0 : i32
    %c0_i32_0 = arith.constant 0 : i32
    %c0_i32_1 = arith.constant 0 : i32
    return %c0_i32, %c0_i32_0 : i32, i32
  }
  func.func @transform_12(%arg0: i32) -> (i32, i32) {
    %c0_i32 = arith.constant 0 : i32
    %c0_i32_0 = arith.constant 0 : i32
    %c0_i32_1 = arith.constant 0 : i32
    return %c0_i32, %c0_i32_0 : i32, i32
  }
  func.func @transform_13(%arg0: i32) -> (i32, i32) {
    %c0_i32 = arith.constant 0 : i32
    %c0_i32_0 = arith.constant 0 : i32
    %c0_i32_1 = arith.constant 0 : i32
    return %c0_i32, %c0_i32_0 : i32, i32
  }
  func.func @transform_14(%arg0: i32) -> (i32, i32) {
    %c0_i32 = arith.constant 0 : i32
    %c0_i32_0 = arith.constant 0 : i32
    %c0_i32_1 = arith.constant 0 : i32
    return %c0_i32, %c0_i32_0 : i32, i32
  }
  func.func @transform_15(%arg0: i32) -> (i32, i32) {
    %c0_i32 = arith.constant 0 : i32
    %c0_i32_0 = arith.constant 0 : i32
    %c0_i32_1 = arith.constant 0 : i32
    return %c0_i32, %c0_i32_0 : i32, i32
  }
  func.func @transform_16(%arg0: i32) -> (i32, i32) {
    %c0_i32 = arith.constant 0 : i32
    %c0_i32_0 = arith.constant 0 : i32
    %c0_i32_1 = arith.constant 0 : i32
    return %c0_i32, %c0_i32_0 : i32, i32
  }
  func.func @transform_17(%arg0: i32) -> (i32, i32) {
    %c0_i32 = arith.constant 0 : i32
    %c0_i32_0 = arith.constant 0 : i32
    %c0_i32_1 = arith.constant 0 : i32
    return %c0_i32, %c0_i32_0 : i32, i32
  }
  func.func @transform_18(%arg0: i32) -> (i32, i32) {
    %c0_i32 = arith.constant 0 : i32
    %c0_i32_0 = arith.constant 0 : i32
    %c0_i32_1 = arith.constant 0 : i32
    return %c0_i32, %c0_i32_0 : i32, i32
  }
  func.func @transform_19(%arg0: i32) -> (i32, i32) {
    %c0_i32 = arith.constant 0 : i32
    %c0_i32_0 = arith.constant 0 : i32
    %c0_i32_1 = arith.constant 0 : i32
    return %c0_i32, %c0_i32_0 : i32, i32
  }
  func.func @transform_20(%arg0: i32) -> (i32, i32) {
    %c0_i32 = arith.constant 0 : i32
    %c0_i32_0 = arith.constant 0 : i32
    %c0_i32_1 = arith.constant 0 : i32
    return %c0_i32, %c0_i32_0 : i32, i32
  }
  func.func @transform_21(%arg0: i32) -> (i32, i32) {
    %c0_i32 = arith.constant 0 : i32
    %c0_i32_0 = arith.constant 0 : i32
    %c0_i32_1 = arith.constant 0 : i32
    return %c0_i32, %c0_i32_0 : i32, i32
  }
  func.func @transform_22(%arg0: i32) -> (i32, i32) {
    %c0_i32 = arith.constant 0 : i32
    %c0_i32_0 = arith.constant 0 : i32
    %c0_i32_1 = arith.constant 0 : i32
    return %c0_i32, %c0_i32_0 : i32, i32
  }
  func.func @transform_23(%arg0: i32) -> (i32, i32) {
    %c0_i32 = arith.constant 0 : i32
    %c0_i32_0 = arith.constant 0 : i32
    %c0_i32_1 = arith.constant 0 : i32
    return %c0_i32, %c0_i32_0 : i32, i32
  }
  func.func @transform_24(%arg0: i32) -> (i32, i32, i32) {
    %c0_i32 = arith.constant 0 : i32
    %c0_i32_0 = arith.constant 0 : i32
    %c0_i32_1 = arith.constant 0 : i32
    return %c0_i32, %arg0, %c0_i32_0 : i32, i32, i32
  }
}

module attributes {stable_mosaic.version = 11 : i64} {
  func.func @dpgfn_kernel(%arg0: i32, %arg1: memref<2x8x128xf32, #tpu.memory_space<vmem>>, %arg2: memref<2x8x8xbf16, #tpu.memory_space<vmem>>, %arg3: memref<2x5x8xf32, #tpu.memory_space<vmem>>, %arg4: memref<128x128xbf16, #tpu.memory_space<vmem>>, %arg5: memref<128x128xbf16, #tpu.memory_space<vmem>>, %arg6: memref<128x128xbf16, #tpu.memory_space<vmem>>, %arg7: memref<128x128xbf16, #tpu.memory_space<vmem>>, %arg8: memref<1x1xf32, #tpu.memory_space<vmem>>, %arg9: memref<1x128xf32, #tpu.memory_space<vmem>>, %arg10: memref<1x128xf32, #tpu.memory_space<vmem>>, %arg11: memref<1x128xf32, #tpu.memory_space<vmem>>, %arg12: memref<1x128xf32, #tpu.memory_space<vmem>>, %arg13: memref<128x128xbf16, #tpu.memory_space<vmem>>, %arg14: memref<1x128xf32, #tpu.memory_space<vmem>>, %arg15: memref<128x128xbf16, #tpu.memory_space<vmem>>, %arg16: memref<1x128xf32, #tpu.memory_space<vmem>>, %arg17: memref<128x128xbf16, #tpu.memory_space<vmem>>, %arg18: memref<1x128xf32, #tpu.memory_space<vmem>>, %arg19: memref<1x128xf32, #tpu.memory_space<vmem>>, %arg20: memref<1x2xf32, #tpu.memory_space<vmem>>, %arg21: memref<128x128xbf16, #tpu.memory_space<vmem>>, %arg22: memref<1x128xf32, #tpu.memory_space<vmem>>, %arg23: memref<1x128xf32, #tpu.memory_space<vmem>>, %arg24: memref<1x1xf32, #tpu.memory_space<vmem>>, %arg25: memref<3x2x8xf32, #tpu.memory_space<vmem>>) attributes {dimension_semantics = [#tpu.dimension_semantics<parallel>], iteration_bounds = array<i64: 1>, scalar_prefetch = 0 : i64, scratch_operands = 0 : i64, tpu.core_type = #tpu.core_type<tc>, window_params = [{transform_indices = @transform_0, window_bounds = array<i64: 2, 8, 128>}, {transform_indices = @transform_1, window_bounds = array<i64: 2, 8, 8>}, {transform_indices = @transform_2, window_bounds = array<i64: 2, 5, 8>}, {pipeline_mode = #tpu.pipeline_mode<synchronous>, transform_indices = @transform_3, window_bounds = array<i64: 128, 128>}, {pipeline_mode = #tpu.pipeline_mode<synchronous>, transform_indices = @transform_4, window_bounds = array<i64: 128, 128>}, {pipeline_mode = #tpu.pipeline_mode<synchronous>, transform_indices = @transform_5, window_bounds = array<i64: 128, 128>}, {pipeline_mode = #tpu.pipeline_mode<synchronous>, transform_indices = @transform_6, window_bounds = array<i64: 128, 128>}, {pipeline_mode = #tpu.pipeline_mode<synchronous>, transform_indices = @transform_7, window_bounds = array<i64: 1, 1>}, {pipeline_mode = #tpu.pipeline_mode<synchronous>, transform_indices = @transform_8, window_bounds = array<i64: 1, 128>}, {pipeline_mode = #tpu.pipeline_mode<synchronous>, transform_indices = @transform_9, window_bounds = array<i64: 1, 128>}, {pipeline_mode = #tpu.pipeline_mode<synchronous>, transform_indices = @transform_10, window_bounds = array<i64: 1, 128>}, {pipeline_mode = #tpu.pipeline_mode<synchronous>, transform_indices = @transform_11, window_bounds = array<i64: 1, 128>}, {pipeline_mode = #tpu.pipeline_mode<synchronous>, transform_indices = @transform_12, window_bounds = array<i64: 128, 128>}, {pipeline_mode = #tpu.pipeline_mode<synchronous>, transform_indices = @transform_13, window_bounds = array<i64: 1, 128>}, {pipeline_mode = #tpu.pipeline_mode<synchronous>, transform_indices = @transform_14, window_bounds = array<i64: 128, 128>}, {pipeline_mode = #tpu.pipeline_mode<synchronous>, transform_indices = @transform_15, window_bounds = array<i64: 1, 128>}, {pipeline_mode = #tpu.pipeline_mode<synchronous>, transform_indices = @transform_16, window_bounds = array<i64: 128, 128>}, {pipeline_mode = #tpu.pipeline_mode<synchronous>, transform_indices = @transform_17, window_bounds = array<i64: 1, 128>}, {pipeline_mode = #tpu.pipeline_mode<synchronous>, transform_indices = @transform_18, window_bounds = array<i64: 1, 128>}, {pipeline_mode = #tpu.pipeline_mode<synchronous>, transform_indices = @transform_19, window_bounds = array<i64: 1, 2>}, {pipeline_mode = #tpu.pipeline_mode<synchronous>, transform_indices = @transform_20, window_bounds = array<i64: 128, 128>}, {pipeline_mode = #tpu.pipeline_mode<synchronous>, transform_indices = @transform_21, window_bounds = array<i64: 1, 128>}, {pipeline_mode = #tpu.pipeline_mode<synchronous>, transform_indices = @transform_22, window_bounds = array<i64: 1, 128>}, {pipeline_mode = #tpu.pipeline_mode<synchronous>, transform_indices = @transform_23, window_bounds = array<i64: 1, 1>}, {transform_indices = @transform_24, window_bounds = array<i64: 3, 2, 8>}]} {
    %c0 = arith.constant 0 : index
    %c0_0 = arith.constant 0 : index
    %c0_1 = arith.constant 0 : index
    %0 = vector.load %arg1[%c0, %c0_0, %c0_1] : memref<2x8x128xf32, #tpu.memory_space<vmem>>, vector<2x8x128xf32>
    %c0_2 = arith.constant 0 : index
    %c0_3 = arith.constant 0 : index
    %c0_4 = arith.constant 0 : index
    %1 = vector.load %arg3[%c0_2, %c0_3, %c0_4] : memref<2x5x8xf32, #tpu.memory_space<vmem>>, vector<2x5x8xf32>
    %2 = vector.extract_strided_slice %1 {offsets = [0, 0, 0], sizes = [2, 1, 8], strides = [1, 1, 1]} : vector<2x5x8xf32> to vector<2x1x8xf32>
    %3 = vector.extract_strided_slice %1 {offsets = [0, 1, 0], sizes = [2, 1, 8], strides = [1, 1, 1]} : vector<2x5x8xf32> to vector<2x1x8xf32>
    %4 = vector.shape_cast %3 : vector<2x1x8xf32> to vector<2x8xf32>
    %5 = vector.extract_strided_slice %1 {offsets = [0, 2, 0], sizes = [2, 1, 8], strides = [1, 1, 1]} : vector<2x5x8xf32> to vector<2x1x8xf32>
    %6 = vector.shape_cast %5 : vector<2x1x8xf32> to vector<2x8xf32>
    %7 = vector.extract_strided_slice %1 {offsets = [0, 3, 0], sizes = [2, 1, 8], strides = [1, 1, 1]} : vector<2x5x8xf32> to vector<2x1x8xf32>
    %8 = vector.shape_cast %7 : vector<2x1x8xf32> to vector<2x8xf32>
    %9 = vector.extract_strided_slice %1 {offsets = [0, 4, 0], sizes = [2, 1, 8], strides = [1, 1, 1]} : vector<2x5x8xf32> to vector<2x1x8xf32>
    %10 = vector.shape_cast %9 : vector<2x1x8xf32> to vector<2x8xf32>
    %11 = vector.shape_cast %0 : vector<2x8x128xf32> to vector<16x128xf32>
    %12 = arith.truncf %11 : vector<16x128xf32> to vector<16x128xbf16>
    %c0_5 = arith.constant 0 : index
    %c0_6 = arith.constant 0 : index
    %13 = vector.load %arg4[%c0_5, %c0_6] : memref<128x128xbf16, #tpu.memory_space<vmem>>, vector<128x128xbf16>
    %cst = arith.constant dense<0.000000e+00> : vector<16x128xf32>
    %14 = tpu.matmul %12, %13, %cst {dimension_numbers = #tpu.dot_dimension_numbers<[1], [0], [0], [1], [0, 0, 1, 1], [], []>} : vector<16x128xbf16>, vector<128x128xbf16>, vector<16x128xf32> -> vector<16x128xf32>
    %15 = vector.shape_cast %14 : vector<16x128xf32> to vector<2x8x128xf32>
    %c0_7 = arith.constant 0 : index
    %c0_8 = arith.constant 0 : index
    %16 = vector.load %arg5[%c0_7, %c0_8] : memref<128x128xbf16, #tpu.memory_space<vmem>>, vector<128x128xbf16>
    %cst_9 = arith.constant dense<0.000000e+00> : vector<16x128xf32>
    %17 = tpu.matmul %12, %16, %cst_9 {dimension_numbers = #tpu.dot_dimension_numbers<[1], [0], [0], [1], [0, 0, 1, 1], [], []>} : vector<16x128xbf16>, vector<128x128xbf16>, vector<16x128xf32> -> vector<16x128xf32>
    %18 = vector.shape_cast %17 : vector<16x128xf32> to vector<2x8x128xf32>
    %c0_10 = arith.constant 0 : index
    %c0_11 = arith.constant 0 : index
    %19 = vector.load %arg6[%c0_10, %c0_11] : memref<128x128xbf16, #tpu.memory_space<vmem>>, vector<128x128xbf16>
    %cst_12 = arith.constant dense<0.000000e+00> : vector<16x128xf32>
    %20 = tpu.matmul %12, %19, %cst_12 {dimension_numbers = #tpu.dot_dimension_numbers<[1], [0], [0], [1], [0, 0, 1, 1], [], []>} : vector<16x128xbf16>, vector<128x128xbf16>, vector<16x128xf32> -> vector<16x128xf32>
    %21 = vector.shape_cast %20 : vector<16x128xf32> to vector<2x8x128xf32>
    %22 = arith.truncf %15 : vector<2x8x128xf32> to vector<2x8x128xbf16>
    %23 = arith.truncf %18 : vector<2x8x128xf32> to vector<2x8x128xbf16>
    "tpu.trace_start"() <{level = 10 : i32, message = "bnd,bmd->bnm"}> : () -> ()
    %cst_13 = arith.constant dense<0.000000e+00> : vector<2x8x8xf32>
    %24 = tpu.matmul %22, %23, %cst_13 {dimension_numbers = #tpu.dot_dimension_numbers<[2], [2], [1], [1], [0, 0, 0, 1, 1, 1], [0], [0]>} : vector<2x8x128xbf16>, vector<2x8x128xbf16>, vector<2x8x8xf32> -> vector<2x8x8xf32>
    "tpu.trace_stop"() : () -> ()
    %c0_14 = arith.constant 0 : index
    %c0_15 = arith.constant 0 : index
    %25 = vector.load %arg8[%c0_14, %c0_15] : memref<1x1xf32, #tpu.memory_space<vmem>>, vector<1x1xf32>
    %26 = vector.extract %25[0, 0] : f32 from vector<1x1xf32>
    %c0_16 = arith.constant 0 : index
    %c0_17 = arith.constant 0 : index
    %c0_18 = arith.constant 0 : index
    %27 = vector.load %arg2[%c0_16, %c0_17, %c0_18] : memref<2x8x8xbf16, #tpu.memory_space<vmem>>, vector<2x8x8xbf16>
    %28 = arith.extf %27 : vector<2x8x8xbf16> to vector<2x8x8xf32>
    %29 = vector.broadcast %26 : f32 to vector<2x8x8xf32>
    %30 = arith.mulf %29, %28 : vector<2x8x8xf32>
    %31 = arith.addf %24, %30 : vector<2x8x8xf32>
    %32 = vector.broadcast %2 : vector<2x1x8xf32> to vector<2x8x8xf32>
    %33 = arith.addf %31, %32 : vector<2x8x8xf32>
    %cst_19 = arith.constant dense<0xFF800000> : vector<2x8xf32>
    %34 = vector.multi_reduction <maximumf>, %33, %cst_19 [2] : vector<2x8x8xf32> to vector<2x8xf32>
    %35 = vector.shape_cast %34 : vector<2x8xf32> to vector<2x8x1xf32>
    %36 = vector.broadcast %35 : vector<2x8x1xf32> to vector<2x8x8xf32>
    %37 = arith.subf %33, %36 : vector<2x8x8xf32>
    %38 = math.exp %37 : vector<2x8x8xf32>
    %cst_20 = arith.constant dense<0.000000e+00> : vector<2x8xf32>
    %39 = vector.multi_reduction <add>, %38, %cst_20 [2] : vector<2x8x8xf32> to vector<2x8xf32>
    %40 = vector.shape_cast %39 : vector<2x8xf32> to vector<2x8x1xf32>
    %41 = tpu.reciprocal %40 {approx = true} : vector<2x8x1xf32> -> vector<2x8x1xf32>
    %42 = arith.truncf %38 : vector<2x8x8xf32> to vector<2x8x8xbf16>
    %43 = arith.truncf %21 : vector<2x8x128xf32> to vector<2x8x128xbf16>
    "tpu.trace_start"() <{level = 10 : i32, message = "bnm,bmd->bnd"}> : () -> ()
    %cst_21 = arith.constant dense<0.000000e+00> : vector<2x8x128xf32>
    %44 = tpu.matmul %42, %43, %cst_21 {dimension_numbers = #tpu.dot_dimension_numbers<[2], [1], [1], [2], [0, 0, 0, 1, 1, 2], [0], [0]>} : vector<2x8x8xbf16>, vector<2x8x128xbf16>, vector<2x8x128xf32> -> vector<2x8x128xf32>
    "tpu.trace_stop"() : () -> ()
    %45 = vector.broadcast %41 : vector<2x8x1xf32> to vector<2x8x128xf32>
    %46 = arith.mulf %44, %45 : vector<2x8x128xf32>
    %47 = vector.shape_cast %46 : vector<2x8x128xf32> to vector<16x128xf32>
    %48 = arith.truncf %47 : vector<16x128xf32> to vector<16x128xbf16>
    %c0_22 = arith.constant 0 : index
    %c0_23 = arith.constant 0 : index
    %49 = vector.load %arg7[%c0_22, %c0_23] : memref<128x128xbf16, #tpu.memory_space<vmem>>, vector<128x128xbf16>
    %cst_24 = arith.constant dense<0.000000e+00> : vector<16x128xf32>
    %50 = tpu.matmul %48, %49, %cst_24 {dimension_numbers = #tpu.dot_dimension_numbers<[1], [0], [0], [1], [0, 0, 1, 1], [], []>} : vector<16x128xbf16>, vector<128x128xbf16>, vector<16x128xf32> -> vector<16x128xf32>
    %51 = arith.addf %11, %50 : vector<16x128xf32>
    %c0_25 = arith.constant 0 : index
    %c0_26 = arith.constant 0 : index
    %52 = vector.load %arg9[%c0_25, %c0_26] : memref<1x128xf32, #tpu.memory_space<vmem>>, vector<1x128xf32>
    %c0_27 = arith.constant 0 : index
    %c0_28 = arith.constant 0 : index
    %53 = vector.load %arg10[%c0_27, %c0_28] : memref<1x128xf32, #tpu.memory_space<vmem>>, vector<1x128xf32>
    %cst_29 = arith.constant dense<0.000000e+00> : vector<16xf32>
    %54 = vector.multi_reduction <add>, %51, %cst_29 [1] : vector<16x128xf32> to vector<16xf32>
    %55 = vector.shape_cast %54 : vector<16xf32> to vector<16x1xf32>
    %cst_30 = arith.constant 3.125000e-02 : f32
    %56 = vector.broadcast %cst_30 : f32 to vector<16x1xf32>
    %57 = arith.mulf %55, %56 : vector<16x1xf32>
    %58 = vector.broadcast %57 : vector<16x1xf32> to vector<16x128xf32>
    %59 = arith.subf %51, %58 : vector<16x128xf32>
    %60 = arith.mulf %59, %59 : vector<16x128xf32>
    %cst_31 = arith.constant dense<0.000000e+00> : vector<16xf32>
    %61 = vector.multi_reduction <add>, %60, %cst_31 [1] : vector<16x128xf32> to vector<16xf32>
    %62 = vector.shape_cast %61 : vector<16xf32> to vector<16x1xf32>
    %cst_32 = arith.constant 9.600000e+01 : f32
    %63 = vector.broadcast %cst_32 : f32 to vector<16x1xf32>
    %64 = arith.mulf %63, %57 : vector<16x1xf32>
    %65 = arith.mulf %64, %57 : vector<16x1xf32>
    %66 = arith.subf %62, %65 : vector<16x1xf32>
    %cst_33 = arith.constant 3.125000e-02 : f32
    %67 = vector.broadcast %cst_33 : f32 to vector<16x1xf32>
    %68 = arith.mulf %66, %67 : vector<16x1xf32>
    %cst_34 = arith.constant 9.99999974E-6 : f32
    %69 = vector.broadcast %cst_34 : f32 to vector<16x1xf32>
    %70 = arith.addf %68, %69 : vector<16x1xf32>
    %71 = math.rsqrt %70 : vector<16x1xf32>
    %72 = vector.broadcast %71 : vector<16x1xf32> to vector<16x128xf32>
    %73 = arith.mulf %59, %72 : vector<16x128xf32>
    %74 = vector.broadcast %52 : vector<1x128xf32> to vector<16x128xf32>
    %75 = arith.mulf %73, %74 : vector<16x128xf32>
    %76 = vector.broadcast %53 : vector<1x128xf32> to vector<16x128xf32>
    %77 = arith.addf %75, %76 : vector<16x128xf32>
    %78 = arith.truncf %77 : vector<16x128xf32> to vector<16x128xbf16>
    %c0_35 = arith.constant 0 : index
    %c0_36 = arith.constant 0 : index
    %79 = vector.load %arg13[%c0_35, %c0_36] : memref<128x128xbf16, #tpu.memory_space<vmem>>, vector<128x128xbf16>
    %cst_37 = arith.constant dense<0.000000e+00> : vector<16x128xf32>
    %80 = tpu.matmul %78, %79, %cst_37 {dimension_numbers = #tpu.dot_dimension_numbers<[1], [0], [0], [1], [0, 0, 1, 1], [], []>} : vector<16x128xbf16>, vector<128x128xbf16>, vector<16x128xf32> -> vector<16x128xf32>
    %c0_38 = arith.constant 0 : index
    %c0_39 = arith.constant 0 : index
    %81 = vector.load %arg14[%c0_38, %c0_39] : memref<1x128xf32, #tpu.memory_space<vmem>>, vector<1x128xf32>
    %82 = vector.broadcast %81 : vector<1x128xf32> to vector<16x128xf32>
    %83 = arith.addf %80, %82 : vector<16x128xf32>
    %cst_40 = arith.constant 0.000000e+00 : f32
    %84 = vector.broadcast %cst_40 : f32 to vector<16x128xf32>
    %85 = arith.maximumf %83, %84 : vector<16x128xf32>
    %86 = arith.truncf %85 : vector<16x128xf32> to vector<16x128xbf16>
    %c0_41 = arith.constant 0 : index
    %c0_42 = arith.constant 0 : index
    %87 = vector.load %arg15[%c0_41, %c0_42] : memref<128x128xbf16, #tpu.memory_space<vmem>>, vector<128x128xbf16>
    %cst_43 = arith.constant dense<0.000000e+00> : vector<16x128xf32>
    %88 = tpu.matmul %86, %87, %cst_43 {dimension_numbers = #tpu.dot_dimension_numbers<[1], [0], [0], [1], [0, 0, 1, 1], [], []>} : vector<16x128xbf16>, vector<128x128xbf16>, vector<16x128xf32> -> vector<16x128xf32>
    %c0_44 = arith.constant 0 : index
    %c0_45 = arith.constant 0 : index
    %89 = vector.load %arg16[%c0_44, %c0_45] : memref<1x128xf32, #tpu.memory_space<vmem>>, vector<1x128xf32>
    %90 = vector.broadcast %89 : vector<1x128xf32> to vector<16x128xf32>
    %91 = arith.addf %88, %90 : vector<16x128xf32>
    %92 = arith.addf %77, %91 : vector<16x128xf32>
    %c0_46 = arith.constant 0 : index
    %c0_47 = arith.constant 0 : index
    %93 = vector.load %arg11[%c0_46, %c0_47] : memref<1x128xf32, #tpu.memory_space<vmem>>, vector<1x128xf32>
    %c0_48 = arith.constant 0 : index
    %c0_49 = arith.constant 0 : index
    %94 = vector.load %arg12[%c0_48, %c0_49] : memref<1x128xf32, #tpu.memory_space<vmem>>, vector<1x128xf32>
    %cst_50 = arith.constant dense<0.000000e+00> : vector<16xf32>
    %95 = vector.multi_reduction <add>, %92, %cst_50 [1] : vector<16x128xf32> to vector<16xf32>
    %96 = vector.shape_cast %95 : vector<16xf32> to vector<16x1xf32>
    %cst_51 = arith.constant 3.125000e-02 : f32
    %97 = vector.broadcast %cst_51 : f32 to vector<16x1xf32>
    %98 = arith.mulf %96, %97 : vector<16x1xf32>
    %99 = vector.broadcast %98 : vector<16x1xf32> to vector<16x128xf32>
    %100 = arith.subf %92, %99 : vector<16x128xf32>
    %101 = arith.mulf %100, %100 : vector<16x128xf32>
    %cst_52 = arith.constant dense<0.000000e+00> : vector<16xf32>
    %102 = vector.multi_reduction <add>, %101, %cst_52 [1] : vector<16x128xf32> to vector<16xf32>
    %103 = vector.shape_cast %102 : vector<16xf32> to vector<16x1xf32>
    %cst_53 = arith.constant 9.600000e+01 : f32
    %104 = vector.broadcast %cst_53 : f32 to vector<16x1xf32>
    %105 = arith.mulf %104, %98 : vector<16x1xf32>
    %106 = arith.mulf %105, %98 : vector<16x1xf32>
    %107 = arith.subf %103, %106 : vector<16x1xf32>
    %cst_54 = arith.constant 3.125000e-02 : f32
    %108 = vector.broadcast %cst_54 : f32 to vector<16x1xf32>
    %109 = arith.mulf %107, %108 : vector<16x1xf32>
    %cst_55 = arith.constant 9.99999974E-6 : f32
    %110 = vector.broadcast %cst_55 : f32 to vector<16x1xf32>
    %111 = arith.addf %109, %110 : vector<16x1xf32>
    %112 = math.rsqrt %111 : vector<16x1xf32>
    %113 = vector.broadcast %112 : vector<16x1xf32> to vector<16x128xf32>
    %114 = arith.mulf %100, %113 : vector<16x128xf32>
    %115 = vector.broadcast %93 : vector<1x128xf32> to vector<16x128xf32>
    %116 = arith.mulf %114, %115 : vector<16x128xf32>
    %117 = vector.broadcast %94 : vector<1x128xf32> to vector<16x128xf32>
    %118 = arith.addf %116, %117 : vector<16x128xf32>
    %119 = vector.shape_cast %118 : vector<16x128xf32> to vector<2x8x128xf32>
    %120 = arith.truncf %118 : vector<16x128xf32> to vector<16x128xbf16>
    %c0_56 = arith.constant 0 : index
    %c0_57 = arith.constant 0 : index
    %121 = vector.load %arg17[%c0_56, %c0_57] : memref<128x128xbf16, #tpu.memory_space<vmem>>, vector<128x128xbf16>
    %cst_58 = arith.constant dense<0.000000e+00> : vector<16x128xf32>
    %122 = tpu.matmul %120, %121, %cst_58 {dimension_numbers = #tpu.dot_dimension_numbers<[1], [0], [0], [1], [0, 0, 1, 1], [], []>} : vector<16x128xbf16>, vector<128x128xbf16>, vector<16x128xf32> -> vector<16x128xf32>
    %c0_59 = arith.constant 0 : index
    %c0_60 = arith.constant 0 : index
    %123 = vector.load %arg18[%c0_59, %c0_60] : memref<1x128xf32, #tpu.memory_space<vmem>>, vector<1x128xf32>
    %124 = vector.broadcast %123 : vector<1x128xf32> to vector<16x128xf32>
    %125 = arith.addf %122, %124 : vector<16x128xf32>
    %cst_61 = arith.constant 0.000000e+00 : f32
    %126 = vector.broadcast %cst_61 : f32 to vector<16x128xf32>
    %127 = arith.maximumf %125, %126 : vector<16x128xf32>
    %128 = vector.shape_cast %127 : vector<16x128xf32> to vector<2x8x128xf32>
    %c0_62 = arith.constant 0 : index
    %c0_63 = arith.constant 0 : index
    %129 = vector.load %arg19[%c0_62, %c0_63] : memref<1x128xf32, #tpu.memory_space<vmem>>, vector<1x128xf32>
    %130 = vector.shape_cast %129 : vector<1x128xf32> to vector<1x1x128xf32>
    %131 = vector.broadcast %130 : vector<1x1x128xf32> to vector<2x8x128xf32>
    %132 = arith.mulf %128, %131 : vector<2x8x128xf32>
    %133 = vector.extract_strided_slice %132 {offsets = [0, 0, 0], sizes = [2, 8, 64], strides = [1, 1, 1]} : vector<2x8x128xf32> to vector<2x8x64xf32>
    %cst_64 = arith.constant dense<0.000000e+00> : vector<2x8xf32>
    %134 = vector.multi_reduction <add>, %133, %cst_64 [2] : vector<2x8x64xf32> to vector<2x8xf32>
    %c0_65 = arith.constant 0 : index
    %c0_66 = arith.constant 0 : index
    %135 = vector.load %arg20[%c0_65, %c0_66] : memref<1x2xf32, #tpu.memory_space<vmem>>, vector<1x1xf32>
    %136 = vector.extract %135[0, 0] : f32 from vector<1x1xf32>
    %137 = vector.broadcast %136 : f32 to vector<2x8xf32>
    %138 = arith.addf %134, %137 : vector<2x8xf32>
    %139 = vector.extract_strided_slice %132 {offsets = [0, 0, 64], sizes = [2, 8, 64], strides = [1, 1, 1]} : vector<2x8x128xf32> to vector<2x8x64xf32>
    %cst_67 = arith.constant dense<0.000000e+00> : vector<2x8xf32>
    %140 = vector.multi_reduction <add>, %139, %cst_67 [2] : vector<2x8x64xf32> to vector<2x8xf32>
    %c0_68 = arith.constant 0 : index
    %c1 = arith.constant 1 : index
    %141 = vector.load %arg20[%c0_68, %c1] : memref<1x2xf32, #tpu.memory_space<vmem>>, vector<1x1xf32>
    %142 = vector.extract %141[0, 0] : f32 from vector<1x1xf32>
    %143 = vector.broadcast %142 : f32 to vector<2x8xf32>
    %144 = arith.addf %140, %143 : vector<2x8xf32>
    %145 = vector.shape_cast %8 : vector<2x8xf32> to vector<2x8x1xf32>
    %146 = vector.broadcast %145 : vector<2x8x1xf32> to vector<2x8x128xf32>
    %147 = arith.mulf %119, %146 : vector<2x8x128xf32>
    %cst_69 = arith.constant dense<0.000000e+00> : vector<2x128xf32>
    %148 = vector.multi_reduction <add>, %147, %cst_69 [1] : vector<2x8x128xf32> to vector<2x128xf32>
    %149 = arith.truncf %148 : vector<2x128xf32> to vector<2x128xbf16>
    %c0_70 = arith.constant 0 : index
    %c0_71 = arith.constant 0 : index
    %150 = vector.load %arg21[%c0_70, %c0_71] : memref<128x128xbf16, #tpu.memory_space<vmem>>, vector<128x128xbf16>
    %cst_72 = arith.constant dense<0.000000e+00> : vector<2x128xf32>
    %151 = tpu.matmul %149, %150, %cst_72 {dimension_numbers = #tpu.dot_dimension_numbers<[1], [0], [0], [1], [0, 0, 1, 1], [], []>} : vector<2x128xbf16>, vector<128x128xbf16>, vector<2x128xf32> -> vector<2x128xf32>
    %c0_73 = arith.constant 0 : index
    %c0_74 = arith.constant 0 : index
    %152 = vector.load %arg22[%c0_73, %c0_74] : memref<1x128xf32, #tpu.memory_space<vmem>>, vector<1x128xf32>
    %153 = vector.broadcast %152 : vector<1x128xf32> to vector<2x128xf32>
    %154 = arith.addf %151, %153 : vector<2x128xf32>
    %155 = vector.shape_cast %154 : vector<2x128xf32> to vector<2x1x128xf32>
    %156 = vector.broadcast %155 : vector<2x1x128xf32> to vector<2x8x128xf32>
    %157 = arith.mulf %119, %156 : vector<2x8x128xf32>
    %cst_75 = arith.constant dense<0.000000e+00> : vector<2x8xf32>
    %158 = vector.multi_reduction <add>, %157, %cst_75 [2] : vector<2x8x128xf32> to vector<2x8xf32>
    %c0_76 = arith.constant 0 : index
    %c0_77 = arith.constant 0 : index
    %159 = vector.load %arg23[%c0_76, %c0_77] : memref<1x128xf32, #tpu.memory_space<vmem>>, vector<1x128xf32>
    %160 = vector.broadcast %159 : vector<1x128xf32> to vector<2x128xf32>
    %161 = arith.mulf %148, %160 : vector<2x128xf32>
    %cst_78 = arith.constant dense<0.000000e+00> : vector<2xf32>
    %162 = vector.multi_reduction <add>, %161, %cst_78 [1] : vector<2x128xf32> to vector<2xf32>
    %163 = vector.shape_cast %162 : vector<2xf32> to vector<2x1xf32>
    %164 = vector.broadcast %163 : vector<2x1xf32> to vector<2x8xf32>
    %165 = arith.addf %158, %164 : vector<2x8xf32>
    %c0_79 = arith.constant 0 : index
    %c0_80 = arith.constant 0 : index
    %166 = vector.load %arg24[%c0_79, %c0_80] : memref<1x1xf32, #tpu.memory_space<vmem>>, vector<1x1xf32>
    %167 = vector.broadcast %166 : vector<1x1xf32> to vector<2x8xf32>
    %168 = arith.addf %165, %167 : vector<2x8xf32>
    %cst_81 = arith.constant 5.000000e-01 : f32
    %169 = vector.broadcast %cst_81 : f32 to vector<2x8xf32>
    %170 = arith.cmpf ogt, %4, %169 : vector<2x8xf32>
    %cst_82 = arith.constant -1.000000e+09 : f32
    %171 = vector.broadcast %cst_82 : f32 to vector<2x8xf32>
    %172 = arith.select %170, %138, %171 : vector<2x8xi1>, vector<2x8xf32>
    %cst_83 = arith.constant dense<0xFF800000> : vector<2xf32>
    %173 = vector.multi_reduction <maximumf>, %172, %cst_83 [1] : vector<2x8xf32> to vector<2xf32>
    %174 = vector.shape_cast %173 : vector<2xf32> to vector<2x1xf32>
    %175 = vector.broadcast %174 : vector<2x1xf32> to vector<2x8xf32>
    %176 = arith.subf %172, %175 : vector<2x8xf32>
    %177 = math.exp %176 : vector<2x8xf32>
    %cst_84 = arith.constant dense<0.000000e+00> : vector<2xf32>
    %178 = vector.multi_reduction <add>, %177, %cst_84 [1] : vector<2x8xf32> to vector<2xf32>
    %179 = vector.shape_cast %178 : vector<2xf32> to vector<2x1xf32>
    %180 = math.log %179 : vector<2x1xf32>
    %181 = arith.addf %180, %174 : vector<2x1xf32>
    %182 = vector.broadcast %181 : vector<2x1xf32> to vector<2x8xf32>
    %183 = arith.subf %172, %182 : vector<2x8xf32>
    %cst_85 = arith.constant 5.000000e-01 : f32
    %184 = vector.broadcast %cst_85 : f32 to vector<2x8xf32>
    %185 = arith.cmpf ogt, %10, %184 : vector<2x8xf32>
    %cst_86 = arith.constant -1.000000e+09 : f32
    %186 = vector.broadcast %cst_86 : f32 to vector<2x8xf32>
    %187 = arith.select %185, %168, %186 : vector<2x8xi1>, vector<2x8xf32>
    %cst_87 = arith.constant dense<0xFF800000> : vector<2xf32>
    %188 = vector.multi_reduction <maximumf>, %187, %cst_87 [1] : vector<2x8xf32> to vector<2xf32>
    %189 = vector.shape_cast %188 : vector<2xf32> to vector<2x1xf32>
    %190 = vector.broadcast %189 : vector<2x1xf32> to vector<2x8xf32>
    %191 = arith.subf %187, %190 : vector<2x8xf32>
    %192 = math.exp %191 : vector<2x8xf32>
    %cst_88 = arith.constant dense<0.000000e+00> : vector<2xf32>
    %193 = vector.multi_reduction <add>, %192, %cst_88 [1] : vector<2x8xf32> to vector<2xf32>
    %194 = vector.shape_cast %193 : vector<2xf32> to vector<2x1xf32>
    %195 = math.log %194 : vector<2x1xf32>
    %196 = arith.addf %195, %189 : vector<2x1xf32>
    %197 = vector.broadcast %196 : vector<2x1xf32> to vector<2x8xf32>
    %198 = arith.subf %187, %197 : vector<2x8xf32>
    %cst_89 = arith.constant 5.000000e-01 : f32
    %199 = vector.broadcast %cst_89 : f32 to vector<2x8xf32>
    %200 = arith.cmpf ogt, %6, %199 : vector<2x8xf32>
    %cst_90 = arith.constant -1.000000e+09 : f32
    %201 = vector.broadcast %cst_90 : f32 to vector<2x8xf32>
    %202 = arith.select %200, %144, %201 : vector<2x8xi1>, vector<2x8xf32>
    %203 = vector.shape_cast %183 : vector<2x8xf32> to vector<1x2x8xf32>
    %204 = vector.shape_cast %198 : vector<2x8xf32> to vector<1x2x8xf32>
    %205 = vector.shape_cast %202 : vector<2x8xf32> to vector<1x2x8xf32>
    %206 = tpu.concatenate %203, %204, %205 in 0 : vector<1x2x8xf32>, vector<1x2x8xf32>, vector<1x2x8xf32> -> vector<3x2x8xf32>
    %c0_91 = arith.constant 0 : index
    %c0_92 = arith.constant 0 : index
    %c0_93 = arith.constant 0 : index
    %207 = vector.load %arg25[%c0_91, %c0_92, %c0_93] : memref<3x2x8xf32, #tpu.memory_space<vmem>>, vector<3x2x8xf32>
    tpu.vector_store %arg25[%c0_91, %c0_92, %c0_93], %206 {strides = array<i32>} : memref<3x2x8xf32, #tpu.memory_space<vmem>>, vector<3x2x8xf32>,
    return
  }
  func.func @transform_0(%arg0: i32) -> (i32, i32, i32) {
    %c0_i32 = arith.constant 0 : i32
    %c0_i32_0 = arith.constant 0 : i32
    %c0_i32_1 = arith.constant 0 : i32
    return %arg0, %c0_i32, %c0_i32_0 : i32, i32, i32
  }
  func.func @transform_1(%arg0: i32) -> (i32, i32, i32) {
    %c0_i32 = arith.constant 0 : i32
    %c0_i32_0 = arith.constant 0 : i32
    %c0_i32_1 = arith.constant 0 : i32
    return %arg0, %c0_i32, %c0_i32_0 : i32, i32, i32
  }
  func.func @transform_2(%arg0: i32) -> (i32, i32, i32) {
    %c0_i32 = arith.constant 0 : i32
    %c0_i32_0 = arith.constant 0 : i32
    %c0_i32_1 = arith.constant 0 : i32
    return %arg0, %c0_i32, %c0_i32_0 : i32, i32, i32
  }
  func.func @transform_3(%arg0: i32) -> (i32, i32) {
    %c0_i32 = arith.constant 0 : i32
    %c0_i32_0 = arith.constant 0 : i32
    %c0_i32_1 = arith.constant 0 : i32
    return %c0_i32, %c0_i32_0 : i32, i32
  }
  func.func @transform_4(%arg0: i32) -> (i32, i32) {
    %c0_i32 = arith.constant 0 : i32
    %c0_i32_0 = arith.constant 0 : i32
    %c0_i32_1 = arith.constant 0 : i32
    return %c0_i32, %c0_i32_0 : i32, i32
  }
  func.func @transform_5(%arg0: i32) -> (i32, i32) {
    %c0_i32 = arith.constant 0 : i32
    %c0_i32_0 = arith.constant 0 : i32
    %c0_i32_1 = arith.constant 0 : i32
    return %c0_i32, %c0_i32_0 : i32, i32
  }
  func.func @transform_6(%arg0: i32) -> (i32, i32) {
    %c0_i32 = arith.constant 0 : i32
    %c0_i32_0 = arith.constant 0 : i32
    %c0_i32_1 = arith.constant 0 : i32
    return %c0_i32, %c0_i32_0 : i32, i32
  }
  func.func @transform_7(%arg0: i32) -> (i32, i32) {
    %c0_i32 = arith.constant 0 : i32
    %c0_i32_0 = arith.constant 0 : i32
    %c0_i32_1 = arith.constant 0 : i32
    return %c0_i32, %c0_i32_0 : i32, i32
  }
  func.func @transform_8(%arg0: i32) -> (i32, i32) {
    %c0_i32 = arith.constant 0 : i32
    %c0_i32_0 = arith.constant 0 : i32
    %c0_i32_1 = arith.constant 0 : i32
    return %c0_i32, %c0_i32_0 : i32, i32
  }
  func.func @transform_9(%arg0: i32) -> (i32, i32) {
    %c0_i32 = arith.constant 0 : i32
    %c0_i32_0 = arith.constant 0 : i32
    %c0_i32_1 = arith.constant 0 : i32
    return %c0_i32, %c0_i32_0 : i32, i32
  }
  func.func @transform_10(%arg0: i32) -> (i32, i32) {
    %c0_i32 = arith.constant 0 : i32
    %c0_i32_0 = arith.constant 0 : i32
    %c0_i32_1 = arith.constant 0 : i32
    return %c0_i32, %c0_i32_0 : i32, i32
  }
  func.func @transform_11(%arg0: i32) -> (i32, i32) {
    %c0_i32 = arith.constant 0 : i32
    %c0_i32_0 = arith.constant 0 : i32
    %c0_i32_1 = arith.constant 0 : i32
    return %c0_i32, %c0_i32_0 : i32, i32
  }
  func.func @transform_12(%arg0: i32) -> (i32, i32) {
    %c0_i32 = arith.constant 0 : i32
    %c0_i32_0 = arith.constant 0 : i32
    %c0_i32_1 = arith.constant 0 : i32
    return %c0_i32, %c0_i32_0 : i32, i32
  }
  func.func @transform_13(%arg0: i32) -> (i32, i32) {
    %c0_i32 = arith.constant 0 : i32
    %c0_i32_0 = arith.constant 0 : i32
    %c0_i32_1 = arith.constant 0 : i32
    return %c0_i32, %c0_i32_0 : i32, i32
  }
  func.func @transform_14(%arg0: i32) -> (i32, i32) {
    %c0_i32 = arith.constant 0 : i32
    %c0_i32_0 = arith.constant 0 : i32
    %c0_i32_1 = arith.constant 0 : i32
    return %c0_i32, %c0_i32_0 : i32, i32
  }
  func.func @transform_15(%arg0: i32) -> (i32, i32) {
    %c0_i32 = arith.constant 0 : i32
    %c0_i32_0 = arith.constant 0 : i32
    %c0_i32_1 = arith.constant 0 : i32
    return %c0_i32, %c0_i32_0 : i32, i32
  }
  func.func @transform_16(%arg0: i32) -> (i32, i32) {
    %c0_i32 = arith.constant 0 : i32
    %c0_i32_0 = arith.constant 0 : i32
    %c0_i32_1 = arith.constant 0 : i32
    return %c0_i32, %c0_i32_0 : i32, i32
  }
  func.func @transform_17(%arg0: i32) -> (i32, i32) {
    %c0_i32 = arith.constant 0 : i32
    %c0_i32_0 = arith.constant 0 : i32
    %c0_i32_1 = arith.constant 0 : i32
    return %c0_i32, %c0_i32_0 : i32, i32
  }
  func.func @transform_18(%arg0: i32) -> (i32, i32) {
    %c0_i32 = arith.constant 0 : i32
    %c0_i32_0 = arith.constant 0 : i32
    %c0_i32_1 = arith.constant 0 : i32
    return %c0_i32, %c0_i32_0 : i32, i32
  }
  func.func @transform_19(%arg0: i32) -> (i32, i32) {
    %c0_i32 = arith.constant 0 : i32
    %c0_i32_0 = arith.constant 0 : i32
    %c0_i32_1 = arith.constant 0 : i32
    return %c0_i32, %c0_i32_0 : i32, i32
  }
  func.func @transform_20(%arg0: i32) -> (i32, i32) {
    %c0_i32 = arith.constant 0 : i32
    %c0_i32_0 = arith.constant 0 : i32
    %c0_i32_1 = arith.constant 0 : i32
    return %c0_i32, %c0_i32_0 : i32, i32
  }
  func.func @transform_21(%arg0: i32) -> (i32, i32) {
    %c0_i32 = arith.constant 0 : i32
    %c0_i32_0 = arith.constant 0 : i32
    %c0_i32_1 = arith.constant 0 : i32
    return %c0_i32, %c0_i32_0 : i32, i32
  }
  func.func @transform_22(%arg0: i32) -> (i32, i32) {
    %c0_i32 = arith.constant 0 : i32
    %c0_i32_0 = arith.constant 0 : i32
    %c0_i32_1 = arith.constant 0 : i32
    return %c0_i32, %c0_i32_0 : i32, i32
  }
  func.func @transform_23(%arg0: i32) -> (i32, i32) {
    %c0_i32 = arith.constant 0 : i32
    %c0_i32_0 = arith.constant 0 : i32
    %c0_i32_1 = arith.constant 0 : i32
    return %c0_i32, %c0_i32_0 : i32, i32
  }
  func.func @transform_24(%arg0: i32) -> (i32, i32, i32) {
    %c0_i32 = arith.constant 0 : i32
    %c0_i32_0 = arith.constant 0 : i32
    %c0_i32_1 = arith.constant 0 : i32
    return %c0_i32, %arg0, %c0_i32_0 : i32, i32, i32
  }
}

</mosaic_0001>

<llo_original>
// kernel: tpu_custom_call.1
$region0: #{tpu_custom_call.1}
  #allocation0 [shape = 'u32[]', space=smem, size = 0x4, offset = 0x4, fixed_abs, tag = 'smem constant byte address 0x4 - core index']
  #allocation1 [shape = 'u32[72,128]{1,0:T(1,128)}', space=vmem, size = 0x9000, scoped, tag = 'internal scratch']
  #allocation2 [shape = 'f32[1,1]{1,0:T(1,128)S(1)}', space=vmem, size = 0x200, scoped, tag = 'scoped memory for tpu_custom_call.1']
  #allocation3 [shape = 'f32[1,1]{1,0:T(1,128)S(1)}', space=vmem, size = 0x200, scoped, tag = 'scoped memory for tpu_custom_call.1']
  %s0 = inlined_call_operand.vmem [shape: f32[2,8,128], index: 0, kind: input, shape index: {}]
  %s1 = inlined_call_operand.vmem [shape: bf16[2,8,8], index: 1, kind: input, shape index: {}]
  %s2 = inlined_call_operand.vmem [shape: f32[2,5,8], index: 2, kind: input, shape index: {}]
  %s3 = inlined_call_operand.hbm [shape: bf16[128,128], index: 3, kind: input, shape index: {}]
  %s4 = inlined_call_operand.hbm [shape: bf16[128,128], index: 4, kind: input, shape index: {}]
  %s5 = inlined_call_operand.hbm [shape: bf16[128,128], index: 5, kind: input, shape index: {}]
  %s6 = inlined_call_operand.hbm [shape: bf16[128,128], index: 6, kind: input, shape index: {}]
  %s7 = inlined_call_operand.<no memory space> [shape: f32[1,1], index: 7, kind: input, shape index: {}]
  %s8 = inlined_call_operand.vmem [shape: f32[1,128], index: 8, kind: input, shape index: {}]
  %s9 = inlined_call_operand.vmem [shape: f32[1,128], index: 9, kind: input, shape index: {}]
  %s10 = inlined_call_operand.vmem [shape: f32[1,128], index: 10, kind: input, shape index: {}]
  %s11 = inlined_call_operand.vmem [shape: f32[1,128], index: 11, kind: input, shape index: {}]
  %s12 = inlined_call_operand.hbm [shape: bf16[128,128], index: 12, kind: input, shape index: {}]
  %s13 = inlined_call_operand.vmem [shape: f32[1,128], index: 13, kind: input, shape index: {}]
  %s14 = inlined_call_operand.hbm [shape: bf16[128,128], index: 14, kind: input, shape index: {}]
  %s15 = inlined_call_operand.vmem [shape: f32[1,128], index: 15, kind: input, shape index: {}]
  %s16 = inlined_call_operand.hbm [shape: bf16[128,128], index: 16, kind: input, shape index: {}]
  %s17 = inlined_call_operand.vmem [shape: f32[1,128], index: 17, kind: input, shape index: {}]
  %s18 = inlined_call_operand.vmem [shape: f32[1,128], index: 18, kind: input, shape index: {}]
  %s19 = inlined_call_operand.vmem [shape: f32[1,2], index: 19, kind: input, shape index: {}]
  %s20 = inlined_call_operand.hbm [shape: bf16[128,128], index: 20, kind: input, shape index: {}]
  %s21 = inlined_call_operand.vmem [shape: f32[1,128], index: 21, kind: input, shape index: {}]
  %s22 = inlined_call_operand.vmem [shape: f32[1,128], index: 22, kind: input, shape index: {}]
  %s23 = inlined_call_operand.<no memory space> [shape: f32[1,1], index: 23, kind: input, shape index: {}]
  %s24 = inlined_call_operand.hbm [shape: f32[3,2,8], index: 24, kind: output, shape index: {}]
  %s25 = sld [smem:[#allocation0]]
  $region138: #{tpu_custom_call.1} parent=0
    _
  %s27 = ssub.s32 1, %s25
  %s28 = scalar_select 0, %s27, %s25
  %v29 = vstv %s7
  %30 = vst [vmem:[#allocation2] sm:$0x1] %v29
  %v31 = vstv %s23
  %32 = vst [vmem:[#allocation3] sm:$0x1] %v31
  $region1: #{tpu_custom_call.1} parent=0
    #allocation4 [shape = 'u8[32768]{0}', space=vmem, size = 0x8000, scoped, tag = 'input window, operand 3, single buffered']
    #allocation5 [shape = 's32[1]{0}', space=sflag, size = 0x4, scoped, tag = 'scoped memory for tpu_custom_call.1']
    #allocation6 [shape = 's32[1]{0}', space=sflag, size = 0x4, scoped, tag = 'scoped memory for tpu_custom_call.1']
    #allocation7 [shape = 'u8[32768]{0}', space=vmem, size = 0x8000, scoped, tag = 'input window, operand 4, single buffered']
    #allocation8 [shape = 's32[1]{0}', space=sflag, size = 0x4, scoped, tag = 'scoped memory for tpu_custom_call.1']
    #allocation9 [shape = 'u8[32768]{0}', space=vmem, size = 0x8000, scoped, tag = 'input window, operand 5, single buffered']
    #allocation10 [shape = 'u8[32768]{0}', space=vmem, size = 0x8000, scoped, tag = 'input window, operand 6, single buffered']
    #allocation11 [shape = 's32[1]{0}', space=sflag, size = 0x4, scoped, tag = 'scoped memory for tpu_custom_call.1']
    #allocation12 [shape = 'u8[32768]{0}', space=vmem, size = 0x8000, scoped, tag = 'input window, operand 12, single buffered']
    #allocation13 [shape = 'u8[32768]{0}', space=vmem, size = 0x8000, scoped, tag = 'input window, operand 14, single buffered']
    #allocation14 [shape = 's32[1]{0}', space=sflag, size = 0x4, scoped, tag = 'scoped memory for tpu_custom_call.1']
    #allocation15 [shape = 'u8[32768]{0}', space=vmem, size = 0x8000, scoped, tag = 'input window, operand 16, single buffered']
    #allocation16 [shape = 'u8[32768]{0}', space=vmem, size = 0x8000, scoped, tag = 'input window, operand 20, single buffered']
    #allocation17 [shape = 's32[1]{0}', space=sflag, size = 0x4, scoped, tag = 'scoped memory for tpu_custom_call.1']
    #allocation18 [shape = 'u8[3072]{0}', space=vmem, size = 0xc00, scoped, tag = 'output window, operand 0, single buffered']
    %33 = vsyncpa [#allocation5], 0
    %34 = vsyncpa [#allocation8], 0
    %35 = vsyncpa [#allocation11], 0
    %36 = vsyncpa [#allocation14], 0
    %37 = vsyncpa [#allocation17], 0
    %38 = vsyncpa [#allocation6], 0
    // Predicated region
    $region2: #{tpu_custom_call.1} parent=1 // pred_check
      _
    $region3: #{tpu_custom_call.1} parent=1 // pred_check_branch
      %40 = sbr.rel (0) target = $region5
    $region4: #{tpu_custom_call.1} parent=1 // pred_region
      _
    $region5: #{tpu_custom_call.1} parent=1 // pred_fallthru
      _
    // Predicated region
    $region6: #{tpu_custom_call.1} parent=1 // pred_check
      _
    $region7: #{tpu_custom_call.1} parent=1 // pred_check_branch
      %42 = sbr.rel (0) target = $region9
    $region8: #{tpu_custom_call.1} parent=1 // pred_region
      _
    $region9: #{tpu_custom_call.1} parent=1 // pred_fallthru
      _
    // Predicated region
    $region10: #{tpu_custom_call.1} parent=1 // pred_check
      _
    $region11: #{tpu_custom_call.1} parent=1 // pred_check_branch
      %44 = sbr.rel (0) target = $region13
    $region12: #{tpu_custom_call.1} parent=1 // pred_region
      _
    $region13: #{tpu_custom_call.1} parent=1 // pred_fallthru
      _
    // Predicated region
    $region14: #{tpu_custom_call.1} parent=1 // pred_check
      _
    $region15: #{tpu_custom_call.1} parent=1 // pred_check_branch
      %46 = sbr.rel (0) target = $region17
    $region16: #{tpu_custom_call.1} parent=1 // pred_region
      %48 = vsyncadd [#allocation5], 0
      %s49 = sshll.u32 %s3, 4
      %s50 = int_to_ptr.hbm [resolvable:$true] %s49
      %s51 = sshll.u32 [#allocation4], 4
      %s52 = int_to_ptr.vmem [resolvable:$true] %s51
      %57 = dma.hbm_to_vmem [thread:$0]  %s50, 1024, %s52, [#allocation5], 64, 64, 4
    $region17: #{tpu_custom_call.1} parent=1 // pred_fallthru
      _
    // Predicated region
    $region18: #{tpu_custom_call.1} parent=1 // pred_check
      _
    $region19: #{tpu_custom_call.1} parent=1 // pred_check_branch
      %59 = sbr.rel (0) target = $region21
    $region20: #{tpu_custom_call.1} parent=1 // pred_region
      %61 = vsyncadd [#allocation8], 0
      %s62 = sshll.u32 %s4, 4
      %s63 = int_to_ptr.hbm [resolvable:$true] %s62
      %s64 = sshll.u32 [#allocation7], 4
      %s65 = int_to_ptr.vmem [resolvable:$true] %s64
      %70 = dma.hbm_to_vmem [thread:$0]  %s63, 1024, %s65, [#allocation8], 64, 64, 4
    $region21: #{tpu_custom_call.1} parent=1 // pred_fallthru
      _
    // Predicated region
    $region22: #{tpu_custom_call.1} parent=1 // pred_check
      _
    $region23: #{tpu_custom_call.1} parent=1 // pred_check_branch
      %72 = sbr.rel (0) target = $region25
    $region24: #{tpu_custom_call.1} parent=1 // pred_region
      %74 = vsyncadd [#allocation8], 0
      %s75 = sshll.u32 %s5, 4
      %s76 = int_to_ptr.hbm [resolvable:$true] %s75
      %s77 = sshll.u32 [#allocation9], 4
      %s78 = int_to_ptr.vmem [resolvable:$true] %s77
      %83 = dma.hbm_to_vmem [thread:$0]  %s76, 1024, %s78, [#allocation8], 64, 64, 4
    $region25: #{tpu_custom_call.1} parent=1 // pred_fallthru
      _
    // Predicated region
    $region26: #{tpu_custom_call.1} parent=1 // pred_check
      _
    $region27: #{tpu_custom_call.1} parent=1 // pred_check_branch
      %85 = sbr.rel (0) target = $region29
    $region28: #{tpu_custom_call.1} parent=1 // pred_region
      %87 = vsyncadd [#allocation11], 0
      %s88 = sshll.u32 %s6, 4
      %s89 = int_to_ptr.hbm [resolvable:$true] %s88
      %s90 = sshll.u32 [#allocation10], 4
      %s91 = int_to_ptr.vmem [resolvable:$true] %s90
      %96 = dma.hbm_to_vmem [thread:$0]  %s89, 1024, %s91, [#allocation11], 64, 64, 4
    $region29: #{tpu_custom_call.1} parent=1 // pred_fallthru
      _
    // Predicated region
    $region30: #{tpu_custom_call.1} parent=1 // pred_check
      _
    $region31: #{tpu_custom_call.1} parent=1 // pred_check_branch
      %98 = sbr.rel (0) target = $region33
    $region32: #{tpu_custom_call.1} parent=1 // pred_region
      _
    $region33: #{tpu_custom_call.1} parent=1 // pred_fallthru
      _
    // Predicated region
    $region34: #{tpu_custom_call.1} parent=1 // pred_check
      _
    $region35: #{tpu_custom_call.1} parent=1 // pred_check_branch
      %100 = sbr.rel (0) target = $region37
    $region36: #{tpu_custom_call.1} parent=1 // pred_region
      _
    $region37: #{tpu_custom_call.1} parent=1 // pred_fallthru
      _
    // Predicated region
    $region38: #{tpu_custom_call.1} parent=1 // pred_check
      _
    $region39: #{tpu_custom_call.1} parent=1 // pred_check_branch
      %102 = sbr.rel (0) target = $region41
    $region40: #{tpu_custom_call.1} parent=1 // pred_region
      _
    $region41: #{tpu_custom_call.1} parent=1 // pred_fallthru
      _
    // Predicated region
    $region42: #{tpu_custom_call.1} parent=1 // pred_check
      _
    $region43: #{tpu_custom_call.1} parent=1 // pred_check_branch
      %104 = sbr.rel (0) target = $region45
    $region44: #{tpu_custom_call.1} parent=1 // pred_region
      _
    $region45: #{tpu_custom_call.1} parent=1 // pred_fallthru
      _
    // Predicated region
    $region46: #{tpu_custom_call.1} parent=1 // pred_check
      _
    $region47: #{tpu_custom_call.1} parent=1 // pred_check_branch
      %106 = sbr.rel (0) target = $region49
    $region48: #{tpu_custom_call.1} parent=1 // pred_region
      _
    $region49: #{tpu_custom_call.1} parent=1 // pred_fallthru
      _
    // Predicated region
    $region50: #{tpu_custom_call.1} parent=1 // pred_check
      _
    $region51: #{tpu_custom_call.1} parent=1 // pred_check_branch
      %108 = sbr.rel (0) target = $region53
    $region52: #{tpu_custom_call.1} parent=1 // pred_region
      %110 = vsyncadd [#allocation11], 0
      %s111 = sshll.u32 %s12, 4
      %s112 = int_to_ptr.hbm [resolvable:$true] %s111
      %s113 = sshll.u32 [#allocation12], 4
      %s114 = int_to_ptr.vmem [resolvable:$true] %s113
      %119 = dma.hbm_to_vmem [thread:$0]  %s112, 1024, %s114, [#allocation11], 64, 64, 4
    $region53: #{tpu_custom_call.1} parent=1 // pred_fallthru
      _
    // Predicated region
    $region54: #{tpu_custom_call.1} parent=1 // pred_check
      _
    $region55: #{tpu_custom_call.1} parent=1 // pred_check_branch
      %121 = sbr.rel (0) target = $region57
    $region56: #{tpu_custom_call.1} parent=1 // pred_region
      _
    $region57: #{tpu_custom_call.1} parent=1 // pred_fallthru
      _
    // Predicated region
    $region58: #{tpu_custom_call.1} parent=1 // pred_check
      _
    $region59: #{tpu_custom_call.1} parent=1 // pred_check_branch
      %123 = sbr.rel (0) target = $region61
    $region60: #{tpu_custom_call.1} parent=1 // pred_region
      %125 = vsyncadd [#allocation14], 0
      %s126 = sshll.u32 %s14, 4
      %s127 = int_to_ptr.hbm [resolvable:$true] %s126
      %s128 = sshll.u32 [#allocation13], 4
      %s129 = int_to_ptr.vmem [resolvable:$true] %s128
      %134 = dma.hbm_to_vmem [thread:$0]  %s127, 1024, %s129, [#allocation14], 64, 64, 4
    $region61: #{tpu_custom_call.1} parent=1 // pred_fallthru
      _
    // Predicated region
    $region62: #{tpu_custom_call.1} parent=1 // pred_check
      _
    $region63: #{tpu_custom_call.1} parent=1 // pred_check_branch
      %136 = sbr.rel (0) target = $region65
    $region64: #{tpu_custom_call.1} parent=1 // pred_region
      _
    $region65: #{tpu_custom_call.1} parent=1 // pred_fallthru
      _
    // Predicated region
    $region66: #{tpu_custom_call.1} parent=1 // pred_check
      _
    $region67: #{tpu_custom_call.1} parent=1 // pred_check_branch
      %138 = sbr.rel (0) target = $region69
    $region68: #{tpu_custom_call.1} parent=1 // pred_region
      %140 = vsyncadd [#allocation14], 0
      %s141 = sshll.u32 %s16, 4
      %s142 = int_to_ptr.hbm [resolvable:$true] %s141
      %s143 = sshll.u32 [#allocation15], 4
      %s144 = int_to_ptr.vmem [resolvable:$true] %s143
      %149 = dma.hbm_to_vmem [thread:$0]  %s142, 1024, %s144, [#allocation14], 64, 64, 4
    $region69: #{tpu_custom_call.1} parent=1 // pred_fallthru
      _
    // Predicated region
    $region70: #{tpu_custom_call.1} parent=1 // pred_check
      _
    $region71: #{tpu_custom_call.1} parent=1 // pred_check_branch
      %151 = sbr.rel (0) target = $region73
    $region72: #{tpu_custom_call.1} parent=1 // pred_region
      _
    $region73: #{tpu_custom_call.1} parent=1 // pred_fallthru
      _
    // Predicated region
    $region74: #{tpu_custom_call.1} parent=1 // pred_check
      _
    $region75: #{tpu_custom_call.1} parent=1 // pred_check_branch
      %153 = sbr.rel (0) target = $region77
    $region76: #{tpu_custom_call.1} parent=1 // pred_region
      _
    $region77: #{tpu_custom_call.1} parent=1 // pred_fallthru
      _
    // Predicated region
    $region78: #{tpu_custom_call.1} parent=1 // pred_check
      _
    $region79: #{tpu_custom_call.1} parent=1 // pred_check_branch
      %155 = sbr.rel (0) target = $region81
    $region80: #{tpu_custom_call.1} parent=1 // pred_region
      _
    $region81: #{tpu_custom_call.1} parent=1 // pred_fallthru
      _
    // Predicated region
    $region82: #{tpu_custom_call.1} parent=1 // pred_check
      _
    $region83: #{tpu_custom_call.1} parent=1 // pred_check_branch
      %157 = sbr.rel (0) target = $region85
    $region84: #{tpu_custom_call.1} parent=1 // pred_region
      %159 = vsyncadd [#allocation17], 0
      %s160 = sshll.u32 %s20, 4
      %s161 = int_to_ptr.hbm [resolvable:$true] %s160
      %s162 = sshll.u32 [#allocation16], 4
      %s163 = int_to_ptr.vmem [resolvable:$true] %s162
      %168 = dma.hbm_to_vmem [thread:$0]  %s161, 1024, %s163, [#allocation17], 64, 64, 4
    $region85: #{tpu_custom_call.1} parent=1 // pred_fallthru
      _
    // Predicated region
    $region86: #{tpu_custom_call.1} parent=1 // pred_check
      _
    $region87: #{tpu_custom_call.1} parent=1 // pred_check_branch
      %170 = sbr.rel (0) target = $region89
    $region88: #{tpu_custom_call.1} parent=1 // pred_region
      _
    $region89: #{tpu_custom_call.1} parent=1 // pred_fallthru
      _
    // Predicated region
    $region90: #{tpu_custom_call.1} parent=1 // pred_check
      _
    $region91: #{tpu_custom_call.1} parent=1 // pred_check_branch
      %172 = sbr.rel (0) target = $region93
    $region92: #{tpu_custom_call.1} parent=1 // pred_region
      _
    $region93: #{tpu_custom_call.1} parent=1 // pred_fallthru
      _
    // Predicated region
    $region94: #{tpu_custom_call.1} parent=1 // pred_check
      _
    $region95: #{tpu_custom_call.1} parent=1 // pred_check_branch
      %174 = sbr.rel (0) target = $region97
    $region96: #{tpu_custom_call.1} parent=1 // pred_region
      _
    $region97: #{tpu_custom_call.1} parent=1 // pred_fallthru
      _
    // Predicated region
    $region98: #{tpu_custom_call.1} parent=1 // pred_check
      _
    $region99: #{tpu_custom_call.1} parent=1 // pred_check_branch
      %176 = sbr.rel (0) target = $region101
    $region100: #{tpu_custom_call.1} parent=1 // pred_region
      %178 = dma.done [#allocation5], 1024
    $region101: #{tpu_custom_call.1} parent=1 // pred_fallthru
      _
    // Predicated region
    $region102: #{tpu_custom_call.1} parent=1 // pred_check
      _
    $region103: #{tpu_custom_call.1} parent=1 // pred_check_branch
      %180 = sbr.rel (0) target = $region105
    $region104: #{tpu_custom_call.1} parent=1 // pred_region
      %182 = dma.done [#allocation8], 1024
    $region105: #{tpu_custom_call.1} parent=1 // pred_fallthru
      _
    // Predicated region
    $region106: #{tpu_custom_call.1} parent=1 // pred_check
      _
    $region107: #{tpu_custom_call.1} parent=1 // pred_check_branch
      %184 = sbr.rel (0) target = $region109
    $region108: #{tpu_custom_call.1} parent=1 // pred_region
      %186 = dma.done [#allocation8], 1024
    $region109: #{tpu_custom_call.1} parent=1 // pred_fallthru
      _
    // Predicated region
    $region110: #{tpu_custom_call.1} parent=1 // pred_check
      _
    $region111: #{tpu_custom_call.1} parent=1 // pred_check_branch
      %188 = sbr.rel (0) target = $region113
    $region112: #{tpu_custom_call.1} parent=1 // pred_region
      %190 = dma.done [#allocation11], 1024
    $region113: #{tpu_custom_call.1} parent=1 // pred_fallthru
      _
    // Predicated region
    $region114: #{tpu_custom_call.1} parent=1 // pred_check
      _
    $region115: #{tpu_custom_call.1} parent=1 // pred_check_branch
      %192 = sbr.rel (0) target = $region117
    $region116: #{tpu_custom_call.1} parent=1 // pred_region
      %194 = dma.done [#allocation11], 1024
    $region117: #{tpu_custom_call.1} parent=1 // pred_fallthru
      _
    // Predicated region
    $region118: #{tpu_custom_call.1} parent=1 // pred_check
      _
    $region119: #{tpu_custom_call.1} parent=1 // pred_check_branch
      %196 = sbr.rel (0) target = $region121
    $region120: #{tpu_custom_call.1} parent=1 // pred_region
      %198 = dma.done [#allocation14], 1024
    $region121: #{tpu_custom_call.1} parent=1 // pred_fallthru
      _
    // Predicated region
    $region122: #{tpu_custom_call.1} parent=1 // pred_check
      _
    $region123: #{tpu_custom_call.1} parent=1 // pred_check_branch
      %200 = sbr.rel (0) target = $region125
    $region124: #{tpu_custom_call.1} parent=1 // pred_region
      %202 = dma.done [#allocation14], 1024
    $region125: #{tpu_custom_call.1} parent=1 // pred_fallthru
      _
    // Predicated region
    $region126: #{tpu_custom_call.1} parent=1 // pred_check
      _
    $region127: #{tpu_custom_call.1} parent=1 // pred_check_branch
      %204 = sbr.rel (0) target = $region129
    $region128: #{tpu_custom_call.1} parent=1 // pred_region
      %206 = dma.done [#allocation17], 1024
    $region129: #{tpu_custom_call.1} parent=1 // pred_fallthru
      _
    %v208 = vld [vmem:[%s0] sm:$0xff]
    %v209 = vld [vmem:[%s0 + $0x8] sm:$0xff]
    %v210 = vld [vmem:[%s2] sm:$0x1f]
    %v211 = vld [vmem:[%s2 + $0x8] sm:$0x1f]
    %v212 = vpack.c.bf16 %v209, %v208
    %v213 = vld [vmem:[#allocation4] sm:$0xf]
    %v214 = vld [vmem:[#allocation4 + $0x4] sm:$0xf]
    %v215 = vld [vmem:[#allocation4 + $0x8] sm:$0xf]
    %v216 = vld [vmem:[#allocation4 + $0xc] sm:$0xf]
    %v217 = vld [vmem:[#allocation4 + $0x10] sm:$0xf]
    %v218 = vld [vmem:[#allocation4 + $0x14] sm:$0xf]
    %v219 = vld [vmem:[#allocation4 + $0x18] sm:$0xf]
    %v220 = vld [vmem:[#allocation4 + $0x1c] sm:$0xf]
    %v221 = vld [vmem:[#allocation4 + $0x20] sm:$0xf]
    %v222 = vld [vmem:[#allocation4 + $0x24] sm:$0xf]
    %v223 = vld [vmem:[#allocation4 + $0x28] sm:$0xf]
    %v224 = vld [vmem:[#allocation4 + $0x2c] sm:$0xf]
    %v225 = vld [vmem:[#allocation4 + $0x30] sm:$0xf]
    %v226 = vld [vmem:[#allocation4 + $0x34] sm:$0xf]
    %v227 = vld [vmem:[#allocation4 + $0x38] sm:$0xf]
    %v228 = vld [vmem:[#allocation4 + $0x3c] sm:$0xf]
    %v245 = vunpack.c.l.b16 %v213
    %v246 = vunpack.c.l.b16 %v214
    %v247 = vunpack.c.l.b16 %v215
    %v248 = vunpack.c.l.b16 %v216
    %v249 = vunpack.c.l.b16 %v217
    %v250 = vunpack.c.l.b16 %v218
    %v251 = vunpack.c.l.b16 %v219
    %v252 = vunpack.c.l.b16 %v220
    %v253 = vunpack.c.l.b16 %v221
    %v254 = vunpack.c.l.b16 %v222
    %v255 = vunpack.c.l.b16 %v223
    %v256 = vunpack.c.l.b16 %v224
    %v257 = vunpack.c.l.b16 %v225
    %v258 = vunpack.c.l.b16 %v226
    %v259 = vunpack.c.l.b16 %v227
    %v260 = vunpack.c.l.b16 %v228
    %v261 = vpack.c.b16 %v246, %v245
    %v262 = vpack.c.b16 %v248, %v247
    %v263 = vpack.c.b16 %v250, %v249
    %v264 = vpack.c.b16 %v252, %v251
    %v265 = vpack.c.b16 %v254, %v253
    %v266 = vpack.c.b16 %v256, %v255
    %v267 = vpack.c.b16 %v258, %v257
    %v268 = vpack.c.b16 %v260, %v259
    %277 = vmatpush.bf16.msra.mxu0 %v268
    %278 = vmatpush.bf16.msra.mxu0 %v267
    %279 = vmatpush.bf16.msra.mxu0 %v266
    %280 = vmatpush.bf16.msra.mxu0 %v265
    %281 = vmatpush.bf16.msra.mxu0 %v264
    %282 = vmatpush.bf16.msra.mxu0 %v263
    %283 = vmatpush.bf16.msra.mxu0 %v262
    %284 = vmatpush.bf16.msra.mxu0 %v261
    %285 = vmatmul.bf16.gmra.mxu0 %v212
    %v286 = vpop.f32.mrf.mxu0
    %v287 = vadd.f32 0.0, %v286
    %v288 = vpop.f32.mrf.mxu0
    %v289 = vadd.f32 0.0, %v288
    %290 = vdwg.mxu0
    %v291 = vld [vmem:[#allocation7] sm:$0xf]
    %v292 = vld [vmem:[#allocation7 + $0x4] sm:$0xf]
    %v293 = vld [vmem:[#allocation7 + $0x8] sm:$0xf]
    %v294 = vld [vmem:[#allocation7 + $0xc] sm:$0xf]
    %v295 = vld [vmem:[#allocation7 + $0x10] sm:$0xf]
    %v296 = vld [vmem:[#allocation7 + $0x14] sm:$0xf]
    %v297 = vld [vmem:[#allocation7 + $0x18] sm:$0xf]
    %v298 = vld [vmem:[#allocation7 + $0x1c] sm:$0xf]
    %v299 = vld [vmem:[#allocation7 + $0x20] sm:$0xf]
    %v300 = vld [vmem:[#allocation7 + $0x24] sm:$0xf]
    %v301 = vld [vmem:[#allocation7 + $0x28] sm:$0xf]
    %v302 = vld [vmem:[#allocation7 + $0x2c] sm:$0xf]
    %v303 = vld [vmem:[#allocation7 + $0x30] sm:$0xf]
    %v304 = vld [vmem:[#allocation7 + $0x34] sm:$0xf]
    %v305 = vld [vmem:[#allocation7 + $0x38] sm:$0xf]
    %v306 = vld [vmem:[#allocation7 + $0x3c] sm:$0xf]
    %v323 = vunpack.c.l.b16 %v291
    %v324 = vunpack.c.l.b16 %v292
    %v325 = vunpack.c.l.b16 %v293
    %v326 = vunpack.c.l.b16 %v294
    %v327 = vunpack.c.l.b16 %v295
    %v328 = vunpack.c.l.b16 %v296
    %v329 = vunpack.c.l.b16 %v297
    %v330 = vunpack.c.l.b16 %v298
    %v331 = vunpack.c.l.b16 %v299
    %v332 = vunpack.c.l.b16 %v300
    %v333 = vunpack.c.l.b16 %v301
    %v334 = vunpack.c.l.b16 %v302
    %v335 = vunpack.c.l.b16 %v303
    %v336 = vunpack.c.l.b16 %v304
    %v337 = vunpack.c.l.b16 %v305
    %v338 = vunpack.c.l.b16 %v306
    %v339 = vpack.c.b16 %v324, %v323
    %v340 = vpack.c.b16 %v326, %v325
    %v341 = vpack.c.b16 %v328, %v327
    %v342 = vpack.c.b16 %v330, %v329
    %v343 = vpack.c.b16 %v332, %v331
    %v344 = vpack.c.b16 %v334, %v333
    %v345 = vpack.c.b16 %v336, %v335
    %v346 = vpack.c.b16 %v338, %v337
    %355 = vmatpush.bf16.msra.mxu0 %v346
    %356 = vmatpush.bf16.msra.mxu0 %v345
    %357 = vmatpush.bf16.msra.mxu0 %v344
    %358 = vmatpush.bf16.msra.mxu0 %v343
    %359 = vmatpush.bf16.msra.mxu0 %v342
    %360 = vmatpush.bf16.msra.mxu0 %v341
    %361 = vmatpush.bf16.msra.mxu0 %v340
    %362 = vmatpush.bf16.msra.mxu0 %v339
    %363 = vmatmul.bf16.gmra.mxu0 %v212
    %v364 = vpop.f32.mrf.mxu0
    %v365 = vadd.f32 0.0, %v364
    %v366 = vpop.f32.mrf.mxu0
    %v367 = vadd.f32 0.0, %v366
    %368 = vdwg.mxu0
    %v369 = vld [vmem:[#allocation9] sm:$0xf]
    %v370 = vld [vmem:[#allocation9 + $0x4] sm:$0xf]
    %v371 = vld [vmem:[#allocation9 + $0x8] sm:$0xf]
    %v372 = vld [vmem:[#allocation9 + $0xc] sm:$0xf]
    %v373 = vld [vmem:[#allocation9 + $0x10] sm:$0xf]
    %v374 = vld [vmem:[#allocation9 + $0x14] sm:$0xf]
    %v375 = vld [vmem:[#allocation9 + $0x18] sm:$0xf]
    %v376 = vld [vmem:[#allocation9 + $0x1c] sm:$0xf]
    %v377 = vld [vmem:[#allocation9 + $0x20] sm:$0xf]
    %v378 = vld [vmem:[#allocation9 + $0x24] sm:$0xf]
    %v379 = vld [vmem:[#allocation9 + $0x28] sm:$0xf]
    %v380 = vld [vmem:[#allocation9 + $0x2c] sm:$0xf]
    %v381 = vld [vmem:[#allocation9 + $0x30] sm:$0xf]
    %v382 = vld [vmem:[#allocation9 + $0x34] sm:$0xf]
    %v383 = vld [vmem:[#allocation9 + $0x38] sm:$0xf]
    %v384 = vld [vmem:[#allocation9 + $0x3c] sm:$0xf]
    %v401 = vunpack.c.l.b16 %v369
    %v402 = vunpack.c.l.b16 %v370
    %v403 = vunpack.c.l.b16 %v371
    %v404 = vunpack.c.l.b16 %v372
    %v405 = vunpack.c.l.b16 %v373
    %v406 = vunpack.c.l.b16 %v374
    %v407 = vunpack.c.l.b16 %v375
    %v408 = vunpack.c.l.b16 %v376
    %v409 = vunpack.c.l.b16 %v377
    %v410 = vunpack.c.l.b16 %v378
    %v411 = vunpack.c.l.b16 %v379
    %v412 = vunpack.c.l.b16 %v380
    %v413 = vunpack.c.l.b16 %v381
    %v414 = vunpack.c.l.b16 %v382
    %v415 = vunpack.c.l.b16 %v383
    %v416 = vunpack.c.l.b16 %v384
    %v417 = vpack.c.b16 %v402, %v401
    %v418 = vpack.c.b16 %v404, %v403
    %v419 = vpack.c.b16 %v406, %v405
    %v420 = vpack.c.b16 %v408, %v407
    %v421 = vpack.c.b16 %v410, %v409
    %v422 = vpack.c.b16 %v412, %v411
    %v423 = vpack.c.b16 %v414, %v413
    %v424 = vpack.c.b16 %v416, %v415
    %433 = vmatpush.bf16.msra.mxu0 %v424
    %434 = vmatpush.bf16.msra.mxu0 %v423
    %435 = vmatpush.bf16.msra.mxu0 %v422
    %436 = vmatpush.bf16.msra.mxu0 %v421
    %437 = vmatpush.bf16.msra.mxu0 %v420
    %438 = vmatpush.bf16.msra.mxu0 %v419
    %439 = vmatpush.bf16.msra.mxu0 %v418
    %440 = vmatpush.bf16.msra.mxu0 %v417
    %441 = vmatmul.bf16.gmra.mxu0 %v212
    %v442 = vpop.f32.mrf.mxu0
    %v443 = vadd.f32 0.0, %v442
    %v444 = vpop.f32.mrf.mxu0
    %v445 = vadd.f32 0.0, %v444
    %446 = vdwg.mxu0
    %v447 = vpack.c.bf16 %v287, %v287
    %v448 = vpack.c.bf16 %v289, %v289
    %v449 = vpack.c.bf16 %v365, %v365
    %v450 = vpack.c.bf16 %v367, %v367
    %v451 = vld [vmem:[#allocation2] sm:$0x1]
    %s452 = vtos %v451
    %v453 = vld [vmem:[%s1] sm:$0xf]
    %v454 = vld [vmem:[%s1 + $0x4] sm:$0xf]
    %v455 = vunpack.c.l.bf16 %v453
    %v456 = vunpack.c.l.bf16 %v454
    %v457 = vstv %s452
    %v458 = vmul.f32 %v457, %v455
    %v459 = vmul.f32 %v457, %v456
    %460 = vmatpush.bf16.xpose.msra.mxu0 0
    %461 = vmatpush.bf16.xpose.msra.mxu0 0
    %462 = vmatpush.bf16.xpose.msra.mxu0 0
    %463 = vmatpush.bf16.xpose.msra.mxu0 0
    %464 = vmatpush.bf16.xpose.msra.mxu0 0
    %465 = vmatpush.bf16.xpose.msra.mxu0 0
    %466 = vmatpush.bf16.xpose.msra.mxu0 0
    %467 = vmatpush.bf16.xpose.msra.mxu0 %v449
    %468 = vmatmul.bf16.gmra.mxu0 %v447
    %v469 = vpop.f32.mrf.mxu0
    %v470 = vadd.f32 %v458, %v469
    %v471 = vpop.f32.mrf.mxu0
    %472 = vdwg.mxu0
    %473 = vmatpush.bf16.xpose.msra.mxu0 0
    %474 = vmatpush.bf16.xpose.msra.mxu0 0
    %475 = vmatpush.bf16.xpose.msra.mxu0 0
    %476 = vmatpush.bf16.xpose.msra.mxu0 0
    %477 = vmatpush.bf16.xpose.msra.mxu0 0
    %478 = vmatpush.bf16.xpose.msra.mxu0 0
    %479 = vmatpush.bf16.xpose.msra.mxu0 0
    %480 = vmatpush.bf16.xpose.msra.mxu0 %v450
    %481 = vmatmul.bf16.gmra.mxu0 %v448
    %v482 = vpop.f32.mrf.mxu0
    %v483 = vadd.f32 %v459, %v482
    %v484 = vpop.f32.mrf.mxu0
    %485 = vdwg.mxu0
    %v486 = vperm.slane %v210, 0
    %v487 = vperm.slane %v211, 0
    %v488 = vadd.f32 %v470, %v486
    %v489 = vadd.f32 %v483, %v487
    %vm490 = vcmask 64512
    %v491 = vsel %vm490, %v488, -inf
    %492 = vmax.xlane.f32.xlu0 %v491
    %v493 = vpop.xlane.xlu0 %492
    %v494 = vsel %vm490, %v489, -inf
    %495 = vmax.xlane.f32.xlu0 %v494
    %v496 = vpop.xlane.xlu0 %495
    %v497 = vsub.f32 %v488, %v493
    %v498 = vsub.f32 %v489, %v496
    %v499 = vmul.f32 %v497, 1.442695
    %v500 = vpow.pop %v499
    %v501 = vmul.f32 %v498, 1.442695
    %v502 = vpow.pop %v501
    %v503 = vsel %vm490, %v500, 0.0
    %504 = vadd.xlane.f32.xlu0 %v503
    %v505 = vpop.xlane.xlu0 %504
    %v506 = vsel %vm490, %v502, 0.0
    %507 = vadd.xlane.f32.xlu0 %v506
    %v508 = vpop.xlane.xlu0 %507
    %v509 = vrcp.pop %v505
    %v510 = vrcp.pop %v508
    %v511 = vpack.c.bf16 %v500, %v500
    %v512 = vpack.c.bf16 %v502, %v502
    %v513 = vpack.c.bf16 %v443, %v443
    %v514 = vpack.c.bf16 %v445, %v445
    %v516 = vsel %vm490, %v511, 0
    %vm518 = vcmask 1043456
    %v520 = vsel %vm518, %v513, 0
    %522 = vmatpush.bf16.msra.mxu0 0
    %523 = vmatpush.bf16.msra.mxu0 0
    %524 = vmatpush.bf16.msra.mxu0 0
    %525 = vmatpush.bf16.msra.mxu0 0
    %526 = vmatpush.bf16.msra.mxu0 0
    %527 = vmatpush.bf16.msra.mxu0 0
    %528 = vmatpush.bf16.msra.mxu0 0
    %529 = vmatpush.bf16.msra.mxu0 %v520
    %530 = vmatmul.bf16.gmra.mxu0 %v516
    %v531 = vpop.f32.mrf.mxu0
    %v532 = vadd.f32 0.0, %v531
    %v533 = vpop.f32.mrf.mxu0
    %534 = vdwg.mxu0
    %v536 = vsel %vm490, %v512, 0
    %v539 = vsel %vm518, %v514, 0
    %541 = vmatpush.bf16.msra.mxu0 0
    %542 = vmatpush.bf16.msra.mxu0 0
    %543 = vmatpush.bf16.msra.mxu0 0
    %544 = vmatpush.bf16.msra.mxu0 0
    %545 = vmatpush.bf16.msra.mxu0 0
    %546 = vmatpush.bf16.msra.mxu0 0
    %547 = vmatpush.bf16.msra.mxu0 0
    %548 = vmatpush.bf16.msra.mxu0 %v539
    %549 = vmatmul.bf16.gmra.mxu0 %v536
    %v550 = vpop.f32.mrf.mxu0
    %v551 = vadd.f32 0.0, %v550
    %v552 = vpop.f32.mrf.mxu0
    %553 = vdwg.mxu0
    %v554 = vmul.f32 %v532, %v509
    %v555 = vmul.f32 %v551, %v510
    %v556 = vpack.c.bf16 %v555, %v554
    %v557 = vld [vmem:[#allocation10] sm:$0xf]
    %v558 = vld [vmem:[#allocation10 + $0x4] sm:$0xf]
    %v559 = vld [vmem:[#allocation10 + $0x8] sm:$0xf]
    %v560 = vld [vmem:[#allocation10 + $0xc] sm:$0xf]
    %v561 = vld [vmem:[#allocation10 + $0x10] sm:$0xf]
    %v562 = vld [vmem:[#allocation10 + $0x14] sm:$0xf]
    %v563 = vld [vmem:[#allocation10 + $0x18] sm:$0xf]
    %v564 = vld [vmem:[#allocation10 + $0x1c] sm:$0xf]
    %v565 = vld [vmem:[#allocation10 + $0x20] sm:$0xf]
    %v566 = vld [vmem:[#allocation10 + $0x24] sm:$0xf]
    %v567 = vld [vmem:[#allocation10 + $0x28] sm:$0xf]
    %v568 = vld [vmem:[#allocation10 + $0x2c] sm:$0xf]
    %v569 = vld [vmem:[#allocation10 + $0x30] sm:$0xf]
    %v570 = vld [vmem:[#allocation10 + $0x34] sm:$0xf]
    %v571 = vld [vmem:[#allocation10 + $0x38] sm:$0xf]
    %v572 = vld [vmem:[#allocation10 + $0x3c] sm:$0xf]
    %v589 = vunpack.c.l.b16 %v557
    %v590 = vunpack.c.l.b16 %v558
    %v591 = vunpack.c.l.b16 %v559
    %v592 = vunpack.c.l.b16 %v560
    %v593 = vunpack.c.l.b16 %v561
    %v594 = vunpack.c.l.b16 %v562
    %v595 = vunpack.c.l.b16 %v563
    %v596 = vunpack.c.l.b16 %v564
    %v597 = vunpack.c.l.b16 %v565
    %v598 = vunpack.c.l.b16 %v566
    %v599 = vunpack.c.l.b16 %v567
    %v600 = vunpack.c.l.b16 %v568
    %v601 = vunpack.c.l.b16 %v569
    %v602 = vunpack.c.l.b16 %v570
    %v603 = vunpack.c.l.b16 %v571
    %v604 = vunpack.c.l.b16 %v572
    %v605 = vpack.c.b16 %v590, %v589
    %v606 = vpack.c.b16 %v592, %v591
    %v607 = vpack.c.b16 %v594, %v593
    %v608 = vpack.c.b16 %v596, %v595
    %v609 = vpack.c.b16 %v598, %v597
    %v610 = vpack.c.b16 %v600, %v599
    %v611 = vpack.c.b16 %v602, %v601
    %v612 = vpack.c.b16 %v604, %v603
    %621 = vmatpush.bf16.msra.mxu0 %v612
    %622 = vmatpush.bf16.msra.mxu0 %v611
    %623 = vmatpush.bf16.msra.mxu0 %v610
    %624 = vmatpush.bf16.msra.mxu0 %v609
    %625 = vmatpush.bf16.msra.mxu0 %v608
    %626 = vmatpush.bf16.msra.mxu0 %v607
    %627 = vmatpush.bf16.msra.mxu0 %v606
    %628 = vmatpush.bf16.msra.mxu0 %v605
    %629 = vmatmul.bf16.gmra.mxu0 %v556
    %v630 = vpop.f32.mrf.mxu0
    %v631 = vadd.f32 0.0, %v630
    %v632 = vpop.f32.mrf.mxu0
    %v633 = vadd.f32 0.0, %v632
    %634 = vdwg.mxu0
    %v635 = vadd.f32 %v208, %v631
    %v636 = vadd.f32 %v209, %v633
    %v637 = vld [vmem:[%s8] sm:$0x1]
    %v638 = vld [vmem:[%s9] sm:$0x1]
    %639 = vadd.xlane.f32.xlu0 %v635
    %v640 = vpop.xlane.xlu0 %639
    %641 = vadd.xlane.f32.xlu0 %v636
    %v642 = vpop.xlane.xlu0 %641
    %v643 = vmul.f32 %v640, 0.03125
    %v644 = vmul.f32 %v642, 0.03125
    %v645 = vsub.f32 %v635, %v643
    %v646 = vsub.f32 %v636, %v644
    %v647 = vmul.f32 %v645, %v645
    %v648 = vmul.f32 %v646, %v646
    %649 = vadd.xlane.f32.xlu0 %v647
    %v650 = vpop.xlane.xlu0 %649
    %651 = vadd.xlane.f32.xlu0 %v648
    %v652 = vpop.xlane.xlu0 %651
    %v653 = vmul.f32 %v643, 96.0
    %v654 = vmul.f32 %v644, 96.0
    %v655 = vmul.f32 %v653, %v643
    %v656 = vmul.f32 %v654, %v644
    %v657 = vsub.f32 %v650, %v655
    %v658 = vsub.f32 %v652, %v656
    %v659 = vmul.f32 %v657, 0.03125
    %v660 = vmul.f32 %v658, 0.03125
    %v661 = vadd.f32 %v659, 1e-05
    %v662 = vadd.f32 %v660, 1e-05
    %v663 = vrsqrt.pop %v661
    %v664 = vmul.f32 %v663, %v661
    %v665 = vmul.f32 %v664, %v663
    %v666 = vmul.f32 0.5, %v665
    %v667 = vsub.f32 1.5, %v666
    %v668 = vmul.f32 %v663, %v667
    %vm669 = vweird.f32 %v661
    %vm670 = vweird.f32 %v663
    %vm671 = vmor %vm669, %vm670
    %v672 = vsel %vm671, %v663, %v668
    %v673 = vrsqrt.pop %v662
    %v674 = vmul.f32 %v673, %v662
    %v675 = vmul.f32 %v674, %v673
    %v676 = vmul.f32 0.5, %v675
    %v677 = vsub.f32 1.5, %v676
    %v678 = vmul.f32 %v673, %v677
    %vm679 = vweird.f32 %v662
    %vm680 = vweird.f32 %v673
    %vm681 = vmor %vm679, %vm680
    %v682 = vsel %vm681, %v673, %v678
    %v683 = vmul.f32 %v645, %v672
    %v684 = vmul.f32 %v646, %v682
    %v686 = vperm.slane %v637, 0
    %v688 = vmul.f32 %v683, %v686
    %v689 = vmul.f32 %v684, %v686
    %v691 = vperm.slane %v638, 0
    %v693 = vadd.f32 %v688, %v691
    %v694 = vadd.f32 %v689, %v691
    %v695 = vpack.c.bf16 %v694, %v693
    %v696 = vld [vmem:[#allocation12] sm:$0xf]
    %v697 = vld [vmem:[#allocation12 + $0x4] sm:$0xf]
    %v698 = vld [vmem:[#allocation12 + $0x8] sm:$0xf]
    %v699 = vld [vmem:[#allocation12 + $0xc] sm:$0xf]
    %v700 = vld [vmem:[#allocation12 + $0x10] sm:$0xf]
    %v701 = vld [vmem:[#allocation12 + $0x14] sm:$0xf]
    %v702 = vld [vmem:[#allocation12 + $0x18] sm:$0xf]
    %v703 = vld [vmem:[#allocation12 + $0x1c] sm:$0xf]
    %v704 = vld [vmem:[#allocation12 + $0x20] sm:$0xf]
    %v705 = vld [vmem:[#allocation12 + $0x24] sm:$0xf]
    %v706 = vld [vmem:[#allocation12 + $0x28] sm:$0xf]
    %v707 = vld [vmem:[#allocation12 + $0x2c] sm:$0xf]
    %v708 = vld [vmem:[#allocation12 + $0x30] sm:$0xf]
    %v709 = vld [vmem:[#allocation12 + $0x34] sm:$0xf]
    %v710 = vld [vmem:[#allocation12 + $0x38] sm:$0xf]
    %v711 = vld [vmem:[#allocation12 + $0x3c] sm:$0xf]
    %v712 = vld [vmem:[%s13] sm:$0x1]
    %v714 = vperm.slane %v712, 0
    %v732 = vunpack.c.l.b16 %v696
    %v733 = vunpack.c.l.b16 %v697
    %v734 = vunpack.c.l.b16 %v698
    %v735 = vunpack.c.l.b16 %v699
    %v736 = vunpack.c.l.b16 %v700
    %v737 = vunpack.c.l.b16 %v701
    %v738 = vunpack.c.l.b16 %v702
    %v739 = vunpack.c.l.b16 %v703
    %v740 = vunpack.c.l.b16 %v704
    %v741 = vunpack.c.l.b16 %v705
    %v742 = vunpack.c.l.b16 %v706
    %v743 = vunpack.c.l.b16 %v707
    %v744 = vunpack.c.l.b16 %v708
    %v745 = vunpack.c.l.b16 %v709
    %v746 = vunpack.c.l.b16 %v710
    %v747 = vunpack.c.l.b16 %v711
    %v748 = vpack.c.b16 %v733, %v732
    %v749 = vpack.c.b16 %v735, %v734
    %v750 = vpack.c.b16 %v737, %v736
    %v751 = vpack.c.b16 %v739, %v738
    %v752 = vpack.c.b16 %v741, %v740
    %v753 = vpack.c.b16 %v743, %v742
    %v754 = vpack.c.b16 %v745, %v744
    %v755 = vpack.c.b16 %v747, %v746
    %764 = vmatpush.bf16.msra.mxu0 %v755
    %765 = vmatpush.bf16.msra.mxu0 %v754
    %766 = vmatpush.bf16.msra.mxu0 %v753
    %767 = vmatpush.bf16.msra.mxu0 %v752
    %768 = vmatpush.bf16.msra.mxu0 %v751
    %769 = vmatpush.bf16.msra.mxu0 %v750
    %770 = vmatpush.bf16.msra.mxu0 %v749
    %771 = vmatpush.bf16.msra.mxu0 %v748
    %772 = vmatmul.bf16.gmra.mxu0 %v695
    %v773 = vpop.f32.mrf.mxu0
    %v774 = vadd.f32 %v714, %v773
    %v775 = vpop.f32.mrf.mxu0
    %v776 = vadd.f32 %v714, %v775
    %777 = vdwg.mxu0
    %v778 = vmax.f32 %v774, 0.0
    %v779 = vmax.f32 %v776, 0.0
    %v780 = vpack.c.bf16 %v779, %v778
    %v781 = vld [vmem:[#allocation13] sm:$0xf]
    %v782 = vld [vmem:[#allocation13 + $0x4] sm:$0xf]
    %v783 = vld [vmem:[#allocation13 + $0x8] sm:$0xf]
    %v784 = vld [vmem:[#allocation13 + $0xc] sm:$0xf]
    %v785 = vld [vmem:[#allocation13 + $0x10] sm:$0xf]
    %v786 = vld [vmem:[#allocation13 + $0x14] sm:$0xf]
    %v787 = vld [vmem:[#allocation13 + $0x18] sm:$0xf]
    %v788 = vld [vmem:[#allocation13 + $0x1c] sm:$0xf]
    %v789 = vld [vmem:[#allocation13 + $0x20] sm:$0xf]
    %v790 = vld [vmem:[#allocation13 + $0x24] sm:$0xf]
    %v791 = vld [vmem:[#allocation13 + $0x28] sm:$0xf]
    %v792 = vld [vmem:[#allocation13 + $0x2c] sm:$0xf]
    %v793 = vld [vmem:[#allocation13 + $0x30] sm:$0xf]
    %v794 = vld [vmem:[#allocation13 + $0x34] sm:$0xf]
    %v795 = vld [vmem:[#allocation13 + $0x38] sm:$0xf]
    %v796 = vld [vmem:[#allocation13 + $0x3c] sm:$0xf]
    %v797 = vld [vmem:[%s15] sm:$0x1]
    %v799 = vperm.slane %v797, 0
    %v817 = vunpack.c.l.b16 %v781
    %v818 = vunpack.c.l.b16 %v782
    %v819 = vunpack.c.l.b16 %v783
    %v820 = vunpack.c.l.b16 %v784
    %v821 = vunpack.c.l.b16 %v785
    %v822 = vunpack.c.l.b16 %v786
    %v823 = vunpack.c.l.b16 %v787
    %v824 = vunpack.c.l.b16 %v788
    %v825 = vunpack.c.l.b16 %v789
    %v826 = vunpack.c.l.b16 %v790
    %v827 = vunpack.c.l.b16 %v791
    %v828 = vunpack.c.l.b16 %v792
    %v829 = vunpack.c.l.b16 %v793
    %v830 = vunpack.c.l.b16 %v794
    %v831 = vunpack.c.l.b16 %v795
    %v832 = vunpack.c.l.b16 %v796
    %v833 = vpack.c.b16 %v818, %v817
    %v834 = vpack.c.b16 %v820, %v819
    %v835 = vpack.c.b16 %v822, %v821
    %v836 = vpack.c.b16 %v824, %v823
    %v837 = vpack.c.b16 %v826, %v825
    %v838 = vpack.c.b16 %v828, %v827
    %v839 = vpack.c.b16 %v830, %v829
    %v840 = vpack.c.b16 %v832, %v831
    %849 = vmatpush.bf16.msra.mxu0 %v840
    %850 = vmatpush.bf16.msra.mxu0 %v839
    %851 = vmatpush.bf16.msra.mxu0 %v838
    %852 = vmatpush.bf16.msra.mxu0 %v837
    %853 = vmatpush.bf16.msra.mxu0 %v836
    %854 = vmatpush.bf16.msra.mxu0 %v835
    %855 = vmatpush.bf16.msra.mxu0 %v834
    %856 = vmatpush.bf16.msra.mxu0 %v833
    %857 = vmatmul.bf16.gmra.mxu0 %v780
    %v858 = vpop.f32.mrf.mxu0
    %v859 = vadd.f32 %v799, %v858
    %v860 = vpop.f32.mrf.mxu0
    %v861 = vadd.f32 %v799, %v860
    %862 = vdwg.mxu0
    %v863 = vadd.f32 %v693, %v859
    %v864 = vadd.f32 %v694, %v861
    %v865 = vld [vmem:[%s10] sm:$0x1]
    %v866 = vld [vmem:[%s11] sm:$0x1]
    %867 = vadd.xlane.f32.xlu0 %v863
    %v868 = vpop.xlane.xlu0 %867
    %869 = vadd.xlane.f32.xlu0 %v864
    %v870 = vpop.xlane.xlu0 %869
    %v871 = vmul.f32 %v868, 0.03125
    %v872 = vmul.f32 %v870, 0.03125
    %v873 = vsub.f32 %v863, %v871
    %v874 = vsub.f32 %v864, %v872
    %v875 = vmul.f32 %v873, %v873
    %v876 = vmul.f32 %v874, %v874
    %877 = vadd.xlane.f32.xlu0 %v875
    %v878 = vpop.xlane.xlu0 %877
    %879 = vadd.xlane.f32.xlu0 %v876
    %v880 = vpop.xlane.xlu0 %879
    %v881 = vmul.f32 %v871, 96.0
    %v882 = vmul.f32 %v872, 96.0
    %v883 = vmul.f32 %v881, %v871
    %v884 = vmul.f32 %v882, %v872
    %v885 = vsub.f32 %v878, %v883
    %v886 = vsub.f32 %v880, %v884
    %v887 = vmul.f32 %v885, 0.03125
    %v888 = vmul.f32 %v886, 0.03125
    %v889 = vadd.f32 %v887, 1e-05
    %v890 = vadd.f32 %v888, 1e-05
    %v891 = vrsqrt.pop %v889
    %v892 = vmul.f32 %v891, %v889
    %v893 = vmul.f32 %v892, %v891
    %v894 = vmul.f32 0.5, %v893
    %v895 = vsub.f32 1.5, %v894
    %v896 = vmul.f32 %v891, %v895
    %vm897 = vweird.f32 %v889
    %vm898 = vweird.f32 %v891
    %vm899 = vmor %vm897, %vm898
    %v900 = vsel %vm899, %v891, %v896
    %v901 = vrsqrt.pop %v890
    %v902 = vmul.f32 %v901, %v890
    %v903 = vmul.f32 %v902, %v901
    %v904 = vmul.f32 0.5, %v903
    %v905 = vsub.f32 1.5, %v904
    %v906 = vmul.f32 %v901, %v905
    %vm907 = vweird.f32 %v890
    %vm908 = vweird.f32 %v901
    %vm909 = vmor %vm907, %vm908
    %v910 = vsel %vm909, %v901, %v906
    %v911 = vmul.f32 %v873, %v900
    %v912 = vmul.f32 %v874, %v910
    %v914 = vperm.slane %v865, 0
    %v916 = vmul.f32 %v911, %v914
    %v917 = vmul.f32 %v912, %v914
    %v919 = vperm.slane %v866, 0
    %v921 = vadd.f32 %v916, %v919
    %v922 = vadd.f32 %v917, %v919
    %v923 = vpack.c.bf16 %v922, %v921
    %v924 = vld [vmem:[#allocation15] sm:$0xf]
    %v925 = vld [vmem:[#allocation15 + $0x4] sm:$0xf]
    %v926 = vld [vmem:[#allocation15 + $0x8] sm:$0xf]
    %v927 = vld [vmem:[#allocation15 + $0xc] sm:$0xf]
    %v928 = vld [vmem:[#allocation15 + $0x10] sm:$0xf]
    %v929 = vld [vmem:[#allocation15 + $0x14] sm:$0xf]
    %v930 = vld [vmem:[#allocation15 + $0x18] sm:$0xf]
    %v931 = vld [vmem:[#allocation15 + $0x1c] sm:$0xf]
    %v932 = vld [vmem:[#allocation15 + $0x20] sm:$0xf]
    %v933 = vld [vmem:[#allocation15 + $0x24] sm:$0xf]
    %v934 = vld [vmem:[#allocation15 + $0x28] sm:$0xf]
    %v935 = vld [vmem:[#allocation15 + $0x2c] sm:$0xf]
    %v936 = vld [vmem:[#allocation15 + $0x30] sm:$0xf]
    %v937 = vld [vmem:[#allocation15 + $0x34] sm:$0xf]
    %v938 = vld [vmem:[#allocation15 + $0x38] sm:$0xf]
    %v939 = vld [vmem:[#allocation15 + $0x3c] sm:$0xf]
    %v940 = vld [vmem:[%s17] sm:$0x1]
    %v942 = vperm.slane %v940, 0
    %v960 = vunpack.c.l.b16 %v924
    %v961 = vunpack.c.l.b16 %v925
    %v962 = vunpack.c.l.b16 %v926
    %v963 = vunpack.c.l.b16 %v927
    %v964 = vunpack.c.l.b16 %v928
    %v965 = vunpack.c.l.b16 %v929
    %v966 = vunpack.c.l.b16 %v930
    %v967 = vunpack.c.l.b16 %v931
    %v968 = vunpack.c.l.b16 %v932
    %v969 = vunpack.c.l.b16 %v933
    %v970 = vunpack.c.l.b16 %v934
    %v971 = vunpack.c.l.b16 %v935
    %v972 = vunpack.c.l.b16 %v936
    %v973 = vunpack.c.l.b16 %v937
    %v974 = vunpack.c.l.b16 %v938
    %v975 = vunpack.c.l.b16 %v939
    %v976 = vpack.c.b16 %v961, %v960
    %v977 = vpack.c.b16 %v963, %v962
    %v978 = vpack.c.b16 %v965, %v964
    %v979 = vpack.c.b16 %v967, %v966
    %v980 = vpack.c.b16 %v969, %v968
    %v981 = vpack.c.b16 %v971, %v970
    %v982 = vpack.c.b16 %v973, %v972
    %v983 = vpack.c.b16 %v975, %v974
    %992 = vmatpush.bf16.msra.mxu0 %v983
    %993 = vmatpush.bf16.msra.mxu0 %v982
    %994 = vmatpush.bf16.msra.mxu0 %v981
    %995 = vmatpush.bf16.msra.mxu0 %v980
    %996 = vmatpush.bf16.msra.mxu0 %v979
    %997 = vmatpush.bf16.msra.mxu0 %v978
    %998 = vmatpush.bf16.msra.mxu0 %v977
    %999 = vmatpush.bf16.msra.mxu0 %v976
    %1000 = vmatmul.bf16.gmra.mxu0 %v923
    %v1001 = vpop.f32.mrf.mxu0
    %v1002 = vadd.f32 %v942, %v1001
    %v1003 = vpop.f32.mrf.mxu0
    %v1004 = vadd.f32 %v942, %v1003
    %1005 = vdwg.mxu0
    %v1006 = vmax.f32 %v1002, 0.0
    %v1007 = vmax.f32 %v1004, 0.0
    %v1008 = vld [vmem:[%s18] sm:$0x1]
    %v1010 = vperm.slane %v1008, 0
    %v1012 = vmul.f32 %v1006, %v1010
    %v1013 = vmul.f32 %v1007, %v1010
    %vm1014 = vcmask 523264
    %v1015 = vsel %vm1014, %v1012, 0.0
    %1016 = vadd.xlane.f32.xlu0 %v1015
    %v1017 = vpop.xlane.xlu0 %1016
    %v1018 = vsel %vm1014, %v1013, 0.0
    %1019 = vadd.xlane.f32.xlu0 %v1018
    %v1020 = vpop.xlane.xlu0 %1019
    %v1021 = vld [vmem:[%s19] sm:$0x1]
    %s1022 = vtos %v1021
    %v1023 = vstv %s1022
    %v1024 = vadd.f32 %v1017, %v1023
    %v1025 = vadd.f32 %v1020, %v1023
    %1028 = vrot.lane.b32.xlu0 %v1012, 64
    %v1029 = vpop.permute.xlu0 %1028
    %1030 = vrot.lane.b32.xlu0 %v1013, 64
    %v1031 = vpop.permute.xlu0 %1030
    %v1034 = vsel %vm1014, %v1029, 0.0
    %1035 = vadd.xlane.f32.xlu0 %v1034
    %v1036 = vpop.xlane.xlu0 %1035
    %v1037 = vsel %vm1014, %v1031, 0.0
    %1038 = vadd.xlane.f32.xlu0 %v1037
    %v1039 = vpop.xlane.xlu0 %1038
    %1041 = vrot.lane.b32.xlu0 %v1021, 127
    %v1042 = vpop.permute.xlu0 %1041
    %s1044 = vtos %v1042
    %v1045 = vstv %s1044
    %v1046 = vadd.f32 %v1036, %v1045
    %v1047 = vadd.f32 %v1039, %v1045
    %v1048 = vperm.slane %v210, 3
    %v1049 = vlaneseq
    %v1050 = vshrl.u32 %v1049, 7
    %1052 = vset.pattern.permute.xlu0 %v1050
    %1053 = vperm.xlu0 %1052, %v1048
    %v1054 = vpop.permute.xlu0 %1053
    %v1055 = vperm.slane %v211, 3
    %v1056 = vlaneseq
    %v1057 = vshrl.u32 %v1056, 7
    %1059 = vset.pattern.permute.xlu0 %v1057
    %1060 = vperm.xlu0 %1059, %v1055
    %v1061 = vpop.permute.xlu0 %1060
    %v1062 = vmul.f32 %v921, %v1054
    %v1063 = vmul.f32 %v922, %v1061
    %v1064 = vrot.slane %v1062, 4
    %v1065 = vadd.f32 %v1062, %v1064
    %v1066 = vrot.slane %v1065, 2
    %v1067 = vadd.f32 %v1065, %v1066
    %v1068 = vrot.slane %v1067, 1
    %v1069 = vadd.f32 %v1067, %v1068
    %v1070 = vrot.slane %v1063, 4
    %v1071 = vadd.f32 %v1063, %v1070
    %v1072 = vrot.slane %v1071, 2
    %v1073 = vadd.f32 %v1071, %v1072
    %v1074 = vrot.slane %v1073, 1
    %v1075 = vadd.f32 %v1073, %v1074
    %v1076 = vpack.c.bf16 %v1069, %v1069
    %v1077 = vpack.c.bf16 %v1075, %v1075
    %v1078 = vld [vmem:[#allocation16] sm:$0xf]
    %v1079 = vld [vmem:[#allocation16 + $0x4] sm:$0xf]
    %v1080 = vld [vmem:[#allocation16 + $0x8] sm:$0xf]
    %v1081 = vld [vmem:[#allocation16 + $0xc] sm:$0xf]
    %v1082 = vld [vmem:[#allocation16 + $0x10] sm:$0xf]
    %v1083 = vld [vmem:[#allocation16 + $0x14] sm:$0xf]
    %v1084 = vld [vmem:[#allocation16 + $0x18] sm:$0xf]
    %v1085 = vld [vmem:[#allocation16 + $0x1c] sm:$0xf]
    %v1086 = vld [vmem:[#allocation16 + $0x20] sm:$0xf]
    %v1087 = vld [vmem:[#allocation16 + $0x24] sm:$0xf]
    %v1088 = vld [vmem:[#allocation16 + $0x28] sm:$0xf]
    %v1089 = vld [vmem:[#allocation16 + $0x2c] sm:$0xf]
    %v1090 = vld [vmem:[#allocation16 + $0x30] sm:$0xf]
    %v1091 = vld [vmem:[#allocation16 + $0x34] sm:$0xf]
    %v1092 = vld [vmem:[#allocation16 + $0x38] sm:$0xf]
    %v1093 = vld [vmem:[#allocation16 + $0x3c] sm:$0xf]
    %v1094 = vld [vmem:[%s21] sm:$0x1]
    %v1096 = vperm.slane %v1094, 0
    %v1100 = vunpack.c.l.b16 %v1076
    %v1101 = vunpack.c.l.b16 %v1077
    %vm1102 = vcmask 1041409
    %v1103 = vsel %vm1102, %v1101, %v1100
    %v1104 = vpack.c.b16 %v1103, %v1103
    %v1122 = vunpack.c.l.b16 %v1078
    %v1123 = vunpack.c.l.b16 %v1079
    %v1124 = vunpack.c.l.b16 %v1080
    %v1125 = vunpack.c.l.b16 %v1081
    %v1126 = vunpack.c.l.b16 %v1082
    %v1127 = vunpack.c.l.b16 %v1083
    %v1128 = vunpack.c.l.b16 %v1084
    %v1129 = vunpack.c.l.b16 %v1085
    %v1130 = vunpack.c.l.b16 %v1086
    %v1131 = vunpack.c.l.b16 %v1087
    %v1132 = vunpack.c.l.b16 %v1088
    %v1133 = vunpack.c.l.b16 %v1089
    %v1134 = vunpack.c.l.b16 %v1090
    %v1135 = vunpack.c.l.b16 %v1091
    %v1136 = vunpack.c.l.b16 %v1092
    %v1137 = vunpack.c.l.b16 %v1093
    %v1138 = vpack.c.b16 %v1123, %v1122
    %v1139 = vpack.c.b16 %v1125, %v1124
    %v1140 = vpack.c.b16 %v1127, %v1126
    %v1141 = vpack.c.b16 %v1129, %v1128
    %v1142 = vpack.c.b16 %v1131, %v1130
    %v1143 = vpack.c.b16 %v1133, %v1132
    %v1144 = vpack.c.b16 %v1135, %v1134
    %v1145 = vpack.c.b16 %v1137, %v1136
    %1154 = vmatpush.bf16.msra.mxu0 %v1145
    %1155 = vmatpush.bf16.msra.mxu0 %v1144
    %1156 = vmatpush.bf16.msra.mxu0 %v1143
    %1157 = vmatpush.bf16.msra.mxu0 %v1142
    %1158 = vmatpush.bf16.msra.mxu0 %v1141
    %1159 = vmatpush.bf16.msra.mxu0 %v1140
    %1160 = vmatpush.bf16.msra.mxu0 %v1139
    %1161 = vmatpush.bf16.msra.mxu0 %v1138
    %1162 = vmatmul.bf16.gmra.mxu0 %v1104
    %v1163 = vpop.f32.mrf.mxu0
    %v1164 = vadd.f32 %v1096, %v1163
    %v1165 = vpop.f32.mrf.mxu0
    %1166 = vdwg.mxu0
    %v1168 = vrot.slane %v1164, 1
    %v1169 = vperm.slane %v1164, 0
    %v1170 = vperm.slane %v1168, 0
    %v1173 = vmul.f32 %v921, %v1169
    %v1174 = vmul.f32 %v922, %v1170
    %1175 = vadd.xlane.f32.xlu0 %v1173
    %v1176 = vpop.xlane.xlu0 %1175
    %1177 = vadd.xlane.f32.xlu0 %v1174
    %v1178 = vpop.xlane.xlu0 %1177
    %v1179 = vld [vmem:[%s22] sm:$0x1]
    %v1181 = vperm.slane %v1179, 0
    %v1183 = vmul.f32 %v1069, %v1181
    %v1184 = vmul.f32 %v1075, %v1181
    %v1187 = vrot.slane %v1184, 7
    %v1188 = vsel %vm1102, %v1187, %v1183
    %vm1190 = vcmask 1041408
    %v1191 = vsel %vm1190, %v1188, 0.0
    %1192 = vadd.xlane.f32.xlu0 %v1191
    %v1193 = vpop.xlane.xlu0 %1192
    %v1195 = vperm.slane %v1193, 0
    %v1196 = vperm.slane %v1193, 1
    %v1199 = vadd.f32 %v1176, %v1195
    %v1200 = vadd.f32 %v1178, %v1196
    %v1201 = vld [vmem:[#allocation3] sm:$0x1]
    %v1203 = vperm.slane %v1201, 0
    %1204 = vset.pattern.permute.xlu0 0
    %1205 = vperm.xlu0 %1204, %v1203
    %v1206 = vpop.permute.xlu0 %1205
    %v1208 = vadd.f32 %v1199, %v1206
    %v1209 = vadd.f32 %v1200, %v1206
    %vm1210 = vcmp.gt.f32.partialorder %v210, 0.5
    %vm1211 = vcmp.gt.f32.partialorder %v211, 0.5
    %v1214 = vlaneseq
    %v1215 = vand.u32 %v1214, 127
    %v1216 = vperm.slane %v1024, %v1215
    %v1217 = vperm.slane %v1025, %v1215
    %v1220 = vsel %vm1210, %v1216, -1e+09
    %v1221 = vsel %vm1211, %v1217, -1e+09
    %v1224 = vrot.slane %v1221, 7
    %vm1225 = vcmask 1042434
    %v1226 = vsel %vm1225, %v1224, %v1220
    %vm1228 = vcmask 59393
    %v1229 = vsel %vm1228, %v1226, -inf
    %1230 = vmax.xlane.f32.xlu0 %v1229
    %v1231 = vpop.xlane.xlu0 %1230
    %v1233 = vrot.slane %v1231, 1
    %v1236 = vsub.f32 %v1220, %v1231
    %v1237 = vsub.f32 %v1221, %v1233
    %v1238 = vmul.f32 %v1236, 1.442695
    %v1239 = vpow.pop %v1238
    %v1240 = vmul.f32 %v1237, 1.442695
    %v1241 = vpow.pop %v1240
    %v1244 = vrot.slane %v1241, 7
    %v1245 = vsel %vm1225, %v1244, %v1239
    %v1247 = vsel %vm1228, %v1245, 0.0
    %1248 = vadd.xlane.f32.xlu0 %v1247
    %v1249 = vpop.xlane.xlu0 %1248
    %v1250 = vlog2.pop %v1249
    %v1251 = vmul.f32 %v1250, 0.6931472
    %v1252 = vadd.f32 %v1251, %v1231
    %v1254 = vrot.slane %v1252, 1
    %v1257 = vsub.f32 %v1220, %v1252
    %v1258 = vsub.f32 %v1221, %v1254
    %1261 = vset.pattern.permute.xlu0 0
    %1262 = vperm.xlu0 %1261, %v1208
    %v1263 = vpop.permute.xlu0 %1262
    %1264 = vset.pattern.permute.xlu0 0
    %1265 = vperm.xlu0 %1264, %v1209
    %v1266 = vpop.permute.xlu0 %1265
    %v1267 = vperm.slane %v1263, %v1215
    %v1268 = vperm.slane %v1266, %v1215
    %v1271 = vsel %vm1210, %v1267, -1e+09
    %v1272 = vsel %vm1211, %v1268, -1e+09
    %v1275 = vrot.slane %v1272, 7
    %vm1276 = vcmask 1045509
    %v1277 = vsel %vm1276, %v1275, %v1271
    %vm1279 = vcmask 62468
    %v1280 = vsel %vm1279, %v1277, -inf
    %1281 = vmax.xlane.f32.xlu0 %v1280
    %v1282 = vpop.xlane.xlu0 %1281
    %v1284 = vrot.slane %v1282, 1
    %v1287 = vsub.f32 %v1271, %v1282
    %v1288 = vsub.f32 %v1272, %v1284
    %v1289 = vmul.f32 %v1287, 1.442695
    %v1290 = vpow.pop %v1289
    %v1291 = vmul.f32 %v1288, 1.442695
    %v1292 = vpow.pop %v1291
    %v1295 = vrot.slane %v1292, 7
    %v1296 = vsel %vm1276, %v1295, %v1290
    %v1298 = vsel %vm1279, %v1296, 0.0
    %1299 = vadd.xlane.f32.xlu0 %v1298
    %v1300 = vpop.xlane.xlu0 %1299
    %v1301 = vlog2.pop %v1300
    %v1302 = vmul.f32 %v1301, 0.6931472
    %v1303 = vadd.f32 %v1302, %v1282
    %v1305 = vrot.slane %v1303, 1
    %v1308 = vsub.f32 %v1271, %v1303
    %v1309 = vsub.f32 %v1272, %v1305
    %v1312 = vperm.slane %v1046, %v1215
    %v1313 = vperm.slane %v1047, %v1215
    %v1316 = vsel %vm1210, %v1312, -1e+09
    %v1317 = vsel %vm1211, %v1313, -1e+09
    %v1320 = vrot.slane %v1308, 3
    %v1321 = vrot.slane %v1309, 3
    %v1324 = vrot.slane %v1316, 1
    %v1325 = vrot.slane %v1317, 1
    %v1328 = vrot.slane %v1258, 7
    %v1329 = vsel %vm1225, %v1328, %v1257
    %v1330 = vrot.slane %v1321, 7
    %v1331 = vsel %vm1225, %v1330, %v1320
    %v1332 = vrot.slane %v1325, 7
    %v1333 = vsel %vm1225, %v1332, %v1324
    %1337 = vst.msk [vmem:[#allocation18 - $0x1] sm:$0x6] %vm1228, %v1329
    %1338 = vst.msk [vmem:[#allocation18 + $0x1] sm:$0x6] %vm1228, %v1331
    %1339 = vst.msk [vmem:[#allocation18 + $0x3] sm:$0x6] %vm1228, %v1333
    // Predicated region
    $region130: #{tpu_custom_call.1} parent=1 // pred_check
      _
    $region131: #{tpu_custom_call.1} parent=1 // pred_check_branch
      %1341 = sbr.rel (0) target = $region133
    $region132: #{tpu_custom_call.1} parent=1 // pred_region
      %1343 = vsyncadd [#allocation6], 0
      %s1344 = sshll.u32 [#allocation18], 4
      %s1345 = int_to_ptr.vmem [resolvable:$true] %s1344
      %s1346 = sshll.u32 %s24, 4
      %s1347 = int_to_ptr.hbm [resolvable:$true] %s1346
      %1352 = dma.vmem_to_hbm [thread:$0]  %s1345, 96, %s1347, [#allocation6], 32, 32, 2
    $region133: #{tpu_custom_call.1} parent=1 // pred_fallthru
      _
    // Predicated region
    $region134: #{tpu_custom_call.1} parent=1 // pred_check
      _
    $region135: #{tpu_custom_call.1} parent=1 // pred_check_branch
      %1354 = sbr.rel (0) target = $region137
    $region136: #{tpu_custom_call.1} parent=1 // pred_region
      %1356 = dma.done [#allocation6], 96
    $region137: #{tpu_custom_call.1} parent=1 // pred_fallthru
      _
    %1357 = vsyncpa [#allocation5], 1
    %1358 = vsyncpa [#allocation8], 1
    %1359 = vsyncpa [#allocation11], 1
    %1360 = vsyncpa [#allocation14], 1
    %1361 = vsyncpa [#allocation17], 1
    %1362 = vsyncpa [#allocation6], 1

// kernel: tpu_custom_call.1
$region0: #{tpu_custom_call.1}
  #allocation0 [shape = 'u32[]', space=smem, size = 0x4, offset = 0x4, fixed_abs, tag = 'smem constant byte address 0x4 - core index']
  #allocation1 [shape = 'u32[72,128]{1,0:T(1,128)}', space=vmem, size = 0x9000, scoped, tag = 'internal scratch']
  #allocation2 [shape = 'f32[1,1]{1,0:T(1,128)S(1)}', space=vmem, size = 0x200, scoped, tag = 'scoped memory for tpu_custom_call.1']
  #allocation3 [shape = 'f32[1,1]{1,0:T(1,128)S(1)}', space=vmem, size = 0x200, scoped, tag = 'scoped memory for tpu_custom_call.1']
  %s0 = inlined_call_operand.vmem [shape: f32[2,8,128], index: 0, kind: input, shape index: {}]
  %s1 = inlined_call_operand.vmem [shape: bf16[2,8,8], index: 1, kind: input, shape index: {}]
  %s2 = inlined_call_operand.vmem [shape: f32[2,5,8], index: 2, kind: input, shape index: {}]
  %s3 = inlined_call_operand.hbm [shape: bf16[128,128], index: 3, kind: input, shape index: {}]
  %s4 = inlined_call_operand.hbm [shape: bf16[128,128], index: 4, kind: input, shape index: {}]
  %s5 = inlined_call_operand.hbm [shape: bf16[128,128], index: 5, kind: input, shape index: {}]
  %s6 = inlined_call_operand.hbm [shape: bf16[128,128], index: 6, kind: input, shape index: {}]
  %s7 = inlined_call_operand.<no memory space> [shape: f32[1,1], index: 7, kind: input, shape index: {}]
  %s8 = inlined_call_operand.vmem [shape: f32[1,128], index: 8, kind: input, shape index: {}]
  %s9 = inlined_call_operand.vmem [shape: f32[1,128], index: 9, kind: input, shape index: {}]
  %s10 = inlined_call_operand.vmem [shape: f32[1,128], index: 10, kind: input, shape index: {}]
  %s11 = inlined_call_operand.vmem [shape: f32[1,128], index: 11, kind: input, shape index: {}]
  %s12 = inlined_call_operand.hbm [shape: bf16[128,128], index: 12, kind: input, shape index: {}]
  %s13 = inlined_call_operand.vmem [shape: f32[1,128], index: 13, kind: input, shape index: {}]
  %s14 = inlined_call_operand.hbm [shape: bf16[128,128], index: 14, kind: input, shape index: {}]
  %s15 = inlined_call_operand.vmem [shape: f32[1,128], index: 15, kind: input, shape index: {}]
  %s16 = inlined_call_operand.hbm [shape: bf16[128,128], index: 16, kind: input, shape index: {}]
  %s17 = inlined_call_operand.vmem [shape: f32[1,128], index: 17, kind: input, shape index: {}]
  %s18 = inlined_call_operand.vmem [shape: f32[1,128], index: 18, kind: input, shape index: {}]
  %s19 = inlined_call_operand.vmem [shape: f32[1,2], index: 19, kind: input, shape index: {}]
  %s20 = inlined_call_operand.hbm [shape: bf16[128,128], index: 20, kind: input, shape index: {}]
  %s21 = inlined_call_operand.vmem [shape: f32[1,128], index: 21, kind: input, shape index: {}]
  %s22 = inlined_call_operand.vmem [shape: f32[1,128], index: 22, kind: input, shape index: {}]
  %s23 = inlined_call_operand.<no memory space> [shape: f32[1,1], index: 23, kind: input, shape index: {}]
  %s24 = inlined_call_operand.hbm [shape: f32[3,2,8], index: 24, kind: output, shape index: {}]
  %s25 = sld [smem:[#allocation0]]
  $region138: #{tpu_custom_call.1} parent=0
    _
  %s27 = ssub.s32 1, %s25
  %s28 = scalar_select 0, %s27, %s25
  %v29 = vstv %s7
  %30 = vst [vmem:[#allocation2] sm:$0x1] %v29
  %v31 = vstv %s23
  %32 = vst [vmem:[#allocation3] sm:$0x1] %v31
  $region1: #{tpu_custom_call.1} parent=0
    #allocation4 [shape = 'u8[32768]{0}', space=vmem, size = 0x8000, scoped, tag = 'input window, operand 3, single buffered']
    #allocation5 [shape = 's32[1]{0}', space=sflag, size = 0x4, scoped, tag = 'scoped memory for tpu_custom_call.1']
    #allocation6 [shape = 's32[1]{0}', space=sflag, size = 0x4, scoped, tag = 'scoped memory for tpu_custom_call.1']
    #allocation7 [shape = 'u8[32768]{0}', space=vmem, size = 0x8000, scoped, tag = 'input window, operand 4, single buffered']
    #allocation8 [shape = 's32[1]{0}', space=sflag, size = 0x4, scoped, tag = 'scoped memory for tpu_custom_call.1']
    #allocation9 [shape = 'u8[32768]{0}', space=vmem, size = 0x8000, scoped, tag = 'input window, operand 5, single buffered']
    #allocation10 [shape = 'u8[32768]{0}', space=vmem, size = 0x8000, scoped, tag = 'input window, operand 6, single buffered']
    #allocation11 [shape = 's32[1]{0}', space=sflag, size = 0x4, scoped, tag = 'scoped memory for tpu_custom_call.1']
    #allocation12 [shape = 'u8[32768]{0}', space=vmem, size = 0x8000, scoped, tag = 'input window, operand 12, single buffered']
    #allocation13 [shape = 'u8[32768]{0}', space=vmem, size = 0x8000, scoped, tag = 'input window, operand 14, single buffered']
    #allocation14 [shape = 's32[1]{0}', space=sflag, size = 0x4, scoped, tag = 'scoped memory for tpu_custom_call.1']
    #allocation15 [shape = 'u8[32768]{0}', space=vmem, size = 0x8000, scoped, tag = 'input window, operand 16, single buffered']
    #allocation16 [shape = 'u8[32768]{0}', space=vmem, size = 0x8000, scoped, tag = 'input window, operand 20, single buffered']
    #allocation17 [shape = 's32[1]{0}', space=sflag, size = 0x4, scoped, tag = 'scoped memory for tpu_custom_call.1']
    #allocation18 [shape = 'u8[3072]{0}', space=vmem, size = 0xc00, scoped, tag = 'output window, operand 0, single buffered']
    %33 = vsyncpa [#allocation5], 0
    %34 = vsyncpa [#allocation8], 0
    %35 = vsyncpa [#allocation11], 0
    %36 = vsyncpa [#allocation14], 0
    %37 = vsyncpa [#allocation17], 0
    %38 = vsyncpa [#allocation6], 0
    // Predicated region
    $region2: #{tpu_custom_call.1} parent=1 // pred_check
      _
    $region3: #{tpu_custom_call.1} parent=1 // pred_check_branch
      %40 = sbr.rel (0) target = $region5
    $region4: #{tpu_custom_call.1} parent=1 // pred_region
      _
    $region5: #{tpu_custom_call.1} parent=1 // pred_fallthru
      _
    // Predicated region
    $region6: #{tpu_custom_call.1} parent=1 // pred_check
      _
    $region7: #{tpu_custom_call.1} parent=1 // pred_check_branch
      %42 = sbr.rel (0) target = $region9
    $region8: #{tpu_custom_call.1} parent=1 // pred_region
      _
    $region9: #{tpu_custom_call.1} parent=1 // pred_fallthru
      _
    // Predicated region
    $region10: #{tpu_custom_call.1} parent=1 // pred_check
      _
    $region11: #{tpu_custom_call.1} parent=1 // pred_check_branch
      %44 = sbr.rel (0) target = $region13
    $region12: #{tpu_custom_call.1} parent=1 // pred_region
      _
    $region13: #{tpu_custom_call.1} parent=1 // pred_fallthru
      _
    // Predicated region
    $region14: #{tpu_custom_call.1} parent=1 // pred_check
      _
    $region15: #{tpu_custom_call.1} parent=1 // pred_check_branch
      %46 = sbr.rel (0) target = $region17
    $region16: #{tpu_custom_call.1} parent=1 // pred_region
      %48 = vsyncadd [#allocation5], 0
      %s49 = sshll.u32 %s3, 4
      %s50 = int_to_ptr.hbm [resolvable:$true] %s49
      %s51 = sshll.u32 [#allocation4], 4
      %s52 = int_to_ptr.vmem [resolvable:$true] %s51
      %57 = dma.hbm_to_vmem [thread:$0]  %s50, 1024, %s52, [#allocation5], 64, 64, 4
    $region17: #{tpu_custom_call.1} parent=1 // pred_fallthru
      _
    // Predicated region
    $region18: #{tpu_custom_call.1} parent=1 // pred_check
      _
    $region19: #{tpu_custom_call.1} parent=1 // pred_check_branch
      %59 = sbr.rel (0) target = $region21
    $region20: #{tpu_custom_call.1} parent=1 // pred_region
      %61 = vsyncadd [#allocation8], 0
      %s62 = sshll.u32 %s4, 4
      %s63 = int_to_ptr.hbm [resolvable:$true] %s62
      %s64 = sshll.u32 [#allocation7], 4
      %s65 = int_to_ptr.vmem [resolvable:$true] %s64
      %70 = dma.hbm_to_vmem [thread:$0]  %s63, 1024, %s65, [#allocation8], 64, 64, 4
    $region21: #{tpu_custom_call.1} parent=1 // pred_fallthru
      _
    // Predicated region
    $region22: #{tpu_custom_call.1} parent=1 // pred_check
      _
    $region23: #{tpu_custom_call.1} parent=1 // pred_check_branch
      %72 = sbr.rel (0) target = $region25
    $region24: #{tpu_custom_call.1} parent=1 // pred_region
      %74 = vsyncadd [#allocation8], 0
      %s75 = sshll.u32 %s5, 4
      %s76 = int_to_ptr.hbm [resolvable:$true] %s75
      %s77 = sshll.u32 [#allocation9], 4
      %s78 = int_to_ptr.vmem [resolvable:$true] %s77
      %83 = dma.hbm_to_vmem [thread:$0]  %s76, 1024, %s78, [#allocation8], 64, 64, 4
    $region25: #{tpu_custom_call.1} parent=1 // pred_fallthru
      _
    // Predicated region
    $region26: #{tpu_custom_call.1} parent=1 // pred_check
      _
    $region27: #{tpu_custom_call.1} parent=1 // pred_check_branch
      %85 = sbr.rel (0) target = $region29
    $region28: #{tpu_custom_call.1} parent=1 // pred_region
      %87 = vsyncadd [#allocation11], 0
      %s88 = sshll.u32 %s6, 4
      %s89 = int_to_ptr.hbm [resolvable:$true] %s88
      %s90 = sshll.u32 [#allocation10], 4
      %s91 = int_to_ptr.vmem [resolvable:$true] %s90
      %96 = dma.hbm_to_vmem [thread:$0]  %s89, 1024, %s91, [#allocation11], 64, 64, 4
    $region29: #{tpu_custom_call.1} parent=1 // pred_fallthru
      _
    // Predicated region
    $region30: #{tpu_custom_call.1} parent=1 // pred_check
      _
    $region31: #{tpu_custom_call.1} parent=1 // pred_check_branch
      %98 = sbr.rel (0) target = $region33
    $region32: #{tpu_custom_call.1} parent=1 // pred_region
      _
    $region33: #{tpu_custom_call.1} parent=1 // pred_fallthru
      _
    // Predicated region
    $region34: #{tpu_custom_call.1} parent=1 // pred_check
      _
    $region35: #{tpu_custom_call.1} parent=1 // pred_check_branch
      %100 = sbr.rel (0) target = $region37
    $region36: #{tpu_custom_call.1} parent=1 // pred_region
      _
    $region37: #{tpu_custom_call.1} parent=1 // pred_fallthru
      _
    // Predicated region
    $region38: #{tpu_custom_call.1} parent=1 // pred_check
      _
    $region39: #{tpu_custom_call.1} parent=1 // pred_check_branch
      %102 = sbr.rel (0) target = $region41
    $region40: #{tpu_custom_call.1} parent=1 // pred_region
      _
    $region41: #{tpu_custom_call.1} parent=1 // pred_fallthru
      _
    // Predicated region
    $region42: #{tpu_custom_call.1} parent=1 // pred_check
      _
    $region43: #{tpu_custom_call.1} parent=1 // pred_check_branch
      %104 = sbr.rel (0) target = $region45
    $region44: #{tpu_custom_call.1} parent=1 // pred_region
      _
    $region45: #{tpu_custom_call.1} parent=1 // pred_fallthru
      _
    // Predicated region
    $region46: #{tpu_custom_call.1} parent=1 // pred_check
      _
    $region47: #{tpu_custom_call.1} parent=1 // pred_check_branch
      %106 = sbr.rel (0) target = $region49
    $region48: #{tpu_custom_call.1} parent=1 // pred_region
      _
    $region49: #{tpu_custom_call.1} parent=1 // pred_fallthru
      _
    // Predicated region
    $region50: #{tpu_custom_call.1} parent=1 // pred_check
      _
    $region51: #{tpu_custom_call.1} parent=1 // pred_check_branch
      %108 = sbr.rel (0) target = $region53
    $region52: #{tpu_custom_call.1} parent=1 // pred_region
      %110 = vsyncadd [#allocation11], 0
      %s111 = sshll.u32 %s12, 4
      %s112 = int_to_ptr.hbm [resolvable:$true] %s111
      %s113 = sshll.u32 [#allocation12], 4
      %s114 = int_to_ptr.vmem [resolvable:$true] %s113
      %119 = dma.hbm_to_vmem [thread:$0]  %s112, 1024, %s114, [#allocation11], 64, 64, 4
    $region53: #{tpu_custom_call.1} parent=1 // pred_fallthru
      _
    // Predicated region
    $region54: #{tpu_custom_call.1} parent=1 // pred_check
      _
    $region55: #{tpu_custom_call.1} parent=1 // pred_check_branch
      %121 = sbr.rel (0) target = $region57
    $region56: #{tpu_custom_call.1} parent=1 // pred_region
      _
    $region57: #{tpu_custom_call.1} parent=1 // pred_fallthru
      _
    // Predicated region
    $region58: #{tpu_custom_call.1} parent=1 // pred_check
      _
    $region59: #{tpu_custom_call.1} parent=1 // pred_check_branch
      %123 = sbr.rel (0) target = $region61
    $region60: #{tpu_custom_call.1} parent=1 // pred_region
      %125 = vsyncadd [#allocation14], 0
      %s126 = sshll.u32 %s14, 4
      %s127 = int_to_ptr.hbm [resolvable:$true] %s126
      %s128 = sshll.u32 [#allocation13], 4
      %s129 = int_to_ptr.vmem [resolvable:$true] %s128
      %134 = dma.hbm_to_vmem [thread:$0]  %s127, 1024, %s129, [#allocation14], 64, 64, 4
    $region61: #{tpu_custom_call.1} parent=1 // pred_fallthru
      _
    // Predicated region
    $region62: #{tpu_custom_call.1} parent=1 // pred_check
      _
    $region63: #{tpu_custom_call.1} parent=1 // pred_check_branch
      %136 = sbr.rel (0) target = $region65
    $region64: #{tpu_custom_call.1} parent=1 // pred_region
      _
    $region65: #{tpu_custom_call.1} parent=1 // pred_fallthru
      _
    // Predicated region
    $region66: #{tpu_custom_call.1} parent=1 // pred_check
      _
    $region67: #{tpu_custom_call.1} parent=1 // pred_check_branch
      %138 = sbr.rel (0) target = $region69
    $region68: #{tpu_custom_call.1} parent=1 // pred_region
      %140 = vsyncadd [#allocation14], 0
      %s141 = sshll.u32 %s16, 4
      %s142 = int_to_ptr.hbm [resolvable:$true] %s141
      %s143 = sshll.u32 [#allocation15], 4
      %s144 = int_to_ptr.vmem [resolvable:$true] %s143
      %149 = dma.hbm_to_vmem [thread:$0]  %s142, 1024, %s144, [#allocation14], 64, 64, 4
    $region69: #{tpu_custom_call.1} parent=1 // pred_fallthru
      _
    // Predicated region
    $region70: #{tpu_custom_call.1} parent=1 // pred_check
      _
    $region71: #{tpu_custom_call.1} parent=1 // pred_check_branch
      %151 = sbr.rel (0) target = $region73
    $region72: #{tpu_custom_call.1} parent=1 // pred_region
      _
    $region73: #{tpu_custom_call.1} parent=1 // pred_fallthru
      _
    // Predicated region
    $region74: #{tpu_custom_call.1} parent=1 // pred_check
      _
    $region75: #{tpu_custom_call.1} parent=1 // pred_check_branch
      %153 = sbr.rel (0) target = $region77
    $region76: #{tpu_custom_call.1} parent=1 // pred_region
      _
    $region77: #{tpu_custom_call.1} parent=1 // pred_fallthru
      _
    // Predicated region
    $region78: #{tpu_custom_call.1} parent=1 // pred_check
      _
    $region79: #{tpu_custom_call.1} parent=1 // pred_check_branch
      %155 = sbr.rel (0) target = $region81
    $region80: #{tpu_custom_call.1} parent=1 // pred_region
      _
    $region81: #{tpu_custom_call.1} parent=1 // pred_fallthru
      _
    // Predicated region
    $region82: #{tpu_custom_call.1} parent=1 // pred_check
      _
    $region83: #{tpu_custom_call.1} parent=1 // pred_check_branch
      %157 = sbr.rel (0) target = $region85
    $region84: #{tpu_custom_call.1} parent=1 // pred_region
      %159 = vsyncadd [#allocation17], 0
      %s160 = sshll.u32 %s20, 4
      %s161 = int_to_ptr.hbm [resolvable:$true] %s160
      %s162 = sshll.u32 [#allocation16], 4
      %s163 = int_to_ptr.vmem [resolvable:$true] %s162
      %168 = dma.hbm_to_vmem [thread:$0]  %s161, 1024, %s163, [#allocation17], 64, 64, 4
    $region85: #{tpu_custom_call.1} parent=1 // pred_fallthru
      _
    // Predicated region
    $region86: #{tpu_custom_call.1} parent=1 // pred_check
      _
    $region87: #{tpu_custom_call.1} parent=1 // pred_check_branch
      %170 = sbr.rel (0) target = $region89
    $region88: #{tpu_custom_call.1} parent=1 // pred_region
      _
    $region89: #{tpu_custom_call.1} parent=1 // pred_fallthru
      _
    // Predicated region
    $region90: #{tpu_custom_call.1} parent=1 // pred_check
      _
    $region91: #{tpu_custom_call.1} parent=1 // pred_check_branch
      %172 = sbr.rel (0) target = $region93
    $region92: #{tpu_custom_call.1} parent=1 // pred_region
      _
    $region93: #{tpu_custom_call.1} parent=1 // pred_fallthru
      _
    // Predicated region
    $region94: #{tpu_custom_call.1} parent=1 // pred_check
      _
    $region95: #{tpu_custom_call.1} parent=1 // pred_check_branch
      %174 = sbr.rel (0) target = $region97
    $region96: #{tpu_custom_call.1} parent=1 // pred_region
      _
    $region97: #{tpu_custom_call.1} parent=1 // pred_fallthru
      _
    // Predicated region
    $region98: #{tpu_custom_call.1} parent=1 // pred_check
      _
    $region99: #{tpu_custom_call.1} parent=1 // pred_check_branch
      %176 = sbr.rel (0) target = $region101
    $region100: #{tpu_custom_call.1} parent=1 // pred_region
      %178 = dma.done [#allocation5], 1024
    $region101: #{tpu_custom_call.1} parent=1 // pred_fallthru
      _
    // Predicated region
    $region102: #{tpu_custom_call.1} parent=1 // pred_check
      _
    $region103: #{tpu_custom_call.1} parent=1 // pred_check_branch
      %180 = sbr.rel (0) target = $region105
    $region104: #{tpu_custom_call.1} parent=1 // pred_region
      %182 = dma.done [#allocation8], 1024
    $region105: #{tpu_custom_call.1} parent=1 // pred_fallthru
      _
    // Predicated region
    $region106: #{tpu_custom_call.1} parent=1 // pred_check
      _
    $region107: #{tpu_custom_call.1} parent=1 // pred_check_branch
      %184 = sbr.rel (0) target = $region109
    $region108: #{tpu_custom_call.1} parent=1 // pred_region
      %186 = dma.done [#allocation8], 1024
    $region109: #{tpu_custom_call.1} parent=1 // pred_fallthru
      _
    // Predicated region
    $region110: #{tpu_custom_call.1} parent=1 // pred_check
      _
    $region111: #{tpu_custom_call.1} parent=1 // pred_check_branch
      %188 = sbr.rel (0) target = $region113
    $region112: #{tpu_custom_call.1} parent=1 // pred_region
      %190 = dma.done [#allocation11], 1024
    $region113: #{tpu_custom_call.1} parent=1 // pred_fallthru
      _
    // Predicated region
    $region114: #{tpu_custom_call.1} parent=1 // pred_check
      _
    $region115: #{tpu_custom_call.1} parent=1 // pred_check_branch
      %192 = sbr.rel (0) target = $region117
    $region116: #{tpu_custom_call.1} parent=1 // pred_region
      %194 = dma.done [#allocation11], 1024
    $region117: #{tpu_custom_call.1} parent=1 // pred_fallthru
      _
    // Predicated region
    $region118: #{tpu_custom_call.1} parent=1 // pred_check
      _
    $region119: #{tpu_custom_call.1} parent=1 // pred_check_branch
      %196 = sbr.rel (0) target = $region121
    $region120: #{tpu_custom_call.1} parent=1 // pred_region
      %198 = dma.done [#allocation14], 1024
    $region121: #{tpu_custom_call.1} parent=1 // pred_fallthru
      _
    // Predicated region
    $region122: #{tpu_custom_call.1} parent=1 // pred_check
      _
    $region123: #{tpu_custom_call.1} parent=1 // pred_check_branch
      %200 = sbr.rel (0) target = $region125
    $region124: #{tpu_custom_call.1} parent=1 // pred_region
      %202 = dma.done [#allocation14], 1024
    $region125: #{tpu_custom_call.1} parent=1 // pred_fallthru
      _
    // Predicated region
    $region126: #{tpu_custom_call.1} parent=1 // pred_check
      _
    $region127: #{tpu_custom_call.1} parent=1 // pred_check_branch
      %204 = sbr.rel (0) target = $region129
    $region128: #{tpu_custom_call.1} parent=1 // pred_region
      %206 = dma.done [#allocation17], 1024
    $region129: #{tpu_custom_call.1} parent=1 // pred_fallthru
      _
    %v208 = vld [vmem:[%s0] sm:$0xff]
    %v209 = vld [vmem:[%s0 + $0x8] sm:$0xff]
    %v210 = vld [vmem:[%s2] sm:$0x1f]
    %v211 = vld [vmem:[%s2 + $0x8] sm:$0x1f]
    %v212 = vpack.c.bf16 %v209, %v208
    %v213 = vld [vmem:[#allocation4] sm:$0xf]
    %v214 = vld [vmem:[#allocation4 + $0x4] sm:$0xf]
    %v215 = vld [vmem:[#allocation4 + $0x8] sm:$0xf]
    %v216 = vld [vmem:[#allocation4 + $0xc] sm:$0xf]
    %v217 = vld [vmem:[#allocation4 + $0x10] sm:$0xf]
    %v218 = vld [vmem:[#allocation4 + $0x14] sm:$0xf]
    %v219 = vld [vmem:[#allocation4 + $0x18] sm:$0xf]
    %v220 = vld [vmem:[#allocation4 + $0x1c] sm:$0xf]
    %v221 = vld [vmem:[#allocation4 + $0x20] sm:$0xf]
    %v222 = vld [vmem:[#allocation4 + $0x24] sm:$0xf]
    %v223 = vld [vmem:[#allocation4 + $0x28] sm:$0xf]
    %v224 = vld [vmem:[#allocation4 + $0x2c] sm:$0xf]
    %v225 = vld [vmem:[#allocation4 + $0x30] sm:$0xf]
    %v226 = vld [vmem:[#allocation4 + $0x34] sm:$0xf]
    %v227 = vld [vmem:[#allocation4 + $0x38] sm:$0xf]
    %v228 = vld [vmem:[#allocation4 + $0x3c] sm:$0xf]
    %v245 = vunpack.c.l.b16 %v213
    %v246 = vunpack.c.l.b16 %v214
    %v247 = vunpack.c.l.b16 %v215
    %v248 = vunpack.c.l.b16 %v216
    %v249 = vunpack.c.l.b16 %v217
    %v250 = vunpack.c.l.b16 %v218
    %v251 = vunpack.c.l.b16 %v219
    %v252 = vunpack.c.l.b16 %v220
    %v253 = vunpack.c.l.b16 %v221
    %v254 = vunpack.c.l.b16 %v222
    %v255 = vunpack.c.l.b16 %v223
    %v256 = vunpack.c.l.b16 %v224
    %v257 = vunpack.c.l.b16 %v225
    %v258 = vunpack.c.l.b16 %v226
    %v259 = vunpack.c.l.b16 %v227
    %v260 = vunpack.c.l.b16 %v228
    %v261 = vpack.c.b16 %v246, %v245
    %v262 = vpack.c.b16 %v248, %v247
    %v263 = vpack.c.b16 %v250, %v249
    %v264 = vpack.c.b16 %v252, %v251
    %v265 = vpack.c.b16 %v254, %v253
    %v266 = vpack.c.b16 %v256, %v255
    %v267 = vpack.c.b16 %v258, %v257
    %v268 = vpack.c.b16 %v260, %v259
    %277 = vmatpush.bf16.msra.mxu0 %v268
    %278 = vmatpush.bf16.msra.mxu0 %v267
    %279 = vmatpush.bf16.msra.mxu0 %v266
    %280 = vmatpush.bf16.msra.mxu0 %v265
    %281 = vmatpush.bf16.msra.mxu0 %v264
    %282 = vmatpush.bf16.msra.mxu0 %v263
    %283 = vmatpush.bf16.msra.mxu0 %v262
    %284 = vmatpush.bf16.msra.mxu0 %v261
    %285 = vmatmul.bf16.gmra.mxu0 %v212
    %v286 = vpop.f32.mrf.mxu0
    %v287 = vadd.f32 0.0, %v286
    %v288 = vpop.f32.mrf.mxu0
    %v289 = vadd.f32 0.0, %v288
    %290 = vdwg.mxu0
    %v291 = vld [vmem:[#allocation7] sm:$0xf]
    %v292 = vld [vmem:[#allocation7 + $0x4] sm:$0xf]
    %v293 = vld [vmem:[#allocation7 + $0x8] sm:$0xf]
    %v294 = vld [vmem:[#allocation7 + $0xc] sm:$0xf]
    %v295 = vld [vmem:[#allocation7 + $0x10] sm:$0xf]
    %v296 = vld [vmem:[#allocation7 + $0x14] sm:$0xf]
    %v297 = vld [vmem:[#allocation7 + $0x18] sm:$0xf]
    %v298 = vld [vmem:[#allocation7 + $0x1c] sm:$0xf]
    %v299 = vld [vmem:[#allocation7 + $0x20] sm:$0xf]
    %v300 = vld [vmem:[#allocation7 + $0x24] sm:$0xf]
    %v301 = vld [vmem:[#allocation7 + $0x28] sm:$0xf]
    %v302 = vld [vmem:[#allocation7 + $0x2c] sm:$0xf]
    %v303 = vld [vmem:[#allocation7 + $0x30] sm:$0xf]
    %v304 = vld [vmem:[#allocation7 + $0x34] sm:$0xf]
    %v305 = vld [vmem:[#allocation7 + $0x38] sm:$0xf]
    %v306 = vld [vmem:[#allocation7 + $0x3c] sm:$0xf]
    %v323 = vunpack.c.l.b16 %v291
    %v324 = vunpack.c.l.b16 %v292
    %v325 = vunpack.c.l.b16 %v293
    %v326 = vunpack.c.l.b16 %v294
    %v327 = vunpack.c.l.b16 %v295
    %v328 = vunpack.c.l.b16 %v296
    %v329 = vunpack.c.l.b16 %v297
    %v330 = vunpack.c.l.b16 %v298
    %v331 = vunpack.c.l.b16 %v299
    %v332 = vunpack.c.l.b16 %v300
    %v333 = vunpack.c.l.b16 %v301
    %v334 = vunpack.c.l.b16 %v302
    %v335 = vunpack.c.l.b16 %v303
    %v336 = vunpack.c.l.b16 %v304
    %v337 = vunpack.c.l.b16 %v305
    %v338 = vunpack.c.l.b16 %v306
    %v339 = vpack.c.b16 %v324, %v323
    %v340 = vpack.c.b16 %v326, %v325
    %v341 = vpack.c.b16 %v328, %v327
    %v342 = vpack.c.b16 %v330, %v329
    %v343 = vpack.c.b16 %v332, %v331
    %v344 = vpack.c.b16 %v334, %v333
    %v345 = vpack.c.b16 %v336, %v335
    %v346 = vpack.c.b16 %v338, %v337
    %355 = vmatpush.bf16.msra.mxu0 %v346
    %356 = vmatpush.bf16.msra.mxu0 %v345
    %357 = vmatpush.bf16.msra.mxu0 %v344
    %358 = vmatpush.bf16.msra.mxu0 %v343
    %359 = vmatpush.bf16.msra.mxu0 %v342
    %360 = vmatpush.bf16.msra.mxu0 %v341
    %361 = vmatpush.bf16.msra.mxu0 %v340
    %362 = vmatpush.bf16.msra.mxu0 %v339
    %363 = vmatmul.bf16.gmra.mxu0 %v212
    %v364 = vpop.f32.mrf.mxu0
    %v365 = vadd.f32 0.0, %v364
    %v366 = vpop.f32.mrf.mxu0
    %v367 = vadd.f32 0.0, %v366
    %368 = vdwg.mxu0
    %v369 = vld [vmem:[#allocation9] sm:$0xf]
    %v370 = vld [vmem:[#allocation9 + $0x4] sm:$0xf]
    %v371 = vld [vmem:[#allocation9 + $0x8] sm:$0xf]
    %v372 = vld [vmem:[#allocation9 + $0xc] sm:$0xf]
    %v373 = vld [vmem:[#allocation9 + $0x10] sm:$0xf]
    %v374 = vld [vmem:[#allocation9 + $0x14] sm:$0xf]
    %v375 = vld [vmem:[#allocation9 + $0x18] sm:$0xf]
    %v376 = vld [vmem:[#allocation9 + $0x1c] sm:$0xf]
    %v377 = vld [vmem:[#allocation9 + $0x20] sm:$0xf]
    %v378 = vld [vmem:[#allocation9 + $0x24] sm:$0xf]
    %v379 = vld [vmem:[#allocation9 + $0x28] sm:$0xf]
    %v380 = vld [vmem:[#allocation9 + $0x2c] sm:$0xf]
    %v381 = vld [vmem:[#allocation9 + $0x30] sm:$0xf]
    %v382 = vld [vmem:[#allocation9 + $0x34] sm:$0xf]
    %v383 = vld [vmem:[#allocation9 + $0x38] sm:$0xf]
    %v384 = vld [vmem:[#allocation9 + $0x3c] sm:$0xf]
    %v401 = vunpack.c.l.b16 %v369
    %v402 = vunpack.c.l.b16 %v370
    %v403 = vunpack.c.l.b16 %v371
    %v404 = vunpack.c.l.b16 %v372
    %v405 = vunpack.c.l.b16 %v373
    %v406 = vunpack.c.l.b16 %v374
    %v407 = vunpack.c.l.b16 %v375
    %v408 = vunpack.c.l.b16 %v376
    %v409 = vunpack.c.l.b16 %v377
    %v410 = vunpack.c.l.b16 %v378
    %v411 = vunpack.c.l.b16 %v379
    %v412 = vunpack.c.l.b16 %v380
    %v413 = vunpack.c.l.b16 %v381
    %v414 = vunpack.c.l.b16 %v382
    %v415 = vunpack.c.l.b16 %v383
    %v416 = vunpack.c.l.b16 %v384
    %v417 = vpack.c.b16 %v402, %v401
    %v418 = vpack.c.b16 %v404, %v403
    %v419 = vpack.c.b16 %v406, %v405
    %v420 = vpack.c.b16 %v408, %v407
    %v421 = vpack.c.b16 %v410, %v409
    %v422 = vpack.c.b16 %v412, %v411
    %v423 = vpack.c.b16 %v414, %v413
    %v424 = vpack.c.b16 %v416, %v415
    %433 = vmatpush.bf16.msra.mxu0 %v424
    %434 = vmatpush.bf16.msra.mxu0 %v423
    %435 = vmatpush.bf16.msra.mxu0 %v422
    %436 = vmatpush.bf16.msra.mxu0 %v421
    %437 = vmatpush.bf16.msra.mxu0 %v420
    %438 = vmatpush.bf16.msra.mxu0 %v419
    %439 = vmatpush.bf16.msra.mxu0 %v418
    %440 = vmatpush.bf16.msra.mxu0 %v417
    %441 = vmatmul.bf16.gmra.mxu0 %v212
    %v442 = vpop.f32.mrf.mxu0
    %v443 = vadd.f32 0.0, %v442
    %v444 = vpop.f32.mrf.mxu0
    %v445 = vadd.f32 0.0, %v444
    %446 = vdwg.mxu0
    %v447 = vpack.c.bf16 %v287, %v287
    %v448 = vpack.c.bf16 %v289, %v289
    %v449 = vpack.c.bf16 %v365, %v365
    %v450 = vpack.c.bf16 %v367, %v367
    %v451 = vld [vmem:[#allocation2] sm:$0x1]
    %s452 = vtos %v451
    %v453 = vld [vmem:[%s1] sm:$0xf]
    %v454 = vld [vmem:[%s1 + $0x4] sm:$0xf]
    %v455 = vunpack.c.l.bf16 %v453
    %v456 = vunpack.c.l.bf16 %v454
    %v457 = vstv %s452
    %v458 = vmul.f32 %v457, %v455
    %v459 = vmul.f32 %v457, %v456
    %460 = vmatpush.bf16.xpose.msra.mxu0 0
    %461 = vmatpush.bf16.xpose.msra.mxu0 0
    %462 = vmatpush.bf16.xpose.msra.mxu0 0
    %463 = vmatpush.bf16.xpose.msra.mxu0 0
    %464 = vmatpush.bf16.xpose.msra.mxu0 0
    %465 = vmatpush.bf16.xpose.msra.mxu0 0
    %466 = vmatpush.bf16.xpose.msra.mxu0 0
    %467 = vmatpush.bf16.xpose.msra.mxu0 %v449
    %468 = vmatmul.bf16.gmra.mxu0 %v447
    %v469 = vpop.f32.mrf.mxu0
    %v470 = vadd.f32 %v458, %v469
    %v471 = vpop.f32.mrf.mxu0
    %472 = vdwg.mxu0
    %473 = vmatpush.bf16.xpose.msra.mxu0 0
    %474 = vmatpush.bf16.xpose.msra.mxu0 0
    %475 = vmatpush.bf16.xpose.msra.mxu0 0
    %476 = vmatpush.bf16.xpose.msra.mxu0 0
    %477 = vmatpush.bf16.xpose.msra.mxu0 0
    %478 = vmatpush.bf16.xpose.msra.mxu0 0
    %479 = vmatpush.bf16.xpose.msra.mxu0 0
    %480 = vmatpush.bf16.xpose.msra.mxu0 %v450
    %481 = vmatmul.bf16.gmra.mxu0 %v448
    %v482 = vpop.f32.mrf.mxu0
    %v483 = vadd.f32 %v459, %v482
    %v484 = vpop.f32.mrf.mxu0
    %485 = vdwg.mxu0
    %v486 = vperm.slane %v210, 0
    %v487 = vperm.slane %v211, 0
    %v488 = vadd.f32 %v470, %v486
    %v489 = vadd.f32 %v483, %v487
    %vm490 = vcmask 64512
    %v491 = vsel %vm490, %v488, -inf
    %492 = vmax.xlane.f32.xlu0 %v491
    %v493 = vpop.xlane.xlu0 %492
    %v494 = vsel %vm490, %v489, -inf
    %495 = vmax.xlane.f32.xlu0 %v494
    %v496 = vpop.xlane.xlu0 %495
    %v497 = vsub.f32 %v488, %v493
    %v498 = vsub.f32 %v489, %v496
    %v499 = vmul.f32 %v497, 1.442695
    %v500 = vpow.pop %v499
    %v501 = vmul.f32 %v498, 1.442695
    %v502 = vpow.pop %v501
    %v503 = vsel %vm490, %v500, 0.0
    %504 = vadd.xlane.f32.xlu0 %v503
    %v505 = vpop.xlane.xlu0 %504
    %v506 = vsel %vm490, %v502, 0.0
    %507 = vadd.xlane.f32.xlu0 %v506
    %v508 = vpop.xlane.xlu0 %507
    %v509 = vrcp.pop %v505
    %v510 = vrcp.pop %v508
    %v511 = vpack.c.bf16 %v500, %v500
    %v512 = vpack.c.bf16 %v502, %v502
    %v513 = vpack.c.bf16 %v443, %v443
    %v514 = vpack.c.bf16 %v445, %v445
    %v516 = vsel %vm490, %v511, 0
    %vm518 = vcmask 1043456
    %v520 = vsel %vm518, %v513, 0
    %522 = vmatpush.bf16.msra.mxu0 0
    %523 = vmatpush.bf16.msra.mxu0 0
    %524 = vmatpush.bf16.msra.mxu0 0
    %525 = vmatpush.bf16.msra.mxu0 0
    %526 = vmatpush.bf16.msra.mxu0 0
    %527 = vmatpush.bf16.msra.mxu0 0
    %528 = vmatpush.bf16.msra.mxu0 0
    %529 = vmatpush.bf16.msra.mxu0 %v520
    %530 = vmatmul.bf16.gmra.mxu0 %v516
    %v531 = vpop.f32.mrf.mxu0
    %v532 = vadd.f32 0.0, %v531
    %v533 = vpop.f32.mrf.mxu0
    %534 = vdwg.mxu0
    %v536 = vsel %vm490, %v512, 0
    %v539 = vsel %vm518, %v514, 0
    %541 = vmatpush.bf16.msra.mxu0 0
    %542 = vmatpush.bf16.msra.mxu0 0
    %543 = vmatpush.bf16.msra.mxu0 0
    %544 = vmatpush.bf16.msra.mxu0 0
    %545 = vmatpush.bf16.msra.mxu0 0
    %546 = vmatpush.bf16.msra.mxu0 0
    %547 = vmatpush.bf16.msra.mxu0 0
    %548 = vmatpush.bf16.msra.mxu0 %v539
    %549 = vmatmul.bf16.gmra.mxu0 %v536
    %v550 = vpop.f32.mrf.mxu0
    %v551 = vadd.f32 0.0, %v550
    %v552 = vpop.f32.mrf.mxu0
    %553 = vdwg.mxu0
    %v554 = vmul.f32 %v532, %v509
    %v555 = vmul.f32 %v551, %v510
    %v556 = vpack.c.bf16 %v555, %v554
    %v557 = vld [vmem:[#allocation10] sm:$0xf]
    %v558 = vld [vmem:[#allocation10 + $0x4] sm:$0xf]
    %v559 = vld [vmem:[#allocation10 + $0x8] sm:$0xf]
    %v560 = vld [vmem:[#allocation10 + $0xc] sm:$0xf]
    %v561 = vld [vmem:[#allocation10 + $0x10] sm:$0xf]
    %v562 = vld [vmem:[#allocation10 + $0x14] sm:$0xf]
    %v563 = vld [vmem:[#allocation10 + $0x18] sm:$0xf]
    %v564 = vld [vmem:[#allocation10 + $0x1c] sm:$0xf]
    %v565 = vld [vmem:[#allocation10 + $0x20] sm:$0xf]
    %v566 = vld [vmem:[#allocation10 + $0x24] sm:$0xf]
    %v567 = vld [vmem:[#allocation10 + $0x28] sm:$0xf]
    %v568 = vld [vmem:[#allocation10 + $0x2c] sm:$0xf]
    %v569 = vld [vmem:[#allocation10 + $0x30] sm:$0xf]
    %v570 = vld [vmem:[#allocation10 + $0x34] sm:$0xf]
    %v571 = vld [vmem:[#allocation10 + $0x38] sm:$0xf]
    %v572 = vld [vmem:[#allocation10 + $0x3c] sm:$0xf]
    %v589 = vunpack.c.l.b16 %v557
    %v590 = vunpack.c.l.b16 %v558
    %v591 = vunpack.c.l.b16 %v559
    %v592 = vunpack.c.l.b16 %v560
    %v593 = vunpack.c.l.b16 %v561
    %v594 = vunpack.c.l.b16 %v562
    %v595 = vunpack.c.l.b16 %v563
    %v596 = vunpack.c.l.b16 %v564
    %v597 = vunpack.c.l.b16 %v565
    %v598 = vunpack.c.l.b16 %v566
    %v599 = vunpack.c.l.b16 %v567
    %v600 = vunpack.c.l.b16 %v568
    %v601 = vunpack.c.l.b16 %v569
    %v602 = vunpack.c.l.b16 %v570
    %v603 = vunpack.c.l.b16 %v571
    %v604 = vunpack.c.l.b16 %v572
    %v605 = vpack.c.b16 %v590, %v589
    %v606 = vpack.c.b16 %v592, %v591
    %v607 = vpack.c.b16 %v594, %v593
    %v608 = vpack.c.b16 %v596, %v595
    %v609 = vpack.c.b16 %v598, %v597
    %v610 = vpack.c.b16 %v600, %v599
    %v611 = vpack.c.b16 %v602, %v601
    %v612 = vpack.c.b16 %v604, %v603
    %621 = vmatpush.bf16.msra.mxu0 %v612
    %622 = vmatpush.bf16.msra.mxu0 %v611
    %623 = vmatpush.bf16.msra.mxu0 %v610
    %624 = vmatpush.bf16.msra.mxu0 %v609
    %625 = vmatpush.bf16.msra.mxu0 %v608
    %626 = vmatpush.bf16.msra.mxu0 %v607
    %627 = vmatpush.bf16.msra.mxu0 %v606
    %628 = vmatpush.bf16.msra.mxu0 %v605
    %629 = vmatmul.bf16.gmra.mxu0 %v556
    %v630 = vpop.f32.mrf.mxu0
    %v631 = vadd.f32 0.0, %v630
    %v632 = vpop.f32.mrf.mxu0
    %v633 = vadd.f32 0.0, %v632
    %634 = vdwg.mxu0
    %v635 = vadd.f32 %v208, %v631
    %v636 = vadd.f32 %v209, %v633
    %v637 = vld [vmem:[%s8] sm:$0x1]
    %v638 = vld [vmem:[%s9] sm:$0x1]
    %639 = vadd.xlane.f32.xlu0 %v635
    %v640 = vpop.xlane.xlu0 %639
    %641 = vadd.xlane.f32.xlu0 %v636
    %v642 = vpop.xlane.xlu0 %641
    %v643 = vmul.f32 %v640, 0.03125
    %v644 = vmul.f32 %v642, 0.03125
    %v645 = vsub.f32 %v635, %v643
    %v646 = vsub.f32 %v636, %v644
    %v647 = vmul.f32 %v645, %v645
    %v648 = vmul.f32 %v646, %v646
    %649 = vadd.xlane.f32.xlu0 %v647
    %v650 = vpop.xlane.xlu0 %649
    %651 = vadd.xlane.f32.xlu0 %v648
    %v652 = vpop.xlane.xlu0 %651
    %v653 = vmul.f32 %v643, 96.0
    %v654 = vmul.f32 %v644, 96.0
    %v655 = vmul.f32 %v653, %v643
    %v656 = vmul.f32 %v654, %v644
    %v657 = vsub.f32 %v650, %v655
    %v658 = vsub.f32 %v652, %v656
    %v659 = vmul.f32 %v657, 0.03125
    %v660 = vmul.f32 %v658, 0.03125
    %v661 = vadd.f32 %v659, 1e-05
    %v662 = vadd.f32 %v660, 1e-05
    %v663 = vrsqrt.pop %v661
    %v664 = vmul.f32 %v663, %v661
    %v665 = vmul.f32 %v664, %v663
    %v666 = vmul.f32 0.5, %v665
    %v667 = vsub.f32 1.5, %v666
    %v668 = vmul.f32 %v663, %v667
    %vm669 = vweird.f32 %v661
    %vm670 = vweird.f32 %v663
    %vm671 = vmor %vm669, %vm670
    %v672 = vsel %vm671, %v663, %v668
    %v673 = vrsqrt.pop %v662
    %v674 = vmul.f32 %v673, %v662
    %v675 = vmul.f32 %v674, %v673
    %v676 = vmul.f32 0.5, %v675
    %v677 = vsub.f32 1.5, %v676
    %v678 = vmul.f32 %v673, %v677
    %vm679 = vweird.f32 %v662
    %vm680 = vweird.f32 %v673
    %vm681 = vmor %vm679, %vm680
    %v682 = vsel %vm681, %v673, %v678
    %v683 = vmul.f32 %v645, %v672
    %v684 = vmul.f32 %v646, %v682
    %v686 = vperm.slane %v637, 0
    %v688 = vmul.f32 %v683, %v686
    %v689 = vmul.f32 %v684, %v686
    %v691 = vperm.slane %v638, 0
    %v693 = vadd.f32 %v688, %v691
    %v694 = vadd.f32 %v689, %v691
    %v695 = vpack.c.bf16 %v694, %v693
    %v696 = vld [vmem:[#allocation12] sm:$0xf]
    %v697 = vld [vmem:[#allocation12 + $0x4] sm:$0xf]
    %v698 = vld [vmem:[#allocation12 + $0x8] sm:$0xf]
    %v699 = vld [vmem:[#allocation12 + $0xc] sm:$0xf]
    %v700 = vld [vmem:[#allocation12 + $0x10] sm:$0xf]
    %v701 = vld [vmem:[#allocation12 + $0x14] sm:$0xf]
    %v702 = vld [vmem:[#allocation12 + $0x18] sm:$0xf]
    %v703 = vld [vmem:[#allocation12 + $0x1c] sm:$0xf]
    %v704 = vld [vmem:[#allocation12 + $0x20] sm:$0xf]
    %v705 = vld [vmem:[#allocation12 + $0x24] sm:$0xf]
    %v706 = vld [vmem:[#allocation12 + $0x28] sm:$0xf]
    %v707 = vld [vmem:[#allocation12 + $0x2c] sm:$0xf]
    %v708 = vld [vmem:[#allocation12 + $0x30] sm:$0xf]
    %v709 = vld [vmem:[#allocation12 + $0x34] sm:$0xf]
    %v710 = vld [vmem:[#allocation12 + $0x38] sm:$0xf]
    %v711 = vld [vmem:[#allocation12 + $0x3c] sm:$0xf]
    %v712 = vld [vmem:[%s13] sm:$0x1]
    %v714 = vperm.slane %v712, 0
    %v732 = vunpack.c.l.b16 %v696
    %v733 = vunpack.c.l.b16 %v697
    %v734 = vunpack.c.l.b16 %v698
    %v735 = vunpack.c.l.b16 %v699
    %v736 = vunpack.c.l.b16 %v700
    %v737 = vunpack.c.l.b16 %v701
    %v738 = vunpack.c.l.b16 %v702
    %v739 = vunpack.c.l.b16 %v703
    %v740 = vunpack.c.l.b16 %v704
    %v741 = vunpack.c.l.b16 %v705
    %v742 = vunpack.c.l.b16 %v706
    %v743 = vunpack.c.l.b16 %v707
    %v744 = vunpack.c.l.b16 %v708
    %v745 = vunpack.c.l.b16 %v709
    %v746 = vunpack.c.l.b16 %v710
    %v747 = vunpack.c.l.b16 %v711
    %v748 = vpack.c.b16 %v733, %v732
    %v749 = vpack.c.b16 %v735, %v734
    %v750 = vpack.c.b16 %v737, %v736
    %v751 = vpack.c.b16 %v739, %v738
    %v752 = vpack.c.b16 %v741, %v740
    %v753 = vpack.c.b16 %v743, %v742
    %v754 = vpack.c.b16 %v745, %v744
    %v755 = vpack.c.b16 %v747, %v746
    %764 = vmatpush.bf16.msra.mxu0 %v755
    %765 = vmatpush.bf16.msra.mxu0 %v754
    %766 = vmatpush.bf16.msra.mxu0 %v753
    %767 = vmatpush.bf16.msra.mxu0 %v752
    %768 = vmatpush.bf16.msra.mxu0 %v751
    %769 = vmatpush.bf16.msra.mxu0 %v750
    %770 = vmatpush.bf16.msra.mxu0 %v749
    %771 = vmatpush.bf16.msra.mxu0 %v748
    %772 = vmatmul.bf16.gmra.mxu0 %v695
    %v773 = vpop.f32.mrf.mxu0
    %v774 = vadd.f32 %v714, %v773
    %v775 = vpop.f32.mrf.mxu0
    %v776 = vadd.f32 %v714, %v775
    %777 = vdwg.mxu0
    %v778 = vmax.f32 %v774, 0.0
    %v779 = vmax.f32 %v776, 0.0
    %v780 = vpack.c.bf16 %v779, %v778
    %v781 = vld [vmem:[#allocation13] sm:$0xf]
    %v782 = vld [vmem:[#allocation13 + $0x4] sm:$0xf]
    %v783 = vld [vmem:[#allocation13 + $0x8] sm:$0xf]
    %v784 = vld [vmem:[#allocation13 + $0xc] sm:$0xf]
    %v785 = vld [vmem:[#allocation13 + $0x10] sm:$0xf]
    %v786 = vld [vmem:[#allocation13 + $0x14] sm:$0xf]
    %v787 = vld [vmem:[#allocation13 + $0x18] sm:$0xf]
    %v788 = vld [vmem:[#allocation13 + $0x1c] sm:$0xf]
    %v789 = vld [vmem:[#allocation13 + $0x20] sm:$0xf]
    %v790 = vld [vmem:[#allocation13 + $0x24] sm:$0xf]
    %v791 = vld [vmem:[#allocation13 + $0x28] sm:$0xf]
    %v792 = vld [vmem:[#allocation13 + $0x2c] sm:$0xf]
    %v793 = vld [vmem:[#allocation13 + $0x30] sm:$0xf]
    %v794 = vld [vmem:[#allocation13 + $0x34] sm:$0xf]
    %v795 = vld [vmem:[#allocation13 + $0x38] sm:$0xf]
    %v796 = vld [vmem:[#allocation13 + $0x3c] sm:$0xf]
    %v797 = vld [vmem:[%s15] sm:$0x1]
    %v799 = vperm.slane %v797, 0
    %v817 = vunpack.c.l.b16 %v781
    %v818 = vunpack.c.l.b16 %v782
    %v819 = vunpack.c.l.b16 %v783
    %v820 = vunpack.c.l.b16 %v784
    %v821 = vunpack.c.l.b16 %v785
    %v822 = vunpack.c.l.b16 %v786
    %v823 = vunpack.c.l.b16 %v787
    %v824 = vunpack.c.l.b16 %v788
    %v825 = vunpack.c.l.b16 %v789
    %v826 = vunpack.c.l.b16 %v790
    %v827 = vunpack.c.l.b16 %v791
    %v828 = vunpack.c.l.b16 %v792
    %v829 = vunpack.c.l.b16 %v793
    %v830 = vunpack.c.l.b16 %v794
    %v831 = vunpack.c.l.b16 %v795
    %v832 = vunpack.c.l.b16 %v796
    %v833 = vpack.c.b16 %v818, %v817
    %v834 = vpack.c.b16 %v820, %v819
    %v835 = vpack.c.b16 %v822, %v821
    %v836 = vpack.c.b16 %v824, %v823
    %v837 = vpack.c.b16 %v826, %v825
    %v838 = vpack.c.b16 %v828, %v827
    %v839 = vpack.c.b16 %v830, %v829
    %v840 = vpack.c.b16 %v832, %v831
    %849 = vmatpush.bf16.msra.mxu0 %v840
    %850 = vmatpush.bf16.msra.mxu0 %v839
    %851 = vmatpush.bf16.msra.mxu0 %v838
    %852 = vmatpush.bf16.msra.mxu0 %v837
    %853 = vmatpush.bf16.msra.mxu0 %v836
    %854 = vmatpush.bf16.msra.mxu0 %v835
    %855 = vmatpush.bf16.msra.mxu0 %v834
    %856 = vmatpush.bf16.msra.mxu0 %v833
    %857 = vmatmul.bf16.gmra.mxu0 %v780
    %v858 = vpop.f32.mrf.mxu0
    %v859 = vadd.f32 %v799, %v858
    %v860 = vpop.f32.mrf.mxu0
    %v861 = vadd.f32 %v799, %v860
    %862 = vdwg.mxu0
    %v863 = vadd.f32 %v693, %v859
    %v864 = vadd.f32 %v694, %v861
    %v865 = vld [vmem:[%s10] sm:$0x1]
    %v866 = vld [vmem:[%s11] sm:$0x1]
    %867 = vadd.xlane.f32.xlu0 %v863
    %v868 = vpop.xlane.xlu0 %867
    %869 = vadd.xlane.f32.xlu0 %v864
    %v870 = vpop.xlane.xlu0 %869
    %v871 = vmul.f32 %v868, 0.03125
    %v872 = vmul.f32 %v870, 0.03125
    %v873 = vsub.f32 %v863, %v871
    %v874 = vsub.f32 %v864, %v872
    %v875 = vmul.f32 %v873, %v873
    %v876 = vmul.f32 %v874, %v874
    %877 = vadd.xlane.f32.xlu0 %v875
    %v878 = vpop.xlane.xlu0 %877
    %879 = vadd.xlane.f32.xlu0 %v876
    %v880 = vpop.xlane.xlu0 %879
    %v881 = vmul.f32 %v871, 96.0
    %v882 = vmul.f32 %v872, 96.0
    %v883 = vmul.f32 %v881, %v871
    %v884 = vmul.f32 %v882, %v872
    %v885 = vsub.f32 %v878, %v883
    %v886 = vsub.f32 %v880, %v884
    %v887 = vmul.f32 %v885, 0.03125
    %v888 = vmul.f32 %v886, 0.03125
    %v889 = vadd.f32 %v887, 1e-05
    %v890 = vadd.f32 %v888, 1e-05
    %v891 = vrsqrt.pop %v889
    %v892 = vmul.f32 %v891, %v889
    %v893 = vmul.f32 %v892, %v891
    %v894 = vmul.f32 0.5, %v893
    %v895 = vsub.f32 1.5, %v894
    %v896 = vmul.f32 %v891, %v895
    %vm897 = vweird.f32 %v889
    %vm898 = vweird.f32 %v891
    %vm899 = vmor %vm897, %vm898
    %v900 = vsel %vm899, %v891, %v896
    %v901 = vrsqrt.pop %v890
    %v902 = vmul.f32 %v901, %v890
    %v903 = vmul.f32 %v902, %v901
    %v904 = vmul.f32 0.5, %v903
    %v905 = vsub.f32 1.5, %v904
    %v906 = vmul.f32 %v901, %v905
    %vm907 = vweird.f32 %v890
    %vm908 = vweird.f32 %v901
    %vm909 = vmor %vm907, %vm908
    %v910 = vsel %vm909, %v901, %v906
    %v911 = vmul.f32 %v873, %v900
    %v912 = vmul.f32 %v874, %v910
    %v914 = vperm.slane %v865, 0
    %v916 = vmul.f32 %v911, %v914
    %v917 = vmul.f32 %v912, %v914
    %v919 = vperm.slane %v866, 0
    %v921 = vadd.f32 %v916, %v919
    %v922 = vadd.f32 %v917, %v919
    %v923 = vpack.c.bf16 %v922, %v921
    %v924 = vld [vmem:[#allocation15] sm:$0xf]
    %v925 = vld [vmem:[#allocation15 + $0x4] sm:$0xf]
    %v926 = vld [vmem:[#allocation15 + $0x8] sm:$0xf]
    %v927 = vld [vmem:[#allocation15 + $0xc] sm:$0xf]
    %v928 = vld [vmem:[#allocation15 + $0x10] sm:$0xf]
    %v929 = vld [vmem:[#allocation15 + $0x14] sm:$0xf]
    %v930 = vld [vmem:[#allocation15 + $0x18] sm:$0xf]
    %v931 = vld [vmem:[#allocation15 + $0x1c] sm:$0xf]
    %v932 = vld [vmem:[#allocation15 + $0x20] sm:$0xf]
    %v933 = vld [vmem:[#allocation15 + $0x24] sm:$0xf]
    %v934 = vld [vmem:[#allocation15 + $0x28] sm:$0xf]
    %v935 = vld [vmem:[#allocation15 + $0x2c] sm:$0xf]
    %v936 = vld [vmem:[#allocation15 + $0x30] sm:$0xf]
    %v937 = vld [vmem:[#allocation15 + $0x34] sm:$0xf]
    %v938 = vld [vmem:[#allocation15 + $0x38] sm:$0xf]
    %v939 = vld [vmem:[#allocation15 + $0x3c] sm:$0xf]
    %v940 = vld [vmem:[%s17] sm:$0x1]
    %v942 = vperm.slane %v940, 0
    %v960 = vunpack.c.l.b16 %v924
    %v961 = vunpack.c.l.b16 %v925
    %v962 = vunpack.c.l.b16 %v926
    %v963 = vunpack.c.l.b16 %v927
    %v964 = vunpack.c.l.b16 %v928
    %v965 = vunpack.c.l.b16 %v929
    %v966 = vunpack.c.l.b16 %v930
    %v967 = vunpack.c.l.b16 %v931
    %v968 = vunpack.c.l.b16 %v932
    %v969 = vunpack.c.l.b16 %v933
    %v970 = vunpack.c.l.b16 %v934
    %v971 = vunpack.c.l.b16 %v935
    %v972 = vunpack.c.l.b16 %v936
    %v973 = vunpack.c.l.b16 %v937
    %v974 = vunpack.c.l.b16 %v938
    %v975 = vunpack.c.l.b16 %v939
    %v976 = vpack.c.b16 %v961, %v960
    %v977 = vpack.c.b16 %v963, %v962
    %v978 = vpack.c.b16 %v965, %v964
    %v979 = vpack.c.b16 %v967, %v966
    %v980 = vpack.c.b16 %v969, %v968
    %v981 = vpack.c.b16 %v971, %v970
    %v982 = vpack.c.b16 %v973, %v972
    %v983 = vpack.c.b16 %v975, %v974
    %992 = vmatpush.bf16.msra.mxu0 %v983
    %993 = vmatpush.bf16.msra.mxu0 %v982
    %994 = vmatpush.bf16.msra.mxu0 %v981
    %995 = vmatpush.bf16.msra.mxu0 %v980
    %996 = vmatpush.bf16.msra.mxu0 %v979
    %997 = vmatpush.bf16.msra.mxu0 %v978
    %998 = vmatpush.bf16.msra.mxu0 %v977
    %999 = vmatpush.bf16.msra.mxu0 %v976
    %1000 = vmatmul.bf16.gmra.mxu0 %v923
    %v1001 = vpop.f32.mrf.mxu0
    %v1002 = vadd.f32 %v942, %v1001
    %v1003 = vpop.f32.mrf.mxu0
    %v1004 = vadd.f32 %v942, %v1003
    %1005 = vdwg.mxu0
    %v1006 = vmax.f32 %v1002, 0.0
    %v1007 = vmax.f32 %v1004, 0.0
    %v1008 = vld [vmem:[%s18] sm:$0x1]
    %v1010 = vperm.slane %v1008, 0
    %v1012 = vmul.f32 %v1006, %v1010
    %v1013 = vmul.f32 %v1007, %v1010
    %vm1014 = vcmask 523264
    %v1015 = vsel %vm1014, %v1012, 0.0
    %1016 = vadd.xlane.f32.xlu0 %v1015
    %v1017 = vpop.xlane.xlu0 %1016
    %v1018 = vsel %vm1014, %v1013, 0.0
    %1019 = vadd.xlane.f32.xlu0 %v1018
    %v1020 = vpop.xlane.xlu0 %1019
    %v1021 = vld [vmem:[%s19] sm:$0x1]
    %s1022 = vtos %v1021
    %v1023 = vstv %s1022
    %v1024 = vadd.f32 %v1017, %v1023
    %v1025 = vadd.f32 %v1020, %v1023
    %1028 = vrot.lane.b32.xlu0 %v1012, 64
    %v1029 = vpop.permute.xlu0 %1028
    %1030 = vrot.lane.b32.xlu0 %v1013, 64
    %v1031 = vpop.permute.xlu0 %1030
    %v1034 = vsel %vm1014, %v1029, 0.0
    %1035 = vadd.xlane.f32.xlu0 %v1034
    %v1036 = vpop.xlane.xlu0 %1035
    %v1037 = vsel %vm1014, %v1031, 0.0
    %1038 = vadd.xlane.f32.xlu0 %v1037
    %v1039 = vpop.xlane.xlu0 %1038
    %1041 = vrot.lane.b32.xlu0 %v1021, 127
    %v1042 = vpop.permute.xlu0 %1041
    %s1044 = vtos %v1042
    %v1045 = vstv %s1044
    %v1046 = vadd.f32 %v1036, %v1045
    %v1047 = vadd.f32 %v1039, %v1045
    %v1048 = vperm.slane %v210, 3
    %v1049 = vlaneseq
    %v1050 = vshrl.u32 %v1049, 7
    %1052 = vset.pattern.permute.xlu0 %v1050
    %1053 = vperm.xlu0 %1052, %v1048
    %v1054 = vpop.permute.xlu0 %1053
    %v1055 = vperm.slane %v211, 3
    %v1056 = vlaneseq
    %v1057 = vshrl.u32 %v1056, 7
    %1059 = vset.pattern.permute.xlu0 %v1057
    %1060 = vperm.xlu0 %1059, %v1055
    %v1061 = vpop.permute.xlu0 %1060
    %v1062 = vmul.f32 %v921, %v1054
    %v1063 = vmul.f32 %v922, %v1061
    %v1064 = vrot.slane %v1062, 4
    %v1065 = vadd.f32 %v1062, %v1064
    %v1066 = vrot.slane %v1065, 2
    %v1067 = vadd.f32 %v1065, %v1066
    %v1068 = vrot.slane %v1067, 1
    %v1069 = vadd.f32 %v1067, %v1068
    %v1070 = vrot.slane %v1063, 4
    %v1071 = vadd.f32 %v1063, %v1070
    %v1072 = vrot.slane %v1071, 2
    %v1073 = vadd.f32 %v1071, %v1072
    %v1074 = vrot.slane %v1073, 1
    %v1075 = vadd.f32 %v1073, %v1074
    %v1076 = vpack.c.bf16 %v1069, %v1069
    %v1077 = vpack.c.bf16 %v1075, %v1075
    %v1078 = vld [vmem:[#allocation16] sm:$0xf]
    %v1079 = vld [vmem:[#allocation16 + $0x4] sm:$0xf]
    %v1080 = vld [vmem:[#allocation16 + $0x8] sm:$0xf]
    %v1081 = vld [vmem:[#allocation16 + $0xc] sm:$0xf]
    %v1082 = vld [vmem:[#allocation16 + $0x10] sm:$0xf]
    %v1083 = vld [vmem:[#allocation16 + $0x14] sm:$0xf]
    %v1084 = vld [vmem:[#allocation16 + $0x18] sm:$0xf]
    %v1085 = vld [vmem:[#allocation16 + $0x1c] sm:$0xf]
    %v1086 = vld [vmem:[#allocation16 + $0x20] sm:$0xf]
    %v1087 = vld [vmem:[#allocation16 + $0x24] sm:$0xf]
    %v1088 = vld [vmem:[#allocation16 + $0x28] sm:$0xf]
    %v1089 = vld [vmem:[#allocation16 + $0x2c] sm:$0xf]
    %v1090 = vld [vmem:[#allocation16 + $0x30] sm:$0xf]
    %v1091 = vld [vmem:[#allocation16 + $0x34] sm:$0xf]
    %v1092 = vld [vmem:[#allocation16 + $0x38] sm:$0xf]
    %v1093 = vld [vmem:[#allocation16 + $0x3c] sm:$0xf]
    %v1094 = vld [vmem:[%s21] sm:$0x1]
    %v1096 = vperm.slane %v1094, 0
    %v1100 = vunpack.c.l.b16 %v1076
    %v1101 = vunpack.c.l.b16 %v1077
    %vm1102 = vcmask 1041409
    %v1103 = vsel %vm1102, %v1101, %v1100
    %v1104 = vpack.c.b16 %v1103, %v1103
    %v1122 = vunpack.c.l.b16 %v1078
    %v1123 = vunpack.c.l.b16 %v1079
    %v1124 = vunpack.c.l.b16 %v1080
    %v1125 = vunpack.c.l.b16 %v1081
    %v1126 = vunpack.c.l.b16 %v1082
    %v1127 = vunpack.c.l.b16 %v1083
    %v1128 = vunpack.c.l.b16 %v1084
    %v1129 = vunpack.c.l.b16 %v1085
    %v1130 = vunpack.c.l.b16 %v1086
    %v1131 = vunpack.c.l.b16 %v1087
    %v1132 = vunpack.c.l.b16 %v1088
    %v1133 = vunpack.c.l.b16 %v1089
    %v1134 = vunpack.c.l.b16 %v1090
    %v1135 = vunpack.c.l.b16 %v1091
    %v1136 = vunpack.c.l.b16 %v1092
    %v1137 = vunpack.c.l.b16 %v1093
    %v1138 = vpack.c.b16 %v1123, %v1122
    %v1139 = vpack.c.b16 %v1125, %v1124
    %v1140 = vpack.c.b16 %v1127, %v1126
    %v1141 = vpack.c.b16 %v1129, %v1128
    %v1142 = vpack.c.b16 %v1131, %v1130
    %v1143 = vpack.c.b16 %v1133, %v1132
    %v1144 = vpack.c.b16 %v1135, %v1134
    %v1145 = vpack.c.b16 %v1137, %v1136
    %1154 = vmatpush.bf16.msra.mxu0 %v1145
    %1155 = vmatpush.bf16.msra.mxu0 %v1144
    %1156 = vmatpush.bf16.msra.mxu0 %v1143
    %1157 = vmatpush.bf16.msra.mxu0 %v1142
    %1158 = vmatpush.bf16.msra.mxu0 %v1141
    %1159 = vmatpush.bf16.msra.mxu0 %v1140
    %1160 = vmatpush.bf16.msra.mxu0 %v1139
    %1161 = vmatpush.bf16.msra.mxu0 %v1138
    %1162 = vmatmul.bf16.gmra.mxu0 %v1104
    %v1163 = vpop.f32.mrf.mxu0
    %v1164 = vadd.f32 %v1096, %v1163
    %v1165 = vpop.f32.mrf.mxu0
    %1166 = vdwg.mxu0
    %v1168 = vrot.slane %v1164, 1
    %v1169 = vperm.slane %v1164, 0
    %v1170 = vperm.slane %v1168, 0
    %v1173 = vmul.f32 %v921, %v1169
    %v1174 = vmul.f32 %v922, %v1170
    %1175 = vadd.xlane.f32.xlu0 %v1173
    %v1176 = vpop.xlane.xlu0 %1175
    %1177 = vadd.xlane.f32.xlu0 %v1174
    %v1178 = vpop.xlane.xlu0 %1177
    %v1179 = vld [vmem:[%s22] sm:$0x1]
    %v1181 = vperm.slane %v1179, 0
    %v1183 = vmul.f32 %v1069, %v1181
    %v1184 = vmul.f32 %v1075, %v1181
    %v1187 = vrot.slane %v1184, 7
    %v1188 = vsel %vm1102, %v1187, %v1183
    %vm1190 = vcmask 1041408
    %v1191 = vsel %vm1190, %v1188, 0.0
    %1192 = vadd.xlane.f32.xlu0 %v1191
    %v1193 = vpop.xlane.xlu0 %1192
    %v1195 = vperm.slane %v1193, 0
    %v1196 = vperm.slane %v1193, 1
    %v1199 = vadd.f32 %v1176, %v1195
    %v1200 = vadd.f32 %v1178, %v1196
    %v1201 = vld [vmem:[#allocation3] sm:$0x1]
    %v1203 = vperm.slane %v1201, 0
    %1204 = vset.pattern.permute.xlu0 0
    %1205 = vperm.xlu0 %1204, %v1203
    %v1206 = vpop.permute.xlu0 %1205
    %v1208 = vadd.f32 %v1199, %v1206
    %v1209 = vadd.f32 %v1200, %v1206
    %vm1210 = vcmp.gt.f32.partialorder %v210, 0.5
    %vm1211 = vcmp.gt.f32.partialorder %v211, 0.5
    %v1214 = vlaneseq
    %v1215 = vand.u32 %v1214, 127
    %v1216 = vperm.slane %v1024, %v1215
    %v1217 = vperm.slane %v1025, %v1215
    %v1220 = vsel %vm1210, %v1216, -1e+09
    %v1221 = vsel %vm1211, %v1217, -1e+09
    %v1224 = vrot.slane %v1221, 7
    %vm1225 = vcmask 1042434
    %v1226 = vsel %vm1225, %v1224, %v1220
    %vm1228 = vcmask 59393
    %v1229 = vsel %vm1228, %v1226, -inf
    %1230 = vmax.xlane.f32.xlu0 %v1229
    %v1231 = vpop.xlane.xlu0 %1230
    %v1233 = vrot.slane %v1231, 1
    %v1236 = vsub.f32 %v1220, %v1231
    %v1237 = vsub.f32 %v1221, %v1233
    %v1238 = vmul.f32 %v1236, 1.442695
    %v1239 = vpow.pop %v1238
    %v1240 = vmul.f32 %v1237, 1.442695
    %v1241 = vpow.pop %v1240
    %v1244 = vrot.slane %v1241, 7
    %v1245 = vsel %vm1225, %v1244, %v1239
    %v1247 = vsel %vm1228, %v1245, 0.0
    %1248 = vadd.xlane.f32.xlu0 %v1247
    %v1249 = vpop.xlane.xlu0 %1248
    %v1250 = vlog2.pop %v1249
    %v1251 = vmul.f32 %v1250, 0.6931472
    %v1252 = vadd.f32 %v1251, %v1231
    %v1254 = vrot.slane %v1252, 1
    %v1257 = vsub.f32 %v1220, %v1252
    %v1258 = vsub.f32 %v1221, %v1254
    %1261 = vset.pattern.permute.xlu0 0
    %1262 = vperm.xlu0 %1261, %v1208
    %v1263 = vpop.permute.xlu0 %1262
    %1264 = vset.pattern.permute.xlu0 0
    %1265 = vperm.xlu0 %1264, %v1209
    %v1266 = vpop.permute.xlu0 %1265
    %v1267 = vperm.slane %v1263, %v1215
    %v1268 = vperm.slane %v1266, %v1215
    %v1271 = vsel %vm1210, %v1267, -1e+09
    %v1272 = vsel %vm1211, %v1268, -1e+09
    %v1275 = vrot.slane %v1272, 7
    %vm1276 = vcmask 1045509
    %v1277 = vsel %vm1276, %v1275, %v1271
    %vm1279 = vcmask 62468
    %v1280 = vsel %vm1279, %v1277, -inf
    %1281 = vmax.xlane.f32.xlu0 %v1280
    %v1282 = vpop.xlane.xlu0 %1281
    %v1284 = vrot.slane %v1282, 1
    %v1287 = vsub.f32 %v1271, %v1282
    %v1288 = vsub.f32 %v1272, %v1284
    %v1289 = vmul.f32 %v1287, 1.442695
    %v1290 = vpow.pop %v1289
    %v1291 = vmul.f32 %v1288, 1.442695
    %v1292 = vpow.pop %v1291
    %v1295 = vrot.slane %v1292, 7
    %v1296 = vsel %vm1276, %v1295, %v1290
    %v1298 = vsel %vm1279, %v1296, 0.0
    %1299 = vadd.xlane.f32.xlu0 %v1298
    %v1300 = vpop.xlane.xlu0 %1299
    %v1301 = vlog2.pop %v1300
    %v1302 = vmul.f32 %v1301, 0.6931472
    %v1303 = vadd.f32 %v1302, %v1282
    %v1305 = vrot.slane %v1303, 1
    %v1308 = vsub.f32 %v1271, %v1303
    %v1309 = vsub.f32 %v1272, %v1305
    %v1312 = vperm.slane %v1046, %v1215
    %v1313 = vperm.slane %v1047, %v1215
    %v1316 = vsel %vm1210, %v1312, -1e+09
    %v1317 = vsel %vm1211, %v1313, -1e+09
    %v1320 = vrot.slane %v1308, 3
    %v1321 = vrot.slane %v1309, 3
    %v1324 = vrot.slane %v1316, 1
    %v1325 = vrot.slane %v1317, 1
    %v1328 = vrot.slane %v1258, 7
    %v1329 = vsel %vm1225, %v1328, %v1257
    %v1330 = vrot.slane %v1321, 7
    %v1331 = vsel %vm1225, %v1330, %v1320
    %v1332 = vrot.slane %v1325, 7
    %v1333 = vsel %vm1225, %v1332, %v1324
    %1337 = vst.msk [vmem:[#allocation18 - $0x1] sm:$0x6] %vm1228, %v1329
    %1338 = vst.msk [vmem:[#allocation18 + $0x1] sm:$0x6] %vm1228, %v1331
    %1339 = vst.msk [vmem:[#allocation18 + $0x3] sm:$0x6] %vm1228, %v1333
    // Predicated region
    $region130: #{tpu_custom_call.1} parent=1 // pred_check
      _
    $region131: #{tpu_custom_call.1} parent=1 // pred_check_branch
      %1341 = sbr.rel (0) target = $region133
    $region132: #{tpu_custom_call.1} parent=1 // pred_region
      %1343 = vsyncadd [#allocation6], 0
      %s1344 = sshll.u32 [#allocation18], 4
      %s1345 = int_to_ptr.vmem [resolvable:$true] %s1344
      %s1346 = sshll.u32 %s24, 4
      %s1347 = int_to_ptr.hbm [resolvable:$true] %s1346
      %1352 = dma.vmem_to_hbm [thread:$0]  %s1345, 96, %s1347, [#allocation6], 32, 32, 2
    $region133: #{tpu_custom_call.1} parent=1 // pred_fallthru
      _
    // Predicated region
    $region134: #{tpu_custom_call.1} parent=1 // pred_check
      _
    $region135: #{tpu_custom_call.1} parent=1 // pred_check_branch
      %1354 = sbr.rel (0) target = $region137
    $region136: #{tpu_custom_call.1} parent=1 // pred_region
      %1356 = dma.done [#allocation6], 96
    $region137: #{tpu_custom_call.1} parent=1 // pred_fallthru
      _
    %1357 = vsyncpa [#allocation5], 1
    %1358 = vsyncpa [#allocation8], 1
    %1359 = vsyncpa [#allocation11], 1
    %1360 = vsyncpa [#allocation14], 1
    %1361 = vsyncpa [#allocation17], 1
    %1362 = vsyncpa [#allocation6], 1

</llo_original>
